<compile_context>
chip_gen: v5e
topology: v5e:2x2
jax: 0.10.0
libtpu: 0.0.40
codegen_flags: <defaults>
</compile_context>

<pallas_src>
import functools

import numpy as np

import jax
import jax.numpy as jnp
from jax.experimental import pallas as pl
from jax.experimental.pallas import tpu as pltpu


# ---------------------------------------------------------------------------
# Fused kernel: conv1+relu+pool1+conv2+relu+pool2+flatten+fc1+fc2+fc3
# Batched over a (tb*40)-row slab; sample b lives in rows [40b, 40b+32).
# ---------------------------------------------------------------------------
def _make_lenet_kernel(tb):
    R = tb * 40                 # slab rows per grid step
    NA1 = R - 4                 # conv1 output rows   (tap offsets 0..4)
    NP1 = NA1 - 1               # row-pooled-1 rows   (offsets 0..1)
    NA2 = NP1 - 8               # conv2 output rows   (tap offsets 0,2,..,8)
    NP2 = NA2 - 2               # row-pooled-2 rows   (offsets 0..2)
    NSEL = R - 32               # K of the one-hot gather matmul

    def kernel(x_ref, sel_ref,                         # (R,96) bf16, (tb,NSEL) bf16
               w1_ref, b1_ref, wp1_ref,                # conv1 + pool1
               w2_ref, b2_ref, wp2_ref,                # conv2 + pool2
               f1_ref, fb1_ref, f2_ref, fb2_ref, f3_ref, fb3_ref,   # MLP
               o_ref):                                 # (tb, 128) f32
        f32, bf16 = jnp.float32, jnp.bfloat16

        # ---- conv1 + bias + ReLU, batched over the whole slab ----------------
        # output row r <-> (b=r//40, oh=r%40), valid for oh<28; lanes = ow*6+co
        acc1 = jnp.dot(x_ref[pl.ds(0, NA1), :], w1_ref[0],
                       preferred_element_type=f32) + b1_ref[...]
        for di in range(1, 5):
            acc1 = acc1 + jnp.dot(x_ref[pl.ds(di, NA1), :], w1_ref[di],
                                  preferred_element_type=f32)
        a1 = jnp.maximum(acc1, 0.0)                    # (NA1, 168) f32

        # ---- maxpool1: rows on the VPU, columns via bf16 selection matmuls ---
        rm1 = jnp.maximum(a1[0:NP1, :], a1[1:NP1 + 1, :]).astype(bf16)
        p1 = jnp.maximum(
            jnp.dot(rm1, wp1_ref[0], preferred_element_type=f32),
            jnp.dot(rm1, wp1_ref[1], preferred_element_type=f32))
        p1b = p1.astype(bf16)                          # (NP1, 84), lane = pw*6+ci
        # valid pooled row ph of sample b lives at slab row 40b + 2*ph

        # ---- conv2 + bias + ReLU ---------------------------------------------
        # output row oh2 of sample b lives at slab row 40b + 2*oh2
        acc2 = jnp.dot(p1b[0:NA2, :], w2_ref[0],
                       preferred_element_type=f32) + b2_ref[...]
        for di in range(1, 5):
            acc2 = acc2 + jnp.dot(p1b[2 * di:2 * di + NA2, :], w2_ref[di],
                                  preferred_element_type=f32)
        a2 = jnp.maximum(acc2, 0.0)                    # (NA2, 160) f32

        # ---- maxpool2 ---------------------------------------------------------
        rm2 = jnp.maximum(a2[0:NP2, :], a2[2:NP2 + 2, :]).astype(bf16)
        p2 = jnp.maximum(
            jnp.dot(rm2, wp2_ref[0], preferred_element_type=f32),
            jnp.dot(rm2, wp2_ref[1], preferred_element_type=f32))
        p2b = p2.astype(bf16)                          # (NP2, 80), lane = qw*16+co
        # valid pooled row qh of sample b lives at slab row 40b + 4*qh

        # ---- flatten folded into fc1 ------------------------------------------
        # gather each pooled-row plane with a one-hot selection matmul (exact),
        # then accumulate its fc1 contribution (fc1 pre-split per qh, padded->128)
        sel = sel_ref[...]                             # (tb, NSEL) one-hot bf16
        h1 = fb1_ref[...]                              # (1, 128) f32 bias
        for qh in range(5):
            g = jnp.dot(sel, p2b[4 * qh:4 * qh + NSEL, :],
                        preferred_element_type=f32).astype(bf16)    # (tb, 80)
            h1 = h1 + jnp.dot(g, f1_ref[qh], preferred_element_type=f32)
        h1 = jnp.maximum(h1, 0.0)                      # (tb, 128)

        # ---- fc2 / fc3 ---------------------------------------------------------
        h2 = jnp.maximum(
            jnp.dot(h1.astype(bf16), f2_ref[...], preferred_element_type=f32)
            + fb2_ref[...], 0.0)                       # (tb, 128)
        logits = jnp.dot(h2.astype(bf16), f3_ref[...],
                         preferred_element_type=f32) + fb3_ref[...]  # (tb, 128)
        o_ref[...] = logits.astype(o_ref.dtype)

    return kernel


# ---------------------------------------------------------------------------
# One-time (outside-jit) weight packing.
# ---------------------------------------------------------------------------
def prepare_params(params, classes):
    w1 = np.asarray(params["conv1_w"], np.float32)   # (6, 3, 5, 5)
    b1 = np.asarray(params["conv1_b"], np.float32)
    w2 = np.asarray(params["conv2_w"], np.float32)   # (16, 6, 5, 5)
    b2 = np.asarray(params["conv2_b"], np.float32)
    f1 = np.asarray(params["fc1_w"], np.float32)     # (120, 400)
    fb1 = np.asarray(params["fc1_b"], np.float32)
    f2 = np.asarray(params["fc2_w"], np.float32)     # (84, 120)
    fb2 = np.asarray(params["fc2_b"], np.float32)
    f3 = np.asarray(params["fc3_w"], np.float32)     # (classes, 84)
    fb3 = np.asarray(params["fc3_b"], np.float32)

    # conv1: per kernel-row matrix; input lane = iw*3+ci, output lane = ow*6+co
    w1p = np.zeros((5, 96, 168), np.float32)
    for di in range(5):
        for dj in range(5):
            blk = w1[:, :, di, dj].T                 # (ci, co) = (3, 6)
            for ow in range(28):
                iw = ow + dj
                w1p[di, iw * 3:(iw + 1) * 3, ow * 6:(ow + 1) * 6] = blk
    b1p = np.tile(b1, 28).reshape(1, 168)

    # conv2: input lane = pw*6+ci (84), output lane = ow2*16+co (160)
    w2p = np.zeros((5, 84, 160), np.float32)
    for di in range(5):
        for dj in range(5):
            blk = w2[:, :, di, dj].T                 # (ci, co) = (6, 16)
            for ow in range(10):
                iw = ow + dj
                w2p[di, iw * 6:(iw + 1) * 6, ow * 16:(ow + 1) * 16] = blk
    b2p = np.tile(b2, 10).reshape(1, 160)

    # 0/1 column-pool selection matrices (even / odd output column of the pair)
    def col_sel(n_out_w, c):
        m = np.zeros((2, 2 * n_out_w * c, n_out_w * c), np.float32)
        for pw in range(n_out_w):
            for cc in range(c):
                m[0, (2 * pw) * c + cc, pw * c + cc] = 1.0
                m[1, (2 * pw + 1) * c + cc, pw * c + cc] = 1.0
        return m

    wp1 = col_sel(14, 6)        # (2, 168, 84)
    wp2 = col_sel(5, 16)        # (2, 160, 80)

    # fc1 split per pooled row qh: rows = qw*16+co ; PyTorch col = co*25+qh*5+qw
    # output padded 120 -> 128 lanes
    f1q = f1.reshape(120, 16, 5, 5).transpose(2, 3, 1, 0).reshape(5, 80, 120)
    f1p = np.zeros((5, 80, 128), np.float32)
    f1p[:, :, :120] = f1q
    fb1p = np.zeros((1, 128), np.float32)
    fb1p[0, :120] = fb1

    # fc2: 120->128 input rows (zero pad), 84->128 output lanes (zero pad)
    f2p = np.zeros((128, 128), np.float32)
    f2p[:120, :84] = f2.T
    fb2p = np.zeros((1, 128), np.float32)
    fb2p[0, :84] = fb2

    # fc3: 84->128 input rows, classes -> multiple of 128 output lanes
    n_out = ((classes + 127) // 128) * 128
    f3p = np.zeros((128, n_out), np.float32)
    f3p[:84, :classes] = f3.T
    fb3p = np.zeros((1, n_out), np.float32)
    fb3p[0, :classes] = fb3

    bf16 = jnp.bfloat16
    return dict(
        w1=jnp.asarray(w1p, bf16), b1=jnp.asarray(b1p),
        wp1=jnp.asarray(wp1, bf16),
        w2=jnp.asarray(w2p, bf16), b2=jnp.asarray(b2p),
        wp2=jnp.asarray(wp2, bf16),
        f1=jnp.asarray(f1p, bf16), fb1=jnp.asarray(fb1p),
        f2=jnp.asarray(f2p, bf16), fb2=jnp.asarray(fb2p),
        f3=jnp.asarray(f3p, bf16), fb3=jnp.asarray(fb3p),
    )


# ---------------------------------------------------------------------------
# Forward wrapper: one fused pallas_call, grid over batch tiles
# ---------------------------------------------------------------------------
def lenet2_forward(x_nchw, packed, classes):
    B = x_nchw.shape[0]
    # batch tile: multiple of 8 (target 32) when tiled so v7x gets >= 2 steps;
    # B <= 8 runs as a single full-array block
    if B <= 8:
        tb = B
    else:
        tb = min(32, 8 * ((B + 15) // 16))
    b_pad = ((B + tb - 1) // tb) * tb

    # pack input: NCHW -> slab rows = b*40 + h (8 zero pad rows per sample),
    # lanes = w*3 + c ; cast once to bf16
    xp = jnp.transpose(x_nchw, (0, 2, 3, 1)).reshape(B, 32, 96)
    xp = jnp.pad(xp, ((0, b_pad - B), (0, 8), (0, 0)))            # (b_pad, 40, 96)
    x_slab = xp.reshape(b_pad * 40, 96).astype(jnp.bfloat16)

    # one-hot gather matrix: sel[b, 40*b] = 1 (constant, built at trace time)
    R = tb * 40
    nsel = R - 32
    sel_np = np.zeros((tb, nsel), np.float32)
    sel_np[np.arange(tb), np.arange(tb) * 40] = 1.0
    sel = jnp.asarray(sel_np, jnp.bfloat16)

    weight_names = ["w1", "b1", "wp1", "w2", "b2", "wp2",
                    "f1", "fb1", "f2", "fb2", "f3", "fb3"]
    weights = [packed[k] for k in weight_names]
    n_out = packed["f3"].shape[1]

    def const_spec(a):
        nd = a.ndim
        return pl.BlockSpec(a.shape, lambda *_: (0,) * nd)

    out = pl.pallas_call(
        _make_lenet_kernel(tb),
        out_shape=jax.ShapeDtypeStruct((b_pad, n_out), jnp.float32),
        grid=(b_pad // tb,),
        in_specs=[pl.BlockSpec((tb * 40, 96), lambda i: (i, 0)),
                  pl.BlockSpec(sel.shape, lambda i: (0, 0))]
                + [const_spec(w) for w in weights],
        out_specs=pl.BlockSpec((tb, n_out), lambda i: (i, 0)),
        compiler_params=pltpu.CompilerParams(
            dimension_semantics=("parallel",),
            vmem_limit_bytes=32 * 1024 * 1024),
    )(x_slab, sel, *weights)
    return out[:B, :classes]


# ---------------------------------------------------------------------------
# Pure-JAX reference (tolerance check) and deterministic init
# ---------------------------------------------------------------------------
def lenet2_reference(x, params):
    def conv(x, w, b):
        y = jax.lax.conv_general_dilated(
            x, w, window_strides=(1, 1), padding="VALID",
            dimension_numbers=("NCHW", "OIHW", "NCHW"))
        return jnp.maximum(y + b[None, :, None, None], 0.0)

    def pool(x):
        return jax.lax.reduce_window(
            x, -jnp.inf, jax.lax.max, (1, 1, 2, 2), (1, 1, 2, 2), "VALID")

    x = pool(conv(x, params["conv1_w"], params["conv1_b"]))
    x = pool(conv(x, params["conv2_w"], params["conv2_b"]))
    x = x.reshape(x.shape[0], -1)
    x = jnp.maximum(x @ params["fc1_w"].T + params["fc1_b"], 0.0)
    x = jnp.maximum(x @ params["fc2_w"].T + params["fc2_b"], 0.0)
    return x @ params["fc3_w"].T + params["fc3_b"]


def init_params(key, classes=10):
    ks = jax.random.split(key, 10)

    def dense(k, shape, fan_in):
        return jax.random.normal(k, shape, jnp.float32) / jnp.sqrt(float(fan_in))

    return {
        "conv1_w": dense(ks[0], (6, 3, 5, 5), 3 * 25),
        "conv1_b": dense(ks[1], (6,), 3 * 25),
        "conv2_w": dense(ks[2], (16, 6, 5, 5), 6 * 25),
        "conv2_b": dense(ks[3], (16,), 6 * 25),
        "fc1_w": dense(ks[4], (120, 16 * 5 * 5), 400),
        "fc1_b": dense(ks[5], (120,), 400),
        "fc2_w": dense(ks[6], (84, 120), 120),
        "fc2_b": dense(ks[7], (84,), 120),
        "fc3_w": dense(ks[8], (classes, 84), 84),
        "fc3_b": dense(ks[9], (classes,), 84),
    }


if __name__ == "__main__":
    classes = 10
    key = jax.random.PRNGKey(0)
    kx, kp = jax.random.split(key)
    # LeNet geometry requires 32x32: 32 -conv5-> 28 -pool-> 14 -conv5-> 10 -pool-> 5
    x = jax.random.normal(kx, (2, 3, 32, 32), jnp.float32)
    params = init_params(kp, classes)
    packed = prepare_params(params, classes)          # one-time packing, outside jit

    fwd = jax.jit(functools.partial(lenet2_forward, packed=packed, classes=classes))
    out = fwd(x)
    jax.block_until_ready(out)

    assert out.shape == (2, classes)
    assert bool(jnp.all(jnp.isfinite(out)))
    ref = lenet2_reference(x, params)
    scale = float(jnp.max(jnp.abs(ref)))
    err = float(jnp.max(jnp.abs(out - ref)))
    # scale-aware tolerance (bf16 matmul operands)
    assert err <= 0.03 + 0.08 * scale, f"mismatch vs reference: err {err}, scale {scale}"
    print("KERNEL_OK")
</pallas_src>

<mosaic_0001>
module attributes {stable_mosaic.version = 11 : i64} {
  func.func @kernel(%arg0: i32, %arg1: memref<80x96xbf16, #tpu.memory_space<vmem>>, %arg2: memref<2x48xbf16, #tpu.memory_space<vmem>>, %arg3: memref<5x96x168xbf16, #tpu.memory_space<vmem>>, %arg4: memref<1x168xf32, #tpu.memory_space<vmem>>, %arg5: memref<2x168x84xbf16, #tpu.memory_space<vmem>>, %arg6: memref<5x84x160xbf16, #tpu.memory_space<vmem>>, %arg7: memref<1x160xf32, #tpu.memory_space<vmem>>, %arg8: memref<2x160x80xbf16, #tpu.memory_space<vmem>>, %arg9: memref<5x80x128xbf16, #tpu.memory_space<vmem>>, %arg10: memref<1x128xf32, #tpu.memory_space<vmem>>, %arg11: memref<128x128xbf16, #tpu.memory_space<vmem>>, %arg12: memref<1x128xf32, #tpu.memory_space<vmem>>, %arg13: memref<128x128xbf16, #tpu.memory_space<vmem>>, %arg14: memref<1x128xf32, #tpu.memory_space<vmem>>, %arg15: memref<2x128xf32, #tpu.memory_space<vmem>>) attributes {dimension_semantics = [#tpu.dimension_semantics<parallel>], iteration_bounds = array<i64: 1>, scalar_prefetch = 0 : i64, scratch_operands = 0 : i64, tpu.core_type = #tpu.core_type<tc>, window_params = [{transform_indices = @transform_0, window_bounds = array<i64: 80, 96>}, {pipeline_mode = #tpu.pipeline_mode<synchronous>, transform_indices = @transform_1, window_bounds = array<i64: 2, 48>}, {pipeline_mode = #tpu.pipeline_mode<synchronous>, transform_indices = @transform_2, window_bounds = array<i64: 5, 96, 168>}, {pipeline_mode = #tpu.pipeline_mode<synchronous>, transform_indices = @transform_3, window_bounds = array<i64: 1, 168>}, {pipeline_mode = #tpu.pipeline_mode<synchronous>, transform_indices = @transform_4, window_bounds = array<i64: 2, 168, 84>}, {pipeline_mode = #tpu.pipeline_mode<synchronous>, transform_indices = @transform_5, window_bounds = array<i64: 5, 84, 160>}, {pipeline_mode = #tpu.pipeline_mode<synchronous>, transform_indices = @transform_6, window_bounds = array<i64: 1, 160>}, {pipeline_mode = #tpu.pipeline_mode<synchronous>, transform_indices = @transform_7, window_bounds = array<i64: 2, 160, 80>}, {pipeline_mode = #tpu.pipeline_mode<synchronous>, transform_indices = @transform_8, window_bounds = array<i64: 5, 80, 128>}, {pipeline_mode = #tpu.pipeline_mode<synchronous>, transform_indices = @transform_9, window_bounds = array<i64: 1, 128>}, {pipeline_mode = #tpu.pipeline_mode<synchronous>, transform_indices = @transform_10, window_bounds = array<i64: 128, 128>}, {pipeline_mode = #tpu.pipeline_mode<synchronous>, transform_indices = @transform_11, window_bounds = array<i64: 1, 128>}, {pipeline_mode = #tpu.pipeline_mode<synchronous>, transform_indices = @transform_12, window_bounds = array<i64: 128, 128>}, {pipeline_mode = #tpu.pipeline_mode<synchronous>, transform_indices = @transform_13, window_bounds = array<i64: 1, 128>}, {transform_indices = @transform_14, window_bounds = array<i64: 2, 128>}]} {
    %c0 = arith.constant 0 : index
    %c0_0 = arith.constant 0 : index
    %0 = vector.load %arg1[%c0, %c0_0] : memref<80x96xbf16, #tpu.memory_space<vmem>>, vector<76x96xbf16>
    %c0_1 = arith.constant 0 : index
    %c0_2 = arith.constant 0 : index
    %c0_3 = arith.constant 0 : index
    %1 = vector.load %arg3[%c0_1, %c0_2, %c0_3] : memref<5x96x168xbf16, #tpu.memory_space<vmem>>, vector<1x96x168xbf16>
    %2 = vector.shape_cast %1 : vector<1x96x168xbf16> to vector<96x168xbf16>
    %cst = arith.constant dense<0.000000e+00> : vector<76x168xf32>
    %3 = tpu.matmul %0, %2, %cst {dimension_numbers = #tpu.dot_dimension_numbers<[1], [0], [0], [1], [0, 0, 1, 1], [], []>} : vector<76x96xbf16>, vector<96x168xbf16>, vector<76x168xf32> -> vector<76x168xf32>
    %c0_4 = arith.constant 0 : index
    %c0_5 = arith.constant 0 : index
    %4 = vector.load %arg4[%c0_4, %c0_5] : memref<1x168xf32, #tpu.memory_space<vmem>>, vector<1x168xf32>
    %5 = vector.broadcast %4 : vector<1x168xf32> to vector<76x168xf32>
    %6 = arith.addf %3, %5 : vector<76x168xf32>
    %c1 = arith.constant 1 : index
    %c0_6 = arith.constant 0 : index
    %7 = vector.load %arg1[%c1, %c0_6] : memref<80x96xbf16, #tpu.memory_space<vmem>>, vector<76x96xbf16>
    %c1_7 = arith.constant 1 : index
    %c0_8 = arith.constant 0 : index
    %c0_9 = arith.constant 0 : index
    %8 = vector.load %arg3[%c1_7, %c0_8, %c0_9] : memref<5x96x168xbf16, #tpu.memory_space<vmem>>, vector<1x96x168xbf16>
    %9 = vector.shape_cast %8 : vector<1x96x168xbf16> to vector<96x168xbf16>
    %cst_10 = arith.constant dense<0.000000e+00> : vector<76x168xf32>
    %10 = tpu.matmul %7, %9, %cst_10 {dimension_numbers = #tpu.dot_dimension_numbers<[1], [0], [0], [1], [0, 0, 1, 1], [], []>} : vector<76x96xbf16>, vector<96x168xbf16>, vector<76x168xf32> -> vector<76x168xf32>
    %11 = arith.addf %6, %10 : vector<76x168xf32>
    %c2 = arith.constant 2 : index
    %c0_11 = arith.constant 0 : index
    %12 = vector.load %arg1[%c2, %c0_11] : memref<80x96xbf16, #tpu.memory_space<vmem>>, vector<76x96xbf16>
    %c2_12 = arith.constant 2 : index
    %c0_13 = arith.constant 0 : index
    %c0_14 = arith.constant 0 : index
    %13 = vector.load %arg3[%c2_12, %c0_13, %c0_14] : memref<5x96x168xbf16, #tpu.memory_space<vmem>>, vector<1x96x168xbf16>
    %14 = vector.shape_cast %13 : vector<1x96x168xbf16> to vector<96x168xbf16>
    %cst_15 = arith.constant dense<0.000000e+00> : vector<76x168xf32>
    %15 = tpu.matmul %12, %14, %cst_15 {dimension_numbers = #tpu.dot_dimension_numbers<[1], [0], [0], [1], [0, 0, 1, 1], [], []>} : vector<76x96xbf16>, vector<96x168xbf16>, vector<76x168xf32> -> vector<76x168xf32>
    %16 = arith.addf %11, %15 : vector<76x168xf32>
    %c3 = arith.constant 3 : index
    %c0_16 = arith.constant 0 : index
    %17 = vector.load %arg1[%c3, %c0_16] : memref<80x96xbf16, #tpu.memory_space<vmem>>, vector<76x96xbf16>
    %c3_17 = arith.constant 3 : index
    %c0_18 = arith.constant 0 : index
    %c0_19 = arith.constant 0 : index
    %18 = vector.load %arg3[%c3_17, %c0_18, %c0_19] : memref<5x96x168xbf16, #tpu.memory_space<vmem>>, vector<1x96x168xbf16>
    %19 = vector.shape_cast %18 : vector<1x96x168xbf16> to vector<96x168xbf16>
    %cst_20 = arith.constant dense<0.000000e+00> : vector<76x168xf32>
    %20 = tpu.matmul %17, %19, %cst_20 {dimension_numbers = #tpu.dot_dimension_numbers<[1], [0], [0], [1], [0, 0, 1, 1], [], []>} : vector<76x96xbf16>, vector<96x168xbf16>, vector<76x168xf32> -> vector<76x168xf32>
    %21 = arith.addf %16, %20 : vector<76x168xf32>
    %c4 = arith.constant 4 : index
    %c0_21 = arith.constant 0 : index
    %22 = vector.load %arg1[%c4, %c0_21] : memref<80x96xbf16, #tpu.memory_space<vmem>>, vector<76x96xbf16>
    %c4_22 = arith.constant 4 : index
    %c0_23 = arith.constant 0 : index
    %c0_24 = arith.constant 0 : index
    %23 = vector.load %arg3[%c4_22, %c0_23, %c0_24] : memref<5x96x168xbf16, #tpu.memory_space<vmem>>, vector<1x96x168xbf16>
    %24 = vector.shape_cast %23 : vector<1x96x168xbf16> to vector<96x168xbf16>
    %cst_25 = arith.constant dense<0.000000e+00> : vector<76x168xf32>
    %25 = tpu.matmul %22, %24, %cst_25 {dimension_numbers = #tpu.dot_dimension_numbers<[1], [0], [0], [1], [0, 0, 1, 1], [], []>} : vector<76x96xbf16>, vector<96x168xbf16>, vector<76x168xf32> -> vector<76x168xf32>
    %26 = arith.addf %21, %25 : vector<76x168xf32>
    %cst_26 = arith.constant 0.000000e+00 : f32
    %27 = vector.broadcast %cst_26 : f32 to vector<76x168xf32>
    %28 = arith.maximumf %26, %27 : vector<76x168xf32>
    %29 = vector.extract_strided_slice %28 {offsets = [0, 0], sizes = [75, 168], strides = [1, 1]} : vector<76x168xf32> to vector<75x168xf32>
    %30 = vector.extract_strided_slice %28 {offsets = [1, 0], sizes = [75, 168], strides = [1, 1]} : vector<76x168xf32> to vector<75x168xf32>
    %31 = arith.maximumf %29, %30 : vector<75x168xf32>
    %32 = arith.truncf %31 : vector<75x168xf32> to vector<75x168xbf16>
    %c0_27 = arith.constant 0 : index
    %c0_28 = arith.constant 0 : index
    %c0_29 = arith.constant 0 : index
    %33 = vector.load %arg5[%c0_27, %c0_28, %c0_29] : memref<2x168x84xbf16, #tpu.memory_space<vmem>>, vector<1x168x84xbf16>
    %34 = vector.shape_cast %33 : vector<1x168x84xbf16> to vector<168x84xbf16>
    %cst_30 = arith.constant dense<0.000000e+00> : vector<75x84xf32>
    %35 = tpu.matmul %32, %34, %cst_30 {dimension_numbers = #tpu.dot_dimension_numbers<[1], [0], [0], [1], [0, 0, 1, 1], [], []>} : vector<75x168xbf16>, vector<168x84xbf16>, vector<75x84xf32> -> vector<75x84xf32>
    %c1_31 = arith.constant 1 : index
    %c0_32 = arith.constant 0 : index
    %c0_33 = arith.constant 0 : index
    %36 = vector.load %arg5[%c1_31, %c0_32, %c0_33] : memref<2x168x84xbf16, #tpu.memory_space<vmem>>, vector<1x168x84xbf16>
    %37 = vector.shape_cast %36 : vector<1x168x84xbf16> to vector<168x84xbf16>
    %cst_34 = arith.constant dense<0.000000e+00> : vector<75x84xf32>
    %38 = tpu.matmul %32, %37, %cst_34 {dimension_numbers = #tpu.dot_dimension_numbers<[1], [0], [0], [1], [0, 0, 1, 1], [], []>} : vector<75x168xbf16>, vector<168x84xbf16>, vector<75x84xf32> -> vector<75x84xf32>
    %39 = arith.maximumf %35, %38 : vector<75x84xf32>
    %40 = arith.truncf %39 : vector<75x84xf32> to vector<75x84xbf16>
    %41 = vector.extract_strided_slice %40 {offsets = [0, 0], sizes = [67, 84], strides = [1, 1]} : vector<75x84xbf16> to vector<67x84xbf16>
    %c0_35 = arith.constant 0 : index
    %c0_36 = arith.constant 0 : index
    %c0_37 = arith.constant 0 : index
    %42 = vector.load %arg6[%c0_35, %c0_36, %c0_37] : memref<5x84x160xbf16, #tpu.memory_space<vmem>>, vector<1x84x160xbf16>
    %43 = vector.shape_cast %42 : vector<1x84x160xbf16> to vector<84x160xbf16>
    %cst_38 = arith.constant dense<0.000000e+00> : vector<67x160xf32>
    %44 = tpu.matmul %41, %43, %cst_38 {dimension_numbers = #tpu.dot_dimension_numbers<[1], [0], [0], [1], [0, 0, 1, 1], [], []>} : vector<67x84xbf16>, vector<84x160xbf16>, vector<67x160xf32> -> vector<67x160xf32>
    %c0_39 = arith.constant 0 : index
    %c0_40 = arith.constant 0 : index
    %45 = vector.load %arg7[%c0_39, %c0_40] : memref<1x160xf32, #tpu.memory_space<vmem>>, vector<1x160xf32>
    %46 = vector.broadcast %45 : vector<1x160xf32> to vector<67x160xf32>
    %47 = arith.addf %44, %46 : vector<67x160xf32>
    %48 = vector.extract_strided_slice %40 {offsets = [2, 0], sizes = [67, 84], strides = [1, 1]} : vector<75x84xbf16> to vector<67x84xbf16>
    %c1_41 = arith.constant 1 : index
    %c0_42 = arith.constant 0 : index
    %c0_43 = arith.constant 0 : index
    %49 = vector.load %arg6[%c1_41, %c0_42, %c0_43] : memref<5x84x160xbf16, #tpu.memory_space<vmem>>, vector<1x84x160xbf16>
    %50 = vector.shape_cast %49 : vector<1x84x160xbf16> to vector<84x160xbf16>
    %cst_44 = arith.constant dense<0.000000e+00> : vector<67x160xf32>
    %51 = tpu.matmul %48, %50, %cst_44 {dimension_numbers = #tpu.dot_dimension_numbers<[1], [0], [0], [1], [0, 0, 1, 1], [], []>} : vector<67x84xbf16>, vector<84x160xbf16>, vector<67x160xf32> -> vector<67x160xf32>
    %52 = arith.addf %47, %51 : vector<67x160xf32>
    %53 = vector.extract_strided_slice %40 {offsets = [4, 0], sizes = [67, 84], strides = [1, 1]} : vector<75x84xbf16> to vector<67x84xbf16>
    %c2_45 = arith.constant 2 : index
    %c0_46 = arith.constant 0 : index
    %c0_47 = arith.constant 0 : index
    %54 = vector.load %arg6[%c2_45, %c0_46, %c0_47] : memref<5x84x160xbf16, #tpu.memory_space<vmem>>, vector<1x84x160xbf16>
    %55 = vector.shape_cast %54 : vector<1x84x160xbf16> to vector<84x160xbf16>
    %cst_48 = arith.constant dense<0.000000e+00> : vector<67x160xf32>
    %56 = tpu.matmul %53, %55, %cst_48 {dimension_numbers = #tpu.dot_dimension_numbers<[1], [0], [0], [1], [0, 0, 1, 1], [], []>} : vector<67x84xbf16>, vector<84x160xbf16>, vector<67x160xf32> -> vector<67x160xf32>
    %57 = arith.addf %52, %56 : vector<67x160xf32>
    %58 = vector.extract_strided_slice %40 {offsets = [6, 0], sizes = [67, 84], strides = [1, 1]} : vector<75x84xbf16> to vector<67x84xbf16>
    %c3_49 = arith.constant 3 : index
    %c0_50 = arith.constant 0 : index
    %c0_51 = arith.constant 0 : index
    %59 = vector.load %arg6[%c3_49, %c0_50, %c0_51] : memref<5x84x160xbf16, #tpu.memory_space<vmem>>, vector<1x84x160xbf16>
    %60 = vector.shape_cast %59 : vector<1x84x160xbf16> to vector<84x160xbf16>
    %cst_52 = arith.constant dense<0.000000e+00> : vector<67x160xf32>
    %61 = tpu.matmul %58, %60, %cst_52 {dimension_numbers = #tpu.dot_dimension_numbers<[1], [0], [0], [1], [0, 0, 1, 1], [], []>} : vector<67x84xbf16>, vector<84x160xbf16>, vector<67x160xf32> -> vector<67x160xf32>
    %62 = arith.addf %57, %61 : vector<67x160xf32>
    %63 = vector.extract_strided_slice %40 {offsets = [8, 0], sizes = [67, 84], strides = [1, 1]} : vector<75x84xbf16> to vector<67x84xbf16>
    %c4_53 = arith.constant 4 : index
    %c0_54 = arith.constant 0 : index
    %c0_55 = arith.constant 0 : index
    %64 = vector.load %arg6[%c4_53, %c0_54, %c0_55] : memref<5x84x160xbf16, #tpu.memory_space<vmem>>, vector<1x84x160xbf16>
    %65 = vector.shape_cast %64 : vector<1x84x160xbf16> to vector<84x160xbf16>
    %cst_56 = arith.constant dense<0.000000e+00> : vector<67x160xf32>
    %66 = tpu.matmul %63, %65, %cst_56 {dimension_numbers = #tpu.dot_dimension_numbers<[1], [0], [0], [1], [0, 0, 1, 1], [], []>} : vector<67x84xbf16>, vector<84x160xbf16>, vector<67x160xf32> -> vector<67x160xf32>
    %67 = arith.addf %62, %66 : vector<67x160xf32>
    %cst_57 = arith.constant 0.000000e+00 : f32
    %68 = vector.broadcast %cst_57 : f32 to vector<67x160xf32>
    %69 = arith.maximumf %67, %68 : vector<67x160xf32>
    %70 = vector.extract_strided_slice %69 {offsets = [0, 0], sizes = [65, 160], strides = [1, 1]} : vector<67x160xf32> to vector<65x160xf32>
    %71 = vector.extract_strided_slice %69 {offsets = [2, 0], sizes = [65, 160], strides = [1, 1]} : vector<67x160xf32> to vector<65x160xf32>
    %72 = arith.maximumf %70, %71 : vector<65x160xf32>
    %73 = arith.truncf %72 : vector<65x160xf32> to vector<65x160xbf16>
    %c0_58 = arith.constant 0 : index
    %c0_59 = arith.constant 0 : index
    %c0_60 = arith.constant 0 : index
    %74 = vector.load %arg8[%c0_58, %c0_59, %c0_60] : memref<2x160x80xbf16, #tpu.memory_space<vmem>>, vector<1x160x80xbf16>
    %75 = vector.shape_cast %74 : vector<1x160x80xbf16> to vector<160x80xbf16>
    %cst_61 = arith.constant dense<0.000000e+00> : vector<65x80xf32>
    %76 = tpu.matmul %73, %75, %cst_61 {dimension_numbers = #tpu.dot_dimension_numbers<[1], [0], [0], [1], [0, 0, 1, 1], [], []>} : vector<65x160xbf16>, vector<160x80xbf16>, vector<65x80xf32> -> vector<65x80xf32>
    %c1_62 = arith.constant 1 : index
    %c0_63 = arith.constant 0 : index
    %c0_64 = arith.constant 0 : index
    %77 = vector.load %arg8[%c1_62, %c0_63, %c0_64] : memref<2x160x80xbf16, #tpu.memory_space<vmem>>, vector<1x160x80xbf16>
    %78 = vector.shape_cast %77 : vector<1x160x80xbf16> to vector<160x80xbf16>
    %cst_65 = arith.constant dense<0.000000e+00> : vector<65x80xf32>
    %79 = tpu.matmul %73, %78, %cst_65 {dimension_numbers = #tpu.dot_dimension_numbers<[1], [0], [0], [1], [0, 0, 1, 1], [], []>} : vector<65x160xbf16>, vector<160x80xbf16>, vector<65x80xf32> -> vector<65x80xf32>
    %80 = arith.maximumf %76, %79 : vector<65x80xf32>
    %81 = arith.truncf %80 : vector<65x80xf32> to vector<65x80xbf16>
    %c0_66 = arith.constant 0 : index
    %c0_67 = arith.constant 0 : index
    %82 = vector.load %arg2[%c0_66, %c0_67] : memref<2x48xbf16, #tpu.memory_space<vmem>>, vector<2x48xbf16>
    %c0_68 = arith.constant 0 : index
    %c0_69 = arith.constant 0 : index
    %83 = vector.load %arg10[%c0_68, %c0_69] : memref<1x128xf32, #tpu.memory_space<vmem>>, vector<1x128xf32>
    %84 = vector.extract_strided_slice %81 {offsets = [0, 0], sizes = [48, 80], strides = [1, 1]} : vector<65x80xbf16> to vector<48x80xbf16>
    %cst_70 = arith.constant dense<0.000000e+00> : vector<2x80xf32>
    %85 = tpu.matmul %82, %84, %cst_70 {dimension_numbers = #tpu.dot_dimension_numbers<[1], [0], [0], [1], [0, 0, 1, 1], [], []>} : vector<2x48xbf16>, vector<48x80xbf16>, vector<2x80xf32> -> vector<2x80xf32>
    %86 = arith.truncf %85 : vector<2x80xf32> to vector<2x80xbf16>
    %c0_71 = arith.constant 0 : index
    %c0_72 = arith.constant 0 : index
    %c0_73 = arith.constant 0 : index
    %87 = vector.load %arg9[%c0_71, %c0_72, %c0_73] : memref<5x80x128xbf16, #tpu.memory_space<vmem>>, vector<1x80x128xbf16>
    %88 = vector.shape_cast %87 : vector<1x80x128xbf16> to vector<80x128xbf16>
    %cst_74 = arith.constant dense<0.000000e+00> : vector<2x128xf32>
    %89 = tpu.matmul %86, %88, %cst_74 {dimension_numbers = #tpu.dot_dimension_numbers<[1], [0], [0], [1], [0, 0, 1, 1], [], []>} : vector<2x80xbf16>, vector<80x128xbf16>, vector<2x128xf32> -> vector<2x128xf32>
    %90 = vector.broadcast %83 : vector<1x128xf32> to vector<2x128xf32>
    %91 = arith.addf %90, %89 : vector<2x128xf32>
    %92 = vector.extract_strided_slice %81 {offsets = [4, 0], sizes = [48, 80], strides = [1, 1]} : vector<65x80xbf16> to vector<48x80xbf16>
    %cst_75 = arith.constant dense<0.000000e+00> : vector<2x80xf32>
    %93 = tpu.matmul %82, %92, %cst_75 {dimension_numbers = #tpu.dot_dimension_numbers<[1], [0], [0], [1], [0, 0, 1, 1], [], []>} : vector<2x48xbf16>, vector<48x80xbf16>, vector<2x80xf32> -> vector<2x80xf32>
    %94 = arith.truncf %93 : vector<2x80xf32> to vector<2x80xbf16>
    %c1_76 = arith.constant 1 : index
    %c0_77 = arith.constant 0 : index
    %c0_78 = arith.constant 0 : index
    %95 = vector.load %arg9[%c1_76, %c0_77, %c0_78] : memref<5x80x128xbf16, #tpu.memory_space<vmem>>, vector<1x80x128xbf16>
    %96 = vector.shape_cast %95 : vector<1x80x128xbf16> to vector<80x128xbf16>
    %cst_79 = arith.constant dense<0.000000e+00> : vector<2x128xf32>
    %97 = tpu.matmul %94, %96, %cst_79 {dimension_numbers = #tpu.dot_dimension_numbers<[1], [0], [0], [1], [0, 0, 1, 1], [], []>} : vector<2x80xbf16>, vector<80x128xbf16>, vector<2x128xf32> -> vector<2x128xf32>
    %98 = arith.addf %91, %97 : vector<2x128xf32>
    %99 = vector.extract_strided_slice %81 {offsets = [8, 0], sizes = [48, 80], strides = [1, 1]} : vector<65x80xbf16> to vector<48x80xbf16>
    %cst_80 = arith.constant dense<0.000000e+00> : vector<2x80xf32>
    %100 = tpu.matmul %82, %99, %cst_80 {dimension_numbers = #tpu.dot_dimension_numbers<[1], [0], [0], [1], [0, 0, 1, 1], [], []>} : vector<2x48xbf16>, vector<48x80xbf16>, vector<2x80xf32> -> vector<2x80xf32>
    %101 = arith.truncf %100 : vector<2x80xf32> to vector<2x80xbf16>
    %c2_81 = arith.constant 2 : index
    %c0_82 = arith.constant 0 : index
    %c0_83 = arith.constant 0 : index
    %102 = vector.load %arg9[%c2_81, %c0_82, %c0_83] : memref<5x80x128xbf16, #tpu.memory_space<vmem>>, vector<1x80x128xbf16>
    %103 = vector.shape_cast %102 : vector<1x80x128xbf16> to vector<80x128xbf16>
    %cst_84 = arith.constant dense<0.000000e+00> : vector<2x128xf32>
    %104 = tpu.matmul %101, %103, %cst_84 {dimension_numbers = #tpu.dot_dimension_numbers<[1], [0], [0], [1], [0, 0, 1, 1], [], []>} : vector<2x80xbf16>, vector<80x128xbf16>, vector<2x128xf32> -> vector<2x128xf32>
    %105 = arith.addf %98, %104 : vector<2x128xf32>
    %106 = vector.extract_strided_slice %81 {offsets = [12, 0], sizes = [48, 80], strides = [1, 1]} : vector<65x80xbf16> to vector<48x80xbf16>
    %cst_85 = arith.constant dense<0.000000e+00> : vector<2x80xf32>
    %107 = tpu.matmul %82, %106, %cst_85 {dimension_numbers = #tpu.dot_dimension_numbers<[1], [0], [0], [1], [0, 0, 1, 1], [], []>} : vector<2x48xbf16>, vector<48x80xbf16>, vector<2x80xf32> -> vector<2x80xf32>
    %108 = arith.truncf %107 : vector<2x80xf32> to vector<2x80xbf16>
    %c3_86 = arith.constant 3 : index
    %c0_87 = arith.constant 0 : index
    %c0_88 = arith.constant 0 : index
    %109 = vector.load %arg9[%c3_86, %c0_87, %c0_88] : memref<5x80x128xbf16, #tpu.memory_space<vmem>>, vector<1x80x128xbf16>
    %110 = vector.shape_cast %109 : vector<1x80x128xbf16> to vector<80x128xbf16>
    %cst_89 = arith.constant dense<0.000000e+00> : vector<2x128xf32>
    %111 = tpu.matmul %108, %110, %cst_89 {dimension_numbers = #tpu.dot_dimension_numbers<[1], [0], [0], [1], [0, 0, 1, 1], [], []>} : vector<2x80xbf16>, vector<80x128xbf16>, vector<2x128xf32> -> vector<2x128xf32>
    %112 = arith.addf %105, %111 : vector<2x128xf32>
    %113 = vector.extract_strided_slice %81 {offsets = [16, 0], sizes = [48, 80], strides = [1, 1]} : vector<65x80xbf16> to vector<48x80xbf16>
    %cst_90 = arith.constant dense<0.000000e+00> : vector<2x80xf32>
    %114 = tpu.matmul %82, %113, %cst_90 {dimension_numbers = #tpu.dot_dimension_numbers<[1], [0], [0], [1], [0, 0, 1, 1], [], []>} : vector<2x48xbf16>, vector<48x80xbf16>, vector<2x80xf32> -> vector<2x80xf32>
    %115 = arith.truncf %114 : vector<2x80xf32> to vector<2x80xbf16>
    %c4_91 = arith.constant 4 : index
    %c0_92 = arith.constant 0 : index
    %c0_93 = arith.constant 0 : index
    %116 = vector.load %arg9[%c4_91, %c0_92, %c0_93] : memref<5x80x128xbf16, #tpu.memory_space<vmem>>, vector<1x80x128xbf16>
    %117 = vector.shape_cast %116 : vector<1x80x128xbf16> to vector<80x128xbf16>
    %cst_94 = arith.constant dense<0.000000e+00> : vector<2x128xf32>
    %118 = tpu.matmul %115, %117, %cst_94 {dimension_numbers = #tpu.dot_dimension_numbers<[1], [0], [0], [1], [0, 0, 1, 1], [], []>} : vector<2x80xbf16>, vector<80x128xbf16>, vector<2x128xf32> -> vector<2x128xf32>
    %119 = arith.addf %112, %118 : vector<2x128xf32>
    %cst_95 = arith.constant 0.000000e+00 : f32
    %120 = vector.broadcast %cst_95 : f32 to vector<2x128xf32>
    %121 = arith.maximumf %119, %120 : vector<2x128xf32>
    %122 = arith.truncf %121 : vector<2x128xf32> to vector<2x128xbf16>
    %c0_96 = arith.constant 0 : index
    %c0_97 = arith.constant 0 : index
    %123 = vector.load %arg11[%c0_96, %c0_97] : memref<128x128xbf16, #tpu.memory_space<vmem>>, vector<128x128xbf16>
    %cst_98 = arith.constant dense<0.000000e+00> : vector<2x128xf32>
    %124 = tpu.matmul %122, %123, %cst_98 {dimension_numbers = #tpu.dot_dimension_numbers<[1], [0], [0], [1], [0, 0, 1, 1], [], []>} : vector<2x128xbf16>, vector<128x128xbf16>, vector<2x128xf32> -> vector<2x128xf32>
    %c0_99 = arith.constant 0 : index
    %c0_100 = arith.constant 0 : index
    %125 = vector.load %arg12[%c0_99, %c0_100] : memref<1x128xf32, #tpu.memory_space<vmem>>, vector<1x128xf32>
    %126 = vector.broadcast %125 : vector<1x128xf32> to vector<2x128xf32>
    %127 = arith.addf %124, %126 : vector<2x128xf32>
    %cst_101 = arith.constant 0.000000e+00 : f32
    %128 = vector.broadcast %cst_101 : f32 to vector<2x128xf32>
    %129 = arith.maximumf %127, %128 : vector<2x128xf32>
    %130 = arith.truncf %129 : vector<2x128xf32> to vector<2x128xbf16>
    %c0_102 = arith.constant 0 : index
    %c0_103 = arith.constant 0 : index
    %131 = vector.load %arg13[%c0_102, %c0_103] : memref<128x128xbf16, #tpu.memory_space<vmem>>, vector<128x128xbf16>
    %cst_104 = arith.constant dense<0.000000e+00> : vector<2x128xf32>
    %132 = tpu.matmul %130, %131, %cst_104 {dimension_numbers = #tpu.dot_dimension_numbers<[1], [0], [0], [1], [0, 0, 1, 1], [], []>} : vector<2x128xbf16>, vector<128x128xbf16>, vector<2x128xf32> -> vector<2x128xf32>
    %c0_105 = arith.constant 0 : index
    %c0_106 = arith.constant 0 : index
    %133 = vector.load %arg14[%c0_105, %c0_106] : memref<1x128xf32, #tpu.memory_space<vmem>>, vector<1x128xf32>
    %134 = vector.broadcast %133 : vector<1x128xf32> to vector<2x128xf32>
    %135 = arith.addf %132, %134 : vector<2x128xf32>
    %c0_107 = arith.constant 0 : index
    %c0_108 = arith.constant 0 : index
    %136 = vector.load %arg15[%c0_107, %c0_108] : memref<2x128xf32, #tpu.memory_space<vmem>>, vector<2x128xf32>
    tpu.vector_store %arg15[%c0_107, %c0_108], %135 {strides = array<i32>} : memref<2x128xf32, #tpu.memory_space<vmem>>, vector<2x128xf32>,
    return
  }
  func.func @transform_0(%arg0: i32) -> (i32, i32) {
    %c0_i32 = arith.constant 0 : i32
    %c0_i32_0 = arith.constant 0 : i32
    return %arg0, %c0_i32 : i32, i32
  }
  func.func @transform_1(%arg0: i32) -> (i32, i32) {
    %c0_i32 = arith.constant 0 : i32
    %c0_i32_0 = arith.constant 0 : i32
    %c0_i32_1 = arith.constant 0 : i32
    return %c0_i32, %c0_i32_0 : i32, i32
  }
  func.func @transform_2(%arg0: i32) -> (i32, i32, i32) {
    %c0_i32 = arith.constant 0 : i32
    %c0_i32_0 = arith.constant 0 : i32
    %c0_i32_1 = arith.constant 0 : i32
    %c0_i32_2 = arith.constant 0 : i32
    return %c0_i32, %c0_i32_0, %c0_i32_1 : i32, i32, i32
  }
  func.func @transform_3(%arg0: i32) -> (i32, i32) {
    %c0_i32 = arith.constant 0 : i32
    %c0_i32_0 = arith.constant 0 : i32
    %c0_i32_1 = arith.constant 0 : i32
    return %c0_i32, %c0_i32_0 : i32, i32
  }
  func.func @transform_4(%arg0: i32) -> (i32, i32, i32) {
    %c0_i32 = arith.constant 0 : i32
    %c0_i32_0 = arith.constant 0 : i32
    %c0_i32_1 = arith.constant 0 : i32
    %c0_i32_2 = arith.constant 0 : i32
    return %c0_i32, %c0_i32_0, %c0_i32_1 : i32, i32, i32
  }
  func.func @transform_5(%arg0: i32) -> (i32, i32, i32) {
    %c0_i32 = arith.constant 0 : i32
    %c0_i32_0 = arith.constant 0 : i32
    %c0_i32_1 = arith.constant 0 : i32
    %c0_i32_2 = arith.constant 0 : i32
    return %c0_i32, %c0_i32_0, %c0_i32_1 : i32, i32, i32
  }
  func.func @transform_6(%arg0: i32) -> (i32, i32) {
    %c0_i32 = arith.constant 0 : i32
    %c0_i32_0 = arith.constant 0 : i32
    %c0_i32_1 = arith.constant 0 : i32
    return %c0_i32, %c0_i32_0 : i32, i32
  }
  func.func @transform_7(%arg0: i32) -> (i32, i32, i32) {
    %c0_i32 = arith.constant 0 : i32
    %c0_i32_0 = arith.constant 0 : i32
    %c0_i32_1 = arith.constant 0 : i32
    %c0_i32_2 = arith.constant 0 : i32
    return %c0_i32, %c0_i32_0, %c0_i32_1 : i32, i32, i32
  }
  func.func @transform_8(%arg0: i32) -> (i32, i32, i32) {
    %c0_i32 = arith.constant 0 : i32
    %c0_i32_0 = arith.constant 0 : i32
    %c0_i32_1 = arith.constant 0 : i32
    %c0_i32_2 = arith.constant 0 : i32
    return %c0_i32, %c0_i32_0, %c0_i32_1 : i32, i32, i32
  }
  func.func @transform_9(%arg0: i32) -> (i32, i32) {
    %c0_i32 = arith.constant 0 : i32
    %c0_i32_0 = arith.constant 0 : i32
    %c0_i32_1 = arith.constant 0 : i32
    return %c0_i32, %c0_i32_0 : i32, i32
  }
  func.func @transform_10(%arg0: i32) -> (i32, i32) {
    %c0_i32 = arith.constant 0 : i32
    %c0_i32_0 = arith.constant 0 : i32
    %c0_i32_1 = arith.constant 0 : i32
    return %c0_i32, %c0_i32_0 : i32, i32
  }
  func.func @transform_11(%arg0: i32) -> (i32, i32) {
    %c0_i32 = arith.constant 0 : i32
    %c0_i32_0 = arith.constant 0 : i32
    %c0_i32_1 = arith.constant 0 : i32
    return %c0_i32, %c0_i32_0 : i32, i32
  }
  func.func @transform_12(%arg0: i32) -> (i32, i32) {
    %c0_i32 = arith.constant 0 : i32
    %c0_i32_0 = arith.constant 0 : i32
    %c0_i32_1 = arith.constant 0 : i32
    return %c0_i32, %c0_i32_0 : i32, i32
  }
  func.func @transform_13(%arg0: i32) -> (i32, i32) {
    %c0_i32 = arith.constant 0 : i32
    %c0_i32_0 = arith.constant 0 : i32
    %c0_i32_1 = arith.constant 0 : i32
    return %c0_i32, %c0_i32_0 : i32, i32
  }
  func.func @transform_14(%arg0: i32) -> (i32, i32) {
    %c0_i32 = arith.constant 0 : i32
    %c0_i32_0 = arith.constant 0 : i32
    return %arg0, %c0_i32 : i32, i32
  }
}

</mosaic_0001>

<llo_original>
// kernel: lenet2_forward.1
$region0: #{lenet2_forward.1}
  #allocation0 [shape = 'u32[]', space=smem, size = 0x4, offset = 0x4, fixed_abs, tag = 'smem constant byte address 0x4 - core index']
  #allocation1 [shape = 'u32[72,128]{1,0:T(1,128)}', space=vmem, size = 0x9000, scoped, tag = 'internal scratch']
  %s0 = inlined_call_operand.vmem [shape: bf16[80,96], index: 0, kind: input, shape index: {}]
  %s1 = inlined_call_operand.hbm [shape: bf16[2,48], index: 1, kind: input, shape index: {}]
  %s2 = inlined_call_operand.vmem [shape: bf16[5,96,168], index: 2, kind: input, shape index: {}]
  %s3 = inlined_call_operand.vmem [shape: f32[1,168], index: 3, kind: input, shape index: {}]
  %s4 = inlined_call_operand.hbm [shape: bf16[2,168,84], index: 4, kind: input, shape index: {}]
  %s5 = inlined_call_operand.hbm [shape: bf16[5,84,160], index: 5, kind: input, shape index: {}]
  %s6 = inlined_call_operand.vmem [shape: f32[1,160], index: 6, kind: input, shape index: {}]
  %s7 = inlined_call_operand.hbm [shape: bf16[2,160,80], index: 7, kind: input, shape index: {}]
  %s8 = inlined_call_operand.vmem [shape: bf16[5,80,128], index: 8, kind: input, shape index: {}]
  %s9 = inlined_call_operand.vmem [shape: f32[1,128], index: 9, kind: input, shape index: {}]
  %s10 = inlined_call_operand.hbm [shape: bf16[128,128], index: 10, kind: input, shape index: {}]
  %s11 = inlined_call_operand.vmem [shape: f32[1,128], index: 11, kind: input, shape index: {}]
  %s12 = inlined_call_operand.hbm [shape: bf16[128,128], index: 12, kind: input, shape index: {}]
  %s13 = inlined_call_operand.vmem [shape: f32[1,128], index: 13, kind: input, shape index: {}]
  %s14 = inlined_call_operand.hbm [shape: f32[2,128], index: 14, kind: output, shape index: {}]
  %s15 = sld [smem:[#allocation0]]
  $region90: #{lenet2_forward.1} parent=0
    _
  %s17 = ssub.s32 1, %s15
  %s18 = scalar_select 0, %s17, %s15
  $region1: #{lenet2_forward.1} parent=0
    #allocation2 [shape = 'u8[512]{0}', space=vmem, size = 0x400, scoped, tag = 'input window, operand 1, single buffered']
    #allocation3 [shape = 's32[1]{0}', space=sflag, size = 0x4, scoped, tag = 'scoped memory for lenet2_forward.1']
    #allocation4 [shape = 's32[1]{0}', space=sflag, size = 0x4, scoped, tag = 'scoped memory for lenet2_forward.1']
    #allocation5 [shape = 'u8[86016]{0}', space=vmem, size = 0x15000, scoped, tag = 'input window, operand 4, single buffered']
    #allocation6 [shape = 's32[1]{0}', space=sflag, size = 0x4, scoped, tag = 'scoped memory for lenet2_forward.1']
    #allocation7 [shape = 'u8[225280]{0}', space=vmem, size = 0x37000, scoped, tag = 'input window, operand 5, single buffered']
    #allocation8 [shape = 'u8[81920]{0}', space=vmem, size = 0x14000, scoped, tag = 'input window, operand 7, single buffered']
    #allocation9 [shape = 's32[1]{0}', space=sflag, size = 0x4, scoped, tag = 'scoped memory for lenet2_forward.1']
    #allocation10 [shape = 'u8[32768]{0}', space=vmem, size = 0x8000, scoped, tag = 'input window, operand 10, single buffered']
    #allocation11 [shape = 'u8[32768]{0}', space=vmem, size = 0x8000, scoped, tag = 'input window, operand 12, single buffered']
    #allocation12 [shape = 's32[1]{0}', space=sflag, size = 0x4, scoped, tag = 'scoped memory for lenet2_forward.1']
    #allocation13 [shape = 'u8[1024]{0}', space=vmem, size = 0x400, scoped, tag = 'output window, operand 0, single buffered']
    %19 = vsyncpa [#allocation3], 0
    %20 = vsyncpa [#allocation6], 0
    %21 = vsyncpa [#allocation9], 0
    %22 = vsyncpa [#allocation12], 0
    %23 = vsyncpa [#allocation4], 0
    // Predicated region
    $region2: #{lenet2_forward.1} parent=1 // pred_check
      _
    $region3: #{lenet2_forward.1} parent=1 // pred_check_branch
      %25 = sbr.rel (0) target = $region5
    $region4: #{lenet2_forward.1} parent=1 // pred_region
      _
    $region5: #{lenet2_forward.1} parent=1 // pred_fallthru
      _
    // Predicated region
    $region6: #{lenet2_forward.1} parent=1 // pred_check
      _
    $region7: #{lenet2_forward.1} parent=1 // pred_check_branch
      %27 = sbr.rel (0) target = $region9
    $region8: #{lenet2_forward.1} parent=1 // pred_region
      %29 = vsyncadd [#allocation3], 0
      %s31 = sshll.u32 %s1, 4
      %s32 = int_to_ptr.hbm [resolvable:$true] %s31
      %s33 = sshll.u32 [#allocation2], 4
      %s34 = int_to_ptr.vmem [resolvable:$true] %s33
      %36 = dma.hbm_to_vmem [thread:$0]  %s32, 16, %s34, [#allocation3]
    $region9: #{lenet2_forward.1} parent=1 // pred_fallthru
      _
    // Predicated region
    $region10: #{lenet2_forward.1} parent=1 // pred_check
      _
    $region11: #{lenet2_forward.1} parent=1 // pred_check_branch
      %38 = sbr.rel (0) target = $region13
    $region12: #{lenet2_forward.1} parent=1 // pred_region
      _
    $region13: #{lenet2_forward.1} parent=1 // pred_fallthru
      _
    // Predicated region
    $region14: #{lenet2_forward.1} parent=1 // pred_check
      _
    $region15: #{lenet2_forward.1} parent=1 // pred_check_branch
      %40 = sbr.rel (0) target = $region17
    $region16: #{lenet2_forward.1} parent=1 // pred_region
      _
    $region17: #{lenet2_forward.1} parent=1 // pred_fallthru
      _
    // Predicated region
    $region18: #{lenet2_forward.1} parent=1 // pred_check
      _
    $region19: #{lenet2_forward.1} parent=1 // pred_check_branch
      %42 = sbr.rel (0) target = $region21
    $region20: #{lenet2_forward.1} parent=1 // pred_region
      %44 = vsyncadd [#allocation6], 0
      %s45 = sshll.u32 %s4, 4
      %s46 = int_to_ptr.hbm [resolvable:$true] %s45
      %s47 = sshll.u32 [#allocation5], 4
      %s48 = int_to_ptr.vmem [resolvable:$true] %s47
      %53 = dma.hbm_to_vmem [thread:$0]  %s46, 2688, %s48, [#allocation6], 64, 64, 4
    $region21: #{lenet2_forward.1} parent=1 // pred_fallthru
      _
    // Predicated region
    $region22: #{lenet2_forward.1} parent=1 // pred_check
      _
    $region23: #{lenet2_forward.1} parent=1 // pred_check_branch
      %55 = sbr.rel (0) target = $region25
    $region24: #{lenet2_forward.1} parent=1 // pred_region
      %57 = vsyncadd [#allocation6], 0
      %s58 = sshll.u32 %s5, 4
      %s59 = int_to_ptr.hbm [resolvable:$true] %s58
      %s60 = sshll.u32 [#allocation7], 4
      %s61 = int_to_ptr.vmem [resolvable:$true] %s60
      %66 = dma.hbm_to_vmem [thread:$0]  %s59, 7040, %s61, [#allocation6], 128, 128, 8
    $region25: #{lenet2_forward.1} parent=1 // pred_fallthru
      _
    // Predicated region
    $region26: #{lenet2_forward.1} parent=1 // pred_check
      _
    $region27: #{lenet2_forward.1} parent=1 // pred_check_branch
      %68 = sbr.rel (0) target = $region29
    $region28: #{lenet2_forward.1} parent=1 // pred_region
      _
    $region29: #{lenet2_forward.1} parent=1 // pred_fallthru
      _
    // Predicated region
    $region30: #{lenet2_forward.1} parent=1 // pred_check
      _
    $region31: #{lenet2_forward.1} parent=1 // pred_check_branch
      %70 = sbr.rel (0) target = $region33
    $region32: #{lenet2_forward.1} parent=1 // pred_region
      %72 = vsyncadd [#allocation9], 0
      %s73 = sshll.u32 %s7, 4
      %s74 = int_to_ptr.hbm [resolvable:$true] %s73
      %s75 = sshll.u32 [#allocation8], 4
      %s76 = int_to_ptr.vmem [resolvable:$true] %s75
      %81 = dma.hbm_to_vmem [thread:$0]  %s74, 2560, %s76, [#allocation9], 64, 64, 4
    $region33: #{lenet2_forward.1} parent=1 // pred_fallthru
      _
    // Predicated region
    $region34: #{lenet2_forward.1} parent=1 // pred_check
      _
    $region35: #{lenet2_forward.1} parent=1 // pred_check_branch
      %83 = sbr.rel (0) target = $region37
    $region36: #{lenet2_forward.1} parent=1 // pred_region
      _
    $region37: #{lenet2_forward.1} parent=1 // pred_fallthru
      _
    // Predicated region
    $region38: #{lenet2_forward.1} parent=1 // pred_check
      _
    $region39: #{lenet2_forward.1} parent=1 // pred_check_branch
      %85 = sbr.rel (0) target = $region41
    $region40: #{lenet2_forward.1} parent=1 // pred_region
      _
    $region41: #{lenet2_forward.1} parent=1 // pred_fallthru
      _
    // Predicated region
    $region42: #{lenet2_forward.1} parent=1 // pred_check
      _
    $region43: #{lenet2_forward.1} parent=1 // pred_check_branch
      %87 = sbr.rel (0) target = $region45
    $region44: #{lenet2_forward.1} parent=1 // pred_region
      %89 = vsyncadd [#allocation9], 0
      %s90 = sshll.u32 %s10, 4
      %s91 = int_to_ptr.hbm [resolvable:$true] %s90
      %s92 = sshll.u32 [#allocation10], 4
      %s93 = int_to_ptr.vmem [resolvable:$true] %s92
      %98 = dma.hbm_to_vmem [thread:$0]  %s91, 1024, %s93, [#allocation9], 64, 64, 4
    $region45: #{lenet2_forward.1} parent=1 // pred_fallthru
      _
    // Predicated region
    $region46: #{lenet2_forward.1} parent=1 // pred_check
      _
    $region47: #{lenet2_forward.1} parent=1 // pred_check_branch
      %100 = sbr.rel (0) target = $region49
    $region48: #{lenet2_forward.1} parent=1 // pred_region
      _
    $region49: #{lenet2_forward.1} parent=1 // pred_fallthru
      _
    // Predicated region
    $region50: #{lenet2_forward.1} parent=1 // pred_check
      _
    $region51: #{lenet2_forward.1} parent=1 // pred_check_branch
      %102 = sbr.rel (0) target = $region53
    $region52: #{lenet2_forward.1} parent=1 // pred_region
      %104 = vsyncadd [#allocation12], 0
      %s105 = sshll.u32 %s12, 4
      %s106 = int_to_ptr.hbm [resolvable:$true] %s105
      %s107 = sshll.u32 [#allocation11], 4
      %s108 = int_to_ptr.vmem [resolvable:$true] %s107
      %113 = dma.hbm_to_vmem [thread:$0]  %s106, 1024, %s108, [#allocation12], 64, 64, 4
    $region53: #{lenet2_forward.1} parent=1 // pred_fallthru
      _
    // Predicated region
    $region54: #{lenet2_forward.1} parent=1 // pred_check
      _
    $region55: #{lenet2_forward.1} parent=1 // pred_check_branch
      %115 = sbr.rel (0) target = $region57
    $region56: #{lenet2_forward.1} parent=1 // pred_region
      _
    $region57: #{lenet2_forward.1} parent=1 // pred_fallthru
      _
    // Predicated region
    $region58: #{lenet2_forward.1} parent=1 // pred_check
      _
    $region59: #{lenet2_forward.1} parent=1 // pred_check_branch
      %117 = sbr.rel (0) target = $region61
    $region60: #{lenet2_forward.1} parent=1 // pred_region
      %119 = dma.done [#allocation3], 16
    $region61: #{lenet2_forward.1} parent=1 // pred_fallthru
      _
    // Predicated region
    $region62: #{lenet2_forward.1} parent=1 // pred_check
      _
    $region63: #{lenet2_forward.1} parent=1 // pred_check_branch
      %121 = sbr.rel (0) target = $region65
    $region64: #{lenet2_forward.1} parent=1 // pred_region
      %123 = dma.done [#allocation6], 2688
    $region65: #{lenet2_forward.1} parent=1 // pred_fallthru
      _
    // Predicated region
    $region66: #{lenet2_forward.1} parent=1 // pred_check
      _
    $region67: #{lenet2_forward.1} parent=1 // pred_check_branch
      %125 = sbr.rel (0) target = $region69
    $region68: #{lenet2_forward.1} parent=1 // pred_region
      %127 = dma.done [#allocation6], 7040
    $region69: #{lenet2_forward.1} parent=1 // pred_fallthru
      _
    // Predicated region
    $region70: #{lenet2_forward.1} parent=1 // pred_check
      _
    $region71: #{lenet2_forward.1} parent=1 // pred_check_branch
      %129 = sbr.rel (0) target = $region73
    $region72: #{lenet2_forward.1} parent=1 // pred_region
      %131 = dma.done [#allocation9], 2560
    $region73: #{lenet2_forward.1} parent=1 // pred_fallthru
      _
    // Predicated region
    $region74: #{lenet2_forward.1} parent=1 // pred_check
      _
    $region75: #{lenet2_forward.1} parent=1 // pred_check_branch
      %133 = sbr.rel (0) target = $region77
    $region76: #{lenet2_forward.1} parent=1 // pred_region
      %135 = dma.done [#allocation9], 1024
    $region77: #{lenet2_forward.1} parent=1 // pred_fallthru
      _
    // Predicated region
    $region78: #{lenet2_forward.1} parent=1 // pred_check
      _
    $region79: #{lenet2_forward.1} parent=1 // pred_check_branch
      %137 = sbr.rel (0) target = $region81
    $region80: #{lenet2_forward.1} parent=1 // pred_region
      %139 = dma.done [#allocation12], 1024
    $region81: #{lenet2_forward.1} parent=1 // pred_fallthru
      _
    %v141 = vld [vmem:[%s0] sm:$0xf]
    %v142 = vld [vmem:[%s0 + $0x4] sm:$0xf]
    %v143 = vld [vmem:[%s0 + $0x8] sm:$0xf]
    %v144 = vld [vmem:[%s0 + $0xc] sm:$0xf]
    %v145 = vld [vmem:[%s0 + $0x10] sm:$0xf]
    %v146 = vld [vmem:[%s0 + $0x14] sm:$0xf]
    %v147 = vld [vmem:[%s0 + $0x18] sm:$0xf]
    %v148 = vld [vmem:[%s0 + $0x1c] sm:$0xf]
    %v149 = vld [vmem:[%s0 + $0x20] sm:$0xf]
    %v150 = vld [vmem:[%s0 + $0x24] sm:$0x3]
    %v151 = vld [vmem:[%s2] sm:$0xff]
    %v152 = vld [vmem:[%s2 + $0x8] sm:$0xff]
    %v153 = vld [vmem:[%s2 + $0x10] sm:$0xff]
    %v154 = vld [vmem:[%s2 + $0x18] sm:$0xff]
    %v155 = vld [vmem:[%s2 + $0x20] sm:$0xff]
    %v156 = vld [vmem:[%s2 + $0x28] sm:$0xff]
    %v157 = vld [vmem:[%s2 + $0x30] sm:$0xff]
    %v158 = vld [vmem:[%s2 + $0x38] sm:$0xff]
    %v159 = vld [vmem:[%s2 + $0x40] sm:$0xff]
    %v160 = vld [vmem:[%s2 + $0x48] sm:$0xff]
    %v161 = vld [vmem:[%s2 + $0x50] sm:$0xff]
    %v162 = vld [vmem:[%s2 + $0x58] sm:$0xff]
    %v163 = vld [vmem:[%s3] sm:$0x3]
    %v165 = vperm.slane %v163, 0
    %v166 = vperm.slane %v163, 1
    %v179 = vunpack.c.l.b16 %v141
    %v180 = vunpack.c.l.b16 %v142
    %v181 = vunpack.c.l.b16 %v143
    %v182 = vunpack.c.l.b16 %v144
    %v183 = vunpack.c.l.b16 %v145
    %v184 = vunpack.c.l.b16 %v146
    %v185 = vunpack.c.l.b16 %v147
    %v186 = vunpack.c.l.b16 %v148
    %v187 = vunpack.c.l.b16 %v149
    %v188 = vunpack.c.l.b16 %v150
    %v189 = vpack.c.b16 %v180, %v179
    %v190 = vpack.c.b16 %v182, %v181
    %v191 = vpack.c.b16 %v184, %v183
    %v192 = vpack.c.b16 %v186, %v185
    %v193 = vpack.c.b16 %v188, %v187
    %v206 = vunpack.c.l.b16 %v151
    %v207 = vunpack.c.h.b16 %v151
    %v208 = vunpack.c.l.b16 %v152
    %v209 = vunpack.c.h.b16 %v152
    %v210 = vunpack.c.l.b16 %v153
    %v211 = vunpack.c.h.b16 %v153
    %v212 = vunpack.c.l.b16 %v154
    %v213 = vunpack.c.h.b16 %v154
    %v214 = vunpack.c.l.b16 %v155
    %v215 = vunpack.c.h.b16 %v155
    %v216 = vunpack.c.l.b16 %v156
    %v217 = vunpack.c.h.b16 %v156
    %v218 = vunpack.c.l.b16 %v157
    %v219 = vunpack.c.h.b16 %v157
    %v220 = vunpack.c.l.b16 %v158
    %v221 = vunpack.c.h.b16 %v158
    %v222 = vunpack.c.l.b16 %v159
    %v223 = vunpack.c.h.b16 %v159
    %v224 = vunpack.c.l.b16 %v160
    %v225 = vunpack.c.h.b16 %v160
    %v226 = vunpack.c.l.b16 %v161
    %v227 = vunpack.c.h.b16 %v161
    %v228 = vunpack.c.l.b16 %v162
    %v229 = vunpack.c.h.b16 %v162
    %v230 = vpack.c.b16 %v208, %v206
    %v231 = vpack.c.b16 %v209, %v207
    %v232 = vpack.c.b16 %v212, %v210
    %v233 = vpack.c.b16 %v213, %v211
    %v234 = vpack.c.b16 %v216, %v214
    %v235 = vpack.c.b16 %v217, %v215
    %v236 = vpack.c.b16 %v220, %v218
    %v237 = vpack.c.b16 %v221, %v219
    %v238 = vpack.c.b16 %v224, %v222
    %v239 = vpack.c.b16 %v225, %v223
    %v240 = vpack.c.b16 %v228, %v226
    %v241 = vpack.c.b16 %v229, %v227
    %vm254 = vcmask 785408
    %v256 = vsel %vm254, %v189, 0
    %v259 = vsel %vm254, %v190, 0
    %v262 = vsel %vm254, %v191, 0
    %v265 = vsel %vm254, %v192, 0
    %v268 = vsel %vm254, %v193, 0
    %270 = vmatpush.bf16.msra.mxu0 0
    %271 = vmatpush.bf16.msra.mxu0 0
    %272 = vmatpush.bf16.msra.mxu0 %v240
    %273 = vmatpush.bf16.msra.mxu0 %v238
    %274 = vmatpush.bf16.msra.mxu0 %v236
    %275 = vmatpush.bf16.msra.mxu0 %v234
    %276 = vmatpush.bf16.msra.mxu0 %v232
    %277 = vmatpush.bf16.msra.mxu0 %v230
    %278 = vmatmul.bf16.gmra.mxu0 %v256
    %v279 = vpop.f32.mrf.mxu0
    %v280 = vadd.f32 %v165, %v279
    %v281 = vpop.f32.mrf.mxu0
    %v282 = vadd.f32 %v165, %v281
    %283 = vmatmul.bf16.gmra.mxu0 %v259
    %v284 = vpop.f32.mrf.mxu0
    %v285 = vadd.f32 %v165, %v284
    %v286 = vpop.f32.mrf.mxu0
    %v287 = vadd.f32 %v165, %v286
    %288 = vmatmul.bf16.gmra.mxu0 %v262
    %v289 = vpop.f32.mrf.mxu0
    %v290 = vadd.f32 %v165, %v289
    %v291 = vpop.f32.mrf.mxu0
    %v292 = vadd.f32 %v165, %v291
    %293 = vmatmul.bf16.gmra.mxu0 %v265
    %v294 = vpop.f32.mrf.mxu0
    %v295 = vadd.f32 %v165, %v294
    %v296 = vpop.f32.mrf.mxu0
    %v297 = vadd.f32 %v165, %v296
    %298 = vmatmul.bf16.gmra.mxu0 %v268
    %v299 = vpop.f32.mrf.mxu0
    %v300 = vadd.f32 %v165, %v299
    %v301 = vpop.f32.mrf.mxu0
    %v302 = vadd.f32 %v165, %v301
    %303 = vdwg.mxu0
    %304 = vmatpush.bf16.msra.mxu0 0
    %305 = vmatpush.bf16.msra.mxu0 0
    %306 = vmatpush.bf16.msra.mxu0 %v241
    %307 = vmatpush.bf16.msra.mxu0 %v239
    %308 = vmatpush.bf16.msra.mxu0 %v237
    %309 = vmatpush.bf16.msra.mxu0 %v235
    %310 = vmatpush.bf16.msra.mxu0 %v233
    %311 = vmatpush.bf16.msra.mxu0 %v231
    %312 = vmatmul.bf16.gmra.mxu0 %v256
    %v313 = vpop.f32.mrf.mxu0
    %v314 = vadd.f32 %v166, %v313
    %v315 = vpop.f32.mrf.mxu0
    %v316 = vadd.f32 %v166, %v315
    %317 = vmatmul.bf16.gmra.mxu0 %v259
    %v318 = vpop.f32.mrf.mxu0
    %v319 = vadd.f32 %v166, %v318
    %v320 = vpop.f32.mrf.mxu0
    %v321 = vadd.f32 %v166, %v320
    %322 = vmatmul.bf16.gmra.mxu0 %v262
    %v323 = vpop.f32.mrf.mxu0
    %v324 = vadd.f32 %v166, %v323
    %v325 = vpop.f32.mrf.mxu0
    %v326 = vadd.f32 %v166, %v325
    %327 = vmatmul.bf16.gmra.mxu0 %v265
    %v328 = vpop.f32.mrf.mxu0
    %v329 = vadd.f32 %v166, %v328
    %v330 = vpop.f32.mrf.mxu0
    %v331 = vadd.f32 %v166, %v330
    %332 = vmatmul.bf16.gmra.mxu0 %v268
    %v333 = vpop.f32.mrf.mxu0
    %v334 = vadd.f32 %v166, %v333
    %v335 = vpop.f32.mrf.mxu0
    %v336 = vadd.f32 %v166, %v335
    %337 = vdwg.mxu0
    %v338 = vld [vmem:[%s0 + $0x24] sm:$0x7]
    %s339 = scalar_lea.vmem %s2, 96
    %v340 = vld [vmem:[%s339] sm:$0xff]
    %v341 = vld [vmem:[%s339 + $0x8] sm:$0xff]
    %v342 = vld [vmem:[%s339 + $0x10] sm:$0xff]
    %v343 = vld [vmem:[%s339 + $0x18] sm:$0xff]
    %v344 = vld [vmem:[%s339 + $0x20] sm:$0xff]
    %v345 = vld [vmem:[%s339 + $0x28] sm:$0xff]
    %v346 = vld [vmem:[%s339 + $0x30] sm:$0xff]
    %v347 = vld [vmem:[%s339 + $0x38] sm:$0xff]
    %v348 = vld [vmem:[%s339 + $0x40] sm:$0xff]
    %v349 = vld [vmem:[%s339 + $0x48] sm:$0xff]
    %v350 = vld [vmem:[%s339 + $0x50] sm:$0xff]
    %v351 = vld [vmem:[%s339 + $0x58] sm:$0xff]
    %v353 = vunpack.c.l.b16 %v338
    %v354 = vpack.c.b16 %v353, %v187
    %vm355 = vsmask.f32 7424
    %v356 = vshrl.u32 %v189, 16
    %v358 = vshll.u32 %v189, 16
    %v360 = vrot.slane %v358, 1
    %v361 = vor.u32 %v356, %v360
    %v362 = vshll.u32 %v190, 16
    %v364 = vrot.slane %v362, 1
    %v365 = vsel %vm355, %v361, %v364
    %v366 = vshrl.u32 %v190, 16
    %v368 = vor.u32 %v366, %v364
    %v369 = vshll.u32 %v191, 16
    %v371 = vrot.slane %v369, 1
    %v372 = vsel %vm355, %v368, %v371
    %v373 = vshrl.u32 %v191, 16
    %v375 = vor.u32 %v373, %v371
    %v376 = vshll.u32 %v192, 16
    %v378 = vrot.slane %v376, 1
    %v379 = vsel %vm355, %v375, %v378
    %v380 = vshrl.u32 %v192, 16
    %v382 = vor.u32 %v380, %v378
    %v384 = vshll.u32 %v354, 16
    %v386 = vrot.slane %v384, 1
    %v387 = vsel %vm355, %v382, %v386
    %v388 = vshrl.u32 %v354, 16
    %v390 = vor.u32 %v388, %v386
    %v403 = vunpack.c.l.b16 %v340
    %v404 = vunpack.c.h.b16 %v340
    %v405 = vunpack.c.l.b16 %v341
    %v406 = vunpack.c.h.b16 %v341
    %v407 = vunpack.c.l.b16 %v342
    %v408 = vunpack.c.h.b16 %v342
    %v409 = vunpack.c.l.b16 %v343
    %v410 = vunpack.c.h.b16 %v343
    %v411 = vunpack.c.l.b16 %v344
    %v412 = vunpack.c.h.b16 %v344
    %v413 = vunpack.c.l.b16 %v345
    %v414 = vunpack.c.h.b16 %v345
    %v415 = vunpack.c.l.b16 %v346
    %v416 = vunpack.c.h.b16 %v346
    %v417 = vunpack.c.l.b16 %v347
    %v418 = vunpack.c.h.b16 %v347
    %v419 = vunpack.c.l.b16 %v348
    %v420 = vunpack.c.h.b16 %v348
    %v421 = vunpack.c.l.b16 %v349
    %v422 = vunpack.c.h.b16 %v349
    %v423 = vunpack.c.l.b16 %v350
    %v424 = vunpack.c.h.b16 %v350
    %v425 = vunpack.c.l.b16 %v351
    %v426 = vunpack.c.h.b16 %v351
    %v427 = vpack.c.b16 %v405, %v403
    %v428 = vpack.c.b16 %v406, %v404
    %v429 = vpack.c.b16 %v409, %v407
    %v430 = vpack.c.b16 %v410, %v408
    %v431 = vpack.c.b16 %v413, %v411
    %v432 = vpack.c.b16 %v414, %v412
    %v433 = vpack.c.b16 %v417, %v415
    %v434 = vpack.c.b16 %v418, %v416
    %v435 = vpack.c.b16 %v421, %v419
    %v436 = vpack.c.b16 %v422, %v420
    %v437 = vpack.c.b16 %v425, %v423
    %v438 = vpack.c.b16 %v426, %v424
    %v452 = vsel %vm254, %v365, 0
    %v455 = vsel %vm254, %v372, 0
    %v458 = vsel %vm254, %v379, 0
    %v461 = vsel %vm254, %v387, 0
    %v464 = vsel %vm254, %v390, 0
    %466 = vmatpush.bf16.msra.mxu0 0
    %467 = vmatpush.bf16.msra.mxu0 0
    %468 = vmatpush.bf16.msra.mxu0 %v437
    %469 = vmatpush.bf16.msra.mxu0 %v435
    %470 = vmatpush.bf16.msra.mxu0 %v433
    %471 = vmatpush.bf16.msra.mxu0 %v431
    %472 = vmatpush.bf16.msra.mxu0 %v429
    %473 = vmatpush.bf16.msra.mxu0 %v427
    %474 = vmatmul.bf16.gmra.mxu0 %v452
    %v475 = vpop.f32.mrf.mxu0
    %v476 = vadd.f32 0.0, %v475
    %v477 = vpop.f32.mrf.mxu0
    %v478 = vadd.f32 0.0, %v477
    %479 = vmatmul.bf16.gmra.mxu0 %v455
    %v480 = vpop.f32.mrf.mxu0
    %v481 = vadd.f32 0.0, %v480
    %v482 = vpop.f32.mrf.mxu0
    %v483 = vadd.f32 0.0, %v482
    %484 = vmatmul.bf16.gmra.mxu0 %v458
    %v485 = vpop.f32.mrf.mxu0
    %v486 = vadd.f32 0.0, %v485
    %v487 = vpop.f32.mrf.mxu0
    %v488 = vadd.f32 0.0, %v487
    %489 = vmatmul.bf16.gmra.mxu0 %v461
    %v490 = vpop.f32.mrf.mxu0
    %v491 = vadd.f32 0.0, %v490
    %v492 = vpop.f32.mrf.mxu0
    %v493 = vadd.f32 0.0, %v492
    %494 = vmatmul.bf16.gmra.mxu0 %v464
    %v495 = vpop.f32.mrf.mxu0
    %v496 = vadd.f32 0.0, %v495
    %v497 = vpop.f32.mrf.mxu0
    %v498 = vadd.f32 0.0, %v497
    %499 = vdwg.mxu0
    %500 = vmatpush.bf16.msra.mxu0 0
    %501 = vmatpush.bf16.msra.mxu0 0
    %502 = vmatpush.bf16.msra.mxu0 %v438
    %503 = vmatpush.bf16.msra.mxu0 %v436
    %504 = vmatpush.bf16.msra.mxu0 %v434
    %505 = vmatpush.bf16.msra.mxu0 %v432
    %506 = vmatpush.bf16.msra.mxu0 %v430
    %507 = vmatpush.bf16.msra.mxu0 %v428
    %508 = vmatmul.bf16.gmra.mxu0 %v452
    %v509 = vpop.f32.mrf.mxu0
    %v510 = vadd.f32 0.0, %v509
    %v511 = vpop.f32.mrf.mxu0
    %v512 = vadd.f32 0.0, %v511
    %513 = vmatmul.bf16.gmra.mxu0 %v455
    %v514 = vpop.f32.mrf.mxu0
    %v515 = vadd.f32 0.0, %v514
    %v516 = vpop.f32.mrf.mxu0
    %v517 = vadd.f32 0.0, %v516
    %518 = vmatmul.bf16.gmra.mxu0 %v458
    %v519 = vpop.f32.mrf.mxu0
    %v520 = vadd.f32 0.0, %v519
    %v521 = vpop.f32.mrf.mxu0
    %v522 = vadd.f32 0.0, %v521
    %523 = vmatmul.bf16.gmra.mxu0 %v461
    %v524 = vpop.f32.mrf.mxu0
    %v525 = vadd.f32 0.0, %v524
    %v526 = vpop.f32.mrf.mxu0
    %v527 = vadd.f32 0.0, %v526
    %528 = vmatmul.bf16.gmra.mxu0 %v464
    %v529 = vpop.f32.mrf.mxu0
    %v530 = vadd.f32 0.0, %v529
    %v531 = vpop.f32.mrf.mxu0
    %v532 = vadd.f32 0.0, %v531
    %533 = vdwg.mxu0
    %v534 = vadd.f32 %v280, %v476
    %v535 = vadd.f32 %v314, %v510
    %v536 = vadd.f32 %v282, %v478
    %v537 = vadd.f32 %v316, %v512
    %v538 = vadd.f32 %v285, %v481
    %v539 = vadd.f32 %v319, %v515
    %v540 = vadd.f32 %v287, %v483
    %v541 = vadd.f32 %v321, %v517
    %v542 = vadd.f32 %v290, %v486
    %v543 = vadd.f32 %v324, %v520
    %v544 = vadd.f32 %v292, %v488
    %v545 = vadd.f32 %v326, %v522
    %v546 = vadd.f32 %v295, %v491
    %v547 = vadd.f32 %v329, %v525
    %v548 = vadd.f32 %v297, %v493
    %v549 = vadd.f32 %v331, %v527
    %v550 = vadd.f32 %v300, %v496
    %v551 = vadd.f32 %v334, %v530
    %v552 = vadd.f32 %v302, %v498
    %v553 = vadd.f32 %v336, %v532
    %v554 = vld [vmem:[%s0] sm:$0xe]
    %s555 = scalar_lea.vmem %s2, 192
    %v556 = vld [vmem:[%s555] sm:$0xff]
    %v557 = vld [vmem:[%s555 + $0x8] sm:$0xff]
    %v558 = vld [vmem:[%s555 + $0x10] sm:$0xff]
    %v559 = vld [vmem:[%s555 + $0x18] sm:$0xff]
    %v560 = vld [vmem:[%s555 + $0x20] sm:$0xff]
    %v561 = vld [vmem:[%s555 + $0x28] sm:$0xff]
    %v562 = vld [vmem:[%s555 + $0x30] sm:$0xff]
    %v563 = vld [vmem:[%s555 + $0x38] sm:$0xff]
    %v564 = vld [vmem:[%s555 + $0x40] sm:$0xff]
    %v565 = vld [vmem:[%s555 + $0x48] sm:$0xff]
    %v566 = vld [vmem:[%s555 + $0x50] sm:$0xff]
    %v567 = vld [vmem:[%s555 + $0x58] sm:$0xff]
    %v569 = vunpack.c.l.b16 %v554
    %v570 = vpack.c.b16 %v180, %v569
    %vm571 = vcmask 1046528
    %v572 = vrot.slane %v570, 1
    %v573 = vrot.slane %v190, 1
    %v574 = vsel %vm571, %v572, %v573
    %v575 = vrot.slane %v191, 1
    %v576 = vsel %vm571, %v573, %v575
    %v577 = vrot.slane %v192, 1
    %v578 = vsel %vm571, %v575, %v577
    %v579 = vrot.slane %v354, 1
    %v580 = vsel %vm571, %v577, %v579
    %v593 = vunpack.c.l.b16 %v556
    %v594 = vunpack.c.h.b16 %v556
    %v595 = vunpack.c.l.b16 %v557
    %v596 = vunpack.c.h.b16 %v557
    %v597 = vunpack.c.l.b16 %v558
    %v598 = vunpack.c.h.b16 %v558
    %v599 = vunpack.c.l.b16 %v559
    %v600 = vunpack.c.h.b16 %v559
    %v601 = vunpack.c.l.b16 %v560
    %v602 = vunpack.c.h.b16 %v560
    %v603 = vunpack.c.l.b16 %v561
    %v604 = vunpack.c.h.b16 %v561
    %v605 = vunpack.c.l.b16 %v562
    %v606 = vunpack.c.h.b16 %v562
    %v607 = vunpack.c.l.b16 %v563
    %v608 = vunpack.c.h.b16 %v563
    %v609 = vunpack.c.l.b16 %v564
    %v610 = vunpack.c.h.b16 %v564
    %v611 = vunpack.c.l.b16 %v565
    %v612 = vunpack.c.h.b16 %v565
    %v613 = vunpack.c.l.b16 %v566
    %v614 = vunpack.c.h.b16 %v566
    %v615 = vunpack.c.l.b16 %v567
    %v616 = vunpack.c.h.b16 %v567
    %v617 = vpack.c.b16 %v595, %v593
    %v618 = vpack.c.b16 %v596, %v594
    %v619 = vpack.c.b16 %v599, %v597
    %v620 = vpack.c.b16 %v600, %v598
    %v621 = vpack.c.b16 %v603, %v601
    %v622 = vpack.c.b16 %v604, %v602
    %v623 = vpack.c.b16 %v607, %v605
    %v624 = vpack.c.b16 %v608, %v606
    %v625 = vpack.c.b16 %v611, %v609
    %v626 = vpack.c.b16 %v612, %v610
    %v627 = vpack.c.b16 %v615, %v613
    %v628 = vpack.c.b16 %v616, %v614
    %v642 = vsel %vm254, %v574, 0
    %v645 = vsel %vm254, %v576, 0
    %v648 = vsel %vm254, %v578, 0
    %v651 = vsel %vm254, %v580, 0
    %v654 = vsel %vm254, %v579, 0
    %656 = vmatpush.bf16.msra.mxu0 0
    %657 = vmatpush.bf16.msra.mxu0 0
    %658 = vmatpush.bf16.msra.mxu0 %v627
    %659 = vmatpush.bf16.msra.mxu0 %v625
    %660 = vmatpush.bf16.msra.mxu0 %v623
    %661 = vmatpush.bf16.msra.mxu0 %v621
    %662 = vmatpush.bf16.msra.mxu0 %v619
    %663 = vmatpush.bf16.msra.mxu0 %v617
    %664 = vmatmul.bf16.gmra.mxu0 %v642
    %v665 = vpop.f32.mrf.mxu0
    %v666 = vadd.f32 0.0, %v665
    %v667 = vpop.f32.mrf.mxu0
    %v668 = vadd.f32 0.0, %v667
    %669 = vmatmul.bf16.gmra.mxu0 %v645
    %v670 = vpop.f32.mrf.mxu0
    %v671 = vadd.f32 0.0, %v670
    %v672 = vpop.f32.mrf.mxu0
    %v673 = vadd.f32 0.0, %v672
    %674 = vmatmul.bf16.gmra.mxu0 %v648
    %v675 = vpop.f32.mrf.mxu0
    %v676 = vadd.f32 0.0, %v675
    %v677 = vpop.f32.mrf.mxu0
    %v678 = vadd.f32 0.0, %v677
    %679 = vmatmul.bf16.gmra.mxu0 %v651
    %v680 = vpop.f32.mrf.mxu0
    %v681 = vadd.f32 0.0, %v680
    %v682 = vpop.f32.mrf.mxu0
    %v683 = vadd.f32 0.0, %v682
    %684 = vmatmul.bf16.gmra.mxu0 %v654
    %v685 = vpop.f32.mrf.mxu0
    %v686 = vadd.f32 0.0, %v685
    %v687 = vpop.f32.mrf.mxu0
    %v688 = vadd.f32 0.0, %v687
    %689 = vdwg.mxu0
    %690 = vmatpush.bf16.msra.mxu0 0
    %691 = vmatpush.bf16.msra.mxu0 0
    %692 = vmatpush.bf16.msra.mxu0 %v628
    %693 = vmatpush.bf16.msra.mxu0 %v626
    %694 = vmatpush.bf16.msra.mxu0 %v624
    %695 = vmatpush.bf16.msra.mxu0 %v622
    %696 = vmatpush.bf16.msra.mxu0 %v620
    %697 = vmatpush.bf16.msra.mxu0 %v618
    %698 = vmatmul.bf16.gmra.mxu0 %v642
    %v699 = vpop.f32.mrf.mxu0
    %v700 = vadd.f32 0.0, %v699
    %v701 = vpop.f32.mrf.mxu0
    %v702 = vadd.f32 0.0, %v701
    %703 = vmatmul.bf16.gmra.mxu0 %v645
    %v704 = vpop.f32.mrf.mxu0
    %v705 = vadd.f32 0.0, %v704
    %v706 = vpop.f32.mrf.mxu0
    %v707 = vadd.f32 0.0, %v706
    %708 = vmatmul.bf16.gmra.mxu0 %v648
    %v709 = vpop.f32.mrf.mxu0
    %v710 = vadd.f32 0.0, %v709
    %v711 = vpop.f32.mrf.mxu0
    %v712 = vadd.f32 0.0, %v711
    %713 = vmatmul.bf16.gmra.mxu0 %v651
    %v714 = vpop.f32.mrf.mxu0
    %v715 = vadd.f32 0.0, %v714
    %v716 = vpop.f32.mrf.mxu0
    %v717 = vadd.f32 0.0, %v716
    %718 = vmatmul.bf16.gmra.mxu0 %v654
    %v719 = vpop.f32.mrf.mxu0
    %v720 = vadd.f32 0.0, %v719
    %v721 = vpop.f32.mrf.mxu0
    %v722 = vadd.f32 0.0, %v721
    %723 = vdwg.mxu0
    %v724 = vadd.f32 %v534, %v666
    %v725 = vadd.f32 %v535, %v700
    %v726 = vadd.f32 %v536, %v668
    %v727 = vadd.f32 %v537, %v702
    %v728 = vadd.f32 %v538, %v671
    %v729 = vadd.f32 %v539, %v705
    %v730 = vadd.f32 %v540, %v673
    %v731 = vadd.f32 %v541, %v707
    %v732 = vadd.f32 %v542, %v676
    %v733 = vadd.f32 %v543, %v710
    %v734 = vadd.f32 %v544, %v678
    %v735 = vadd.f32 %v545, %v712
    %v736 = vadd.f32 %v546, %v681
    %v737 = vadd.f32 %v547, %v715
    %v738 = vadd.f32 %v548, %v683
    %v739 = vadd.f32 %v549, %v717
    %v740 = vadd.f32 %v550, %v686
    %v741 = vadd.f32 %v551, %v720
    %v742 = vadd.f32 %v552, %v688
    %v743 = vadd.f32 %v553, %v722
    %v744 = vld [vmem:[%s0 + $0x24] sm:$0xf]
    %s745 = scalar_lea.vmem %s2, 288
    %v746 = vld [vmem:[%s745] sm:$0xff]
    %v747 = vld [vmem:[%s745 + $0x8] sm:$0xff]
    %v748 = vld [vmem:[%s745 + $0x10] sm:$0xff]
    %v749 = vld [vmem:[%s745 + $0x18] sm:$0xff]
    %v750 = vld [vmem:[%s745 + $0x20] sm:$0xff]
    %v751 = vld [vmem:[%s745 + $0x28] sm:$0xff]
    %v752 = vld [vmem:[%s745 + $0x30] sm:$0xff]
    %v753 = vld [vmem:[%s745 + $0x38] sm:$0xff]
    %v754 = vld [vmem:[%s745 + $0x40] sm:$0xff]
    %v755 = vld [vmem:[%s745 + $0x48] sm:$0xff]
    %v756 = vld [vmem:[%s745 + $0x50] sm:$0xff]
    %v757 = vld [vmem:[%s745 + $0x58] sm:$0xff]
    %v759 = vunpack.c.l.b16 %v744
    %v760 = vpack.c.b16 %v759, %v187
    %vm761 = vsmask.f32 6400
    %v763 = vshrl.u32 %v570, 16
    %v765 = vrot.slane %v763, 1
    %v766 = vshll.u32 %v570, 16
    %v768 = vrot.slane %v766, 2
    %v769 = vor.u32 %v765, %v768
    %v770 = vrot.slane %v366, 1
    %v771 = vrot.slane %v362, 2
    %v772 = vor.u32 %v770, %v771
    %v773 = vsel %vm761, %v769, %v772
    %v774 = vrot.slane %v373, 1
    %v775 = vrot.slane %v369, 2
    %v776 = vor.u32 %v774, %v775
    %v777 = vsel %vm761, %v772, %v776
    %v778 = vrot.slane %v380, 1
    %v779 = vrot.slane %v376, 2
    %v780 = vor.u32 %v778, %v779
    %v781 = vsel %vm761, %v776, %v780
    %v783 = vshrl.u32 %v760, 16
    %v785 = vrot.slane %v783, 1
    %v786 = vshll.u32 %v760, 16
    %v788 = vrot.slane %v786, 2
    %v789 = vor.u32 %v785, %v788
    %v790 = vsel %vm761, %v780, %v789
    %v803 = vunpack.c.l.b16 %v746
    %v804 = vunpack.c.h.b16 %v746
    %v805 = vunpack.c.l.b16 %v747
    %v806 = vunpack.c.h.b16 %v747
    %v807 = vunpack.c.l.b16 %v748
    %v808 = vunpack.c.h.b16 %v748
    %v809 = vunpack.c.l.b16 %v749
    %v810 = vunpack.c.h.b16 %v749
    %v811 = vunpack.c.l.b16 %v750
    %v812 = vunpack.c.h.b16 %v750
    %v813 = vunpack.c.l.b16 %v751
    %v814 = vunpack.c.h.b16 %v751
    %v815 = vunpack.c.l.b16 %v752
    %v816 = vunpack.c.h.b16 %v752
    %v817 = vunpack.c.l.b16 %v753
    %v818 = vunpack.c.h.b16 %v753
    %v819 = vunpack.c.l.b16 %v754
    %v820 = vunpack.c.h.b16 %v754
    %v821 = vunpack.c.l.b16 %v755
    %v822 = vunpack.c.h.b16 %v755
    %v823 = vunpack.c.l.b16 %v756
    %v824 = vunpack.c.h.b16 %v756
    %v825 = vunpack.c.l.b16 %v757
    %v826 = vunpack.c.h.b16 %v757
    %v827 = vpack.c.b16 %v805, %v803
    %v828 = vpack.c.b16 %v806, %v804
    %v829 = vpack.c.b16 %v809, %v807
    %v830 = vpack.c.b16 %v810, %v808
    %v831 = vpack.c.b16 %v813, %v811
    %v832 = vpack.c.b16 %v814, %v812
    %v833 = vpack.c.b16 %v817, %v815
    %v834 = vpack.c.b16 %v818, %v816
    %v835 = vpack.c.b16 %v821, %v819
    %v836 = vpack.c.b16 %v822, %v820
    %v837 = vpack.c.b16 %v825, %v823
    %v838 = vpack.c.b16 %v826, %v824
    %v852 = vsel %vm254, %v773, 0
    %v855 = vsel %vm254, %v777, 0
    %v858 = vsel %vm254, %v781, 0
    %v861 = vsel %vm254, %v790, 0
    %v864 = vsel %vm254, %v789, 0
    %866 = vmatpush.bf16.msra.mxu0 0
    %867 = vmatpush.bf16.msra.mxu0 0
    %868 = vmatpush.bf16.msra.mxu0 %v837
    %869 = vmatpush.bf16.msra.mxu0 %v835
    %870 = vmatpush.bf16.msra.mxu0 %v833
    %871 = vmatpush.bf16.msra.mxu0 %v831
    %872 = vmatpush.bf16.msra.mxu0 %v829
    %873 = vmatpush.bf16.msra.mxu0 %v827
    %874 = vmatmul.bf16.gmra.mxu0 %v852
    %v875 = vpop.f32.mrf.mxu0
    %v876 = vadd.f32 0.0, %v875
    %v877 = vpop.f32.mrf.mxu0
    %v878 = vadd.f32 0.0, %v877
    %879 = vmatmul.bf16.gmra.mxu0 %v855
    %v880 = vpop.f32.mrf.mxu0
    %v881 = vadd.f32 0.0, %v880
    %v882 = vpop.f32.mrf.mxu0
    %v883 = vadd.f32 0.0, %v882
    %884 = vmatmul.bf16.gmra.mxu0 %v858
    %v885 = vpop.f32.mrf.mxu0
    %v886 = vadd.f32 0.0, %v885
    %v887 = vpop.f32.mrf.mxu0
    %v888 = vadd.f32 0.0, %v887
    %889 = vmatmul.bf16.gmra.mxu0 %v861
    %v890 = vpop.f32.mrf.mxu0
    %v891 = vadd.f32 0.0, %v890
    %v892 = vpop.f32.mrf.mxu0
    %v893 = vadd.f32 0.0, %v892
    %894 = vmatmul.bf16.gmra.mxu0 %v864
    %v895 = vpop.f32.mrf.mxu0
    %v896 = vadd.f32 0.0, %v895
    %v897 = vpop.f32.mrf.mxu0
    %v898 = vadd.f32 0.0, %v897
    %899 = vdwg.mxu0
    %900 = vmatpush.bf16.msra.mxu0 0
    %901 = vmatpush.bf16.msra.mxu0 0
    %902 = vmatpush.bf16.msra.mxu0 %v838
    %903 = vmatpush.bf16.msra.mxu0 %v836
    %904 = vmatpush.bf16.msra.mxu0 %v834
    %905 = vmatpush.bf16.msra.mxu0 %v832
    %906 = vmatpush.bf16.msra.mxu0 %v830
    %907 = vmatpush.bf16.msra.mxu0 %v828
    %908 = vmatmul.bf16.gmra.mxu0 %v852
    %v909 = vpop.f32.mrf.mxu0
    %v910 = vadd.f32 0.0, %v909
    %v911 = vpop.f32.mrf.mxu0
    %v912 = vadd.f32 0.0, %v911
    %913 = vmatmul.bf16.gmra.mxu0 %v855
    %v914 = vpop.f32.mrf.mxu0
    %v915 = vadd.f32 0.0, %v914
    %v916 = vpop.f32.mrf.mxu0
    %v917 = vadd.f32 0.0, %v916
    %918 = vmatmul.bf16.gmra.mxu0 %v858
    %v919 = vpop.f32.mrf.mxu0
    %v920 = vadd.f32 0.0, %v919
    %v921 = vpop.f32.mrf.mxu0
    %v922 = vadd.f32 0.0, %v921
    %923 = vmatmul.bf16.gmra.mxu0 %v861
    %v924 = vpop.f32.mrf.mxu0
    %v925 = vadd.f32 0.0, %v924
    %v926 = vpop.f32.mrf.mxu0
    %v927 = vadd.f32 0.0, %v926
    %928 = vmatmul.bf16.gmra.mxu0 %v864
    %v929 = vpop.f32.mrf.mxu0
    %v930 = vadd.f32 0.0, %v929
    %v931 = vpop.f32.mrf.mxu0
    %v932 = vadd.f32 0.0, %v931
    %933 = vdwg.mxu0
    %v934 = vadd.f32 %v724, %v876
    %v935 = vadd.f32 %v725, %v910
    %v936 = vadd.f32 %v726, %v878
    %v937 = vadd.f32 %v727, %v912
    %v938 = vadd.f32 %v728, %v881
    %v939 = vadd.f32 %v729, %v915
    %v940 = vadd.f32 %v730, %v883
    %v941 = vadd.f32 %v731, %v917
    %v942 = vadd.f32 %v732, %v886
    %v943 = vadd.f32 %v733, %v920
    %v944 = vadd.f32 %v734, %v888
    %v945 = vadd.f32 %v735, %v922
    %v946 = vadd.f32 %v736, %v891
    %v947 = vadd.f32 %v737, %v925
    %v948 = vadd.f32 %v738, %v893
    %v949 = vadd.f32 %v739, %v927
    %v950 = vadd.f32 %v740, %v896
    %v951 = vadd.f32 %v741, %v930
    %v952 = vadd.f32 %v742, %v898
    %v953 = vadd.f32 %v743, %v932
    %v954 = vld [vmem:[%s0] sm:$0xc]
    %s955 = scalar_lea.vmem %s2, 384
    %v956 = vld [vmem:[%s955] sm:$0xff]
    %v957 = vld [vmem:[%s955 + $0x8] sm:$0xff]
    %v958 = vld [vmem:[%s955 + $0x10] sm:$0xff]
    %v959 = vld [vmem:[%s955 + $0x18] sm:$0xff]
    %v960 = vld [vmem:[%s955 + $0x20] sm:$0xff]
    %v961 = vld [vmem:[%s955 + $0x28] sm:$0xff]
    %v962 = vld [vmem:[%s955 + $0x30] sm:$0xff]
    %v963 = vld [vmem:[%s955 + $0x38] sm:$0xff]
    %v964 = vld [vmem:[%s955 + $0x40] sm:$0xff]
    %v965 = vld [vmem:[%s955 + $0x48] sm:$0xff]
    %v966 = vld [vmem:[%s955 + $0x50] sm:$0xff]
    %v967 = vld [vmem:[%s955 + $0x58] sm:$0xff]
    %v969 = vunpack.c.l.b16 %v954
    %v970 = vpack.c.b16 %v180, %v969
    %vm971 = vcmask 1045504
    %v972 = vrot.slane %v970, 2
    %v973 = vrot.slane %v190, 2
    %v974 = vsel %vm971, %v972, %v973
    %v975 = vrot.slane %v191, 2
    %v976 = vsel %vm971, %v973, %v975
    %v977 = vrot.slane %v192, 2
    %v978 = vsel %vm971, %v975, %v977
    %v979 = vrot.slane %v760, 2
    %v980 = vsel %vm971, %v977, %v979
    %v993 = vunpack.c.l.b16 %v956
    %v994 = vunpack.c.h.b16 %v956
    %v995 = vunpack.c.l.b16 %v957
    %v996 = vunpack.c.h.b16 %v957
    %v997 = vunpack.c.l.b16 %v958
    %v998 = vunpack.c.h.b16 %v958
    %v999 = vunpack.c.l.b16 %v959
    %v1000 = vunpack.c.h.b16 %v959
    %v1001 = vunpack.c.l.b16 %v960
    %v1002 = vunpack.c.h.b16 %v960
    %v1003 = vunpack.c.l.b16 %v961
    %v1004 = vunpack.c.h.b16 %v961
    %v1005 = vunpack.c.l.b16 %v962
    %v1006 = vunpack.c.h.b16 %v962
    %v1007 = vunpack.c.l.b16 %v963
    %v1008 = vunpack.c.h.b16 %v963
    %v1009 = vunpack.c.l.b16 %v964
    %v1010 = vunpack.c.h.b16 %v964
    %v1011 = vunpack.c.l.b16 %v965
    %v1012 = vunpack.c.h.b16 %v965
    %v1013 = vunpack.c.l.b16 %v966
    %v1014 = vunpack.c.h.b16 %v966
    %v1015 = vunpack.c.l.b16 %v967
    %v1016 = vunpack.c.h.b16 %v967
    %v1017 = vpack.c.b16 %v995, %v993
    %v1018 = vpack.c.b16 %v996, %v994
    %v1019 = vpack.c.b16 %v999, %v997
    %v1020 = vpack.c.b16 %v1000, %v998
    %v1021 = vpack.c.b16 %v1003, %v1001
    %v1022 = vpack.c.b16 %v1004, %v1002
    %v1023 = vpack.c.b16 %v1007, %v1005
    %v1024 = vpack.c.b16 %v1008, %v1006
    %v1025 = vpack.c.b16 %v1011, %v1009
    %v1026 = vpack.c.b16 %v1012, %v1010
    %v1027 = vpack.c.b16 %v1015, %v1013
    %v1028 = vpack.c.b16 %v1016, %v1014
    %v1042 = vsel %vm254, %v974, 0
    %v1045 = vsel %vm254, %v976, 0
    %v1048 = vsel %vm254, %v978, 0
    %v1051 = vsel %vm254, %v980, 0
    %v1054 = vsel %vm254, %v979, 0
    %1056 = vmatpush.bf16.msra.mxu0 0
    %1057 = vmatpush.bf16.msra.mxu0 0
    %1058 = vmatpush.bf16.msra.mxu0 %v1027
    %1059 = vmatpush.bf16.msra.mxu0 %v1025
    %1060 = vmatpush.bf16.msra.mxu0 %v1023
    %1061 = vmatpush.bf16.msra.mxu0 %v1021
    %1062 = vmatpush.bf16.msra.mxu0 %v1019
    %1063 = vmatpush.bf16.msra.mxu0 %v1017
    %1064 = vmatmul.bf16.gmra.mxu0 %v1042
    %v1065 = vpop.f32.mrf.mxu0
    %v1066 = vadd.f32 0.0, %v1065
    %v1067 = vpop.f32.mrf.mxu0
    %v1068 = vadd.f32 0.0, %v1067
    %1069 = vmatmul.bf16.gmra.mxu0 %v1045
    %v1070 = vpop.f32.mrf.mxu0
    %v1071 = vadd.f32 0.0, %v1070
    %v1072 = vpop.f32.mrf.mxu0
    %v1073 = vadd.f32 0.0, %v1072
    %1074 = vmatmul.bf16.gmra.mxu0 %v1048
    %v1075 = vpop.f32.mrf.mxu0
    %v1076 = vadd.f32 0.0, %v1075
    %v1077 = vpop.f32.mrf.mxu0
    %v1078 = vadd.f32 0.0, %v1077
    %1079 = vmatmul.bf16.gmra.mxu0 %v1051
    %v1080 = vpop.f32.mrf.mxu0
    %v1081 = vadd.f32 0.0, %v1080
    %v1082 = vpop.f32.mrf.mxu0
    %v1083 = vadd.f32 0.0, %v1082
    %1084 = vmatmul.bf16.gmra.mxu0 %v1054
    %v1085 = vpop.f32.mrf.mxu0
    %v1086 = vadd.f32 0.0, %v1085
    %v1087 = vpop.f32.mrf.mxu0
    %v1088 = vadd.f32 0.0, %v1087
    %1089 = vdwg.mxu0
    %1090 = vmatpush.bf16.msra.mxu0 0
    %1091 = vmatpush.bf16.msra.mxu0 0
    %1092 = vmatpush.bf16.msra.mxu0 %v1028
    %1093 = vmatpush.bf16.msra.mxu0 %v1026
    %1094 = vmatpush.bf16.msra.mxu0 %v1024
    %1095 = vmatpush.bf16.msra.mxu0 %v1022
    %1096 = vmatpush.bf16.msra.mxu0 %v1020
    %1097 = vmatpush.bf16.msra.mxu0 %v1018
    %1098 = vmatmul.bf16.gmra.mxu0 %v1042
    %v1099 = vpop.f32.mrf.mxu0
    %v1100 = vadd.f32 0.0, %v1099
    %v1101 = vpop.f32.mrf.mxu0
    %v1102 = vadd.f32 0.0, %v1101
    %1103 = vmatmul.bf16.gmra.mxu0 %v1045
    %v1104 = vpop.f32.mrf.mxu0
    %v1105 = vadd.f32 0.0, %v1104
    %v1106 = vpop.f32.mrf.mxu0
    %v1107 = vadd.f32 0.0, %v1106
    %1108 = vmatmul.bf16.gmra.mxu0 %v1048
    %v1109 = vpop.f32.mrf.mxu0
    %v1110 = vadd.f32 0.0, %v1109
    %v1111 = vpop.f32.mrf.mxu0
    %v1112 = vadd.f32 0.0, %v1111
    %1113 = vmatmul.bf16.gmra.mxu0 %v1051
    %v1114 = vpop.f32.mrf.mxu0
    %v1115 = vadd.f32 0.0, %v1114
    %v1116 = vpop.f32.mrf.mxu0
    %v1117 = vadd.f32 0.0, %v1116
    %1118 = vmatmul.bf16.gmra.mxu0 %v1054
    %v1119 = vpop.f32.mrf.mxu0
    %v1120 = vadd.f32 0.0, %v1119
    %v1121 = vpop.f32.mrf.mxu0
    %v1122 = vadd.f32 0.0, %v1121
    %1123 = vdwg.mxu0
    %v1124 = vadd.f32 %v934, %v1066
    %v1125 = vadd.f32 %v935, %v1100
    %v1126 = vadd.f32 %v936, %v1068
    %v1127 = vadd.f32 %v937, %v1102
    %v1128 = vadd.f32 %v938, %v1071
    %v1129 = vadd.f32 %v939, %v1105
    %v1130 = vadd.f32 %v940, %v1073
    %v1131 = vadd.f32 %v941, %v1107
    %v1132 = vadd.f32 %v942, %v1076
    %v1133 = vadd.f32 %v943, %v1110
    %v1134 = vadd.f32 %v944, %v1078
    %v1135 = vadd.f32 %v945, %v1112
    %v1136 = vadd.f32 %v946, %v1081
    %v1137 = vadd.f32 %v947, %v1115
    %v1138 = vadd.f32 %v948, %v1083
    %v1139 = vadd.f32 %v949, %v1117
    %v1140 = vadd.f32 %v950, %v1086
    %v1141 = vadd.f32 %v951, %v1120
    %v1142 = vadd.f32 %v952, %v1088
    %v1143 = vadd.f32 %v953, %v1122
    %v1144 = vmax.f32 %v1124, 0.0
    %v1145 = vmax.f32 %v1125, 0.0
    %v1146 = vmax.f32 %v1126, 0.0
    %v1147 = vmax.f32 %v1127, 0.0
    %v1148 = vmax.f32 %v1128, 0.0
    %v1149 = vmax.f32 %v1129, 0.0
    %v1150 = vmax.f32 %v1130, 0.0
    %v1151 = vmax.f32 %v1131, 0.0
    %v1152 = vmax.f32 %v1132, 0.0
    %v1153 = vmax.f32 %v1133, 0.0
    %v1154 = vmax.f32 %v1134, 0.0
    %v1155 = vmax.f32 %v1135, 0.0
    %v1156 = vmax.f32 %v1136, 0.0
    %v1157 = vmax.f32 %v1137, 0.0
    %v1158 = vmax.f32 %v1138, 0.0
    %v1159 = vmax.f32 %v1139, 0.0
    %v1160 = vmax.f32 %v1140, 0.0
    %v1161 = vmax.f32 %v1141, 0.0
    %v1162 = vmax.f32 %v1142, 0.0
    %v1163 = vmax.f32 %v1143, 0.0
    %vm1184 = vcmask 1046528
    %v1185 = vrot.slane %v1144, 1
    %v1186 = vrot.slane %v1146, 1
    %v1187 = vsel %vm1184, %v1185, %v1186
    %v1188 = vrot.slane %v1145, 1
    %v1189 = vrot.slane %v1147, 1
    %v1190 = vsel %vm1184, %v1188, %v1189
    %v1191 = vrot.slane %v1148, 1
    %v1192 = vsel %vm1184, %v1186, %v1191
    %v1193 = vrot.slane %v1149, 1
    %v1194 = vsel %vm1184, %v1189, %v1193
    %v1195 = vrot.slane %v1150, 1
    %v1196 = vsel %vm1184, %v1191, %v1195
    %v1197 = vrot.slane %v1151, 1
    %v1198 = vsel %vm1184, %v1193, %v1197
    %v1199 = vrot.slane %v1152, 1
    %v1200 = vsel %vm1184, %v1195, %v1199
    %v1201 = vrot.slane %v1153, 1
    %v1202 = vsel %vm1184, %v1197, %v1201
    %v1203 = vrot.slane %v1154, 1
    %v1204 = vsel %vm1184, %v1199, %v1203
    %v1205 = vrot.slane %v1155, 1
    %v1206 = vsel %vm1184, %v1201, %v1205
    %v1207 = vrot.slane %v1156, 1
    %v1208 = vsel %vm1184, %v1203, %v1207
    %v1209 = vrot.slane %v1157, 1
    %v1210 = vsel %vm1184, %v1205, %v1209
    %v1211 = vrot.slane %v1158, 1
    %v1212 = vsel %vm1184, %v1207, %v1211
    %v1213 = vrot.slane %v1159, 1
    %v1214 = vsel %vm1184, %v1209, %v1213
    %v1215 = vrot.slane %v1160, 1
    %v1216 = vsel %vm1184, %v1211, %v1215
    %v1217 = vrot.slane %v1161, 1
    %v1218 = vsel %vm1184, %v1213, %v1217
    %v1219 = vrot.slane %v1162, 1
    %v1220 = vsel %vm1184, %v1215, %v1219
    %v1221 = vrot.slane %v1163, 1
    %v1222 = vsel %vm1184, %v1217, %v1221
    %v1243 = vmax.f32 %v1144, %v1187
    %v1244 = vmax.f32 %v1145, %v1190
    %v1245 = vmax.f32 %v1146, %v1192
    %v1246 = vmax.f32 %v1147, %v1194
    %v1247 = vmax.f32 %v1148, %v1196
    %v1248 = vmax.f32 %v1149, %v1198
    %v1249 = vmax.f32 %v1150, %v1200
    %v1250 = vmax.f32 %v1151, %v1202
    %v1251 = vmax.f32 %v1152, %v1204
    %v1252 = vmax.f32 %v1153, %v1206
    %v1253 = vmax.f32 %v1154, %v1208
    %v1254 = vmax.f32 %v1155, %v1210
    %v1255 = vmax.f32 %v1156, %v1212
    %v1256 = vmax.f32 %v1157, %v1214
    %v1257 = vmax.f32 %v1158, %v1216
    %v1258 = vmax.f32 %v1159, %v1218
    %v1259 = vmax.f32 %v1160, %v1220
    %v1260 = vmax.f32 %v1161, %v1222
    %v1261 = vmax.f32 %v1162, %v1219
    %v1262 = vmax.f32 %v1163, %v1221
    %v1263 = vpack.c.bf16 %v1245, %v1243
    %v1264 = vpack.c.bf16 %v1246, %v1244
    %v1265 = vpack.c.bf16 %v1249, %v1247
    %v1266 = vpack.c.bf16 %v1250, %v1248
    %v1267 = vpack.c.bf16 %v1253, %v1251
    %v1268 = vpack.c.bf16 %v1254, %v1252
    %v1269 = vpack.c.bf16 %v1257, %v1255
    %v1270 = vpack.c.bf16 %v1258, %v1256
    %v1271 = vpack.c.bf16 %v1261, %v1259
    %v1272 = vpack.c.bf16 %v1262, %v1260
    %v1273 = vld [vmem:[#allocation5] sm:$0xf]
    %v1274 = vld [vmem:[#allocation5 + $0x4] sm:$0xf]
    %v1275 = vld [vmem:[#allocation5 + $0x8] sm:$0xf]
    %v1276 = vld [vmem:[#allocation5 + $0xc] sm:$0xf]
    %v1277 = vld [vmem:[#allocation5 + $0x10] sm:$0xf]
    %v1278 = vld [vmem:[#allocation5 + $0x14] sm:$0xf]
    %v1279 = vld [vmem:[#allocation5 + $0x18] sm:$0xf]
    %v1280 = vld [vmem:[#allocation5 + $0x1c] sm:$0xf]
    %v1281 = vld [vmem:[#allocation5 + $0x20] sm:$0xf]
    %v1282 = vld [vmem:[#allocation5 + $0x24] sm:$0xf]
    %v1283 = vld [vmem:[#allocation5 + $0x28] sm:$0xf]
    %v1284 = vld [vmem:[#allocation5 + $0x2c] sm:$0xf]
    %v1285 = vld [vmem:[#allocation5 + $0x30] sm:$0xf]
    %v1286 = vld [vmem:[#allocation5 + $0x34] sm:$0xf]
    %v1287 = vld [vmem:[#allocation5 + $0x38] sm:$0xf]
    %v1288 = vld [vmem:[#allocation5 + $0x3c] sm:$0xf]
    %v1289 = vld [vmem:[#allocation5 + $0x40] sm:$0xf]
    %v1290 = vld [vmem:[#allocation5 + $0x44] sm:$0xf]
    %v1291 = vld [vmem:[#allocation5 + $0x48] sm:$0xf]
    %v1292 = vld [vmem:[#allocation5 + $0x4c] sm:$0xf]
    %v1293 = vld [vmem:[#allocation5 + $0x50] sm:$0xf]
    %v1315 = vunpack.c.l.b16 %v1273
    %v1316 = vunpack.c.l.b16 %v1274
    %v1317 = vunpack.c.l.b16 %v1275
    %v1318 = vunpack.c.l.b16 %v1276
    %v1319 = vunpack.c.l.b16 %v1277
    %v1320 = vunpack.c.l.b16 %v1278
    %v1321 = vunpack.c.l.b16 %v1279
    %v1322 = vunpack.c.l.b16 %v1280
    %v1323 = vunpack.c.l.b16 %v1281
    %v1324 = vunpack.c.l.b16 %v1282
    %v1325 = vunpack.c.l.b16 %v1283
    %v1326 = vunpack.c.l.b16 %v1284
    %v1327 = vunpack.c.l.b16 %v1285
    %v1328 = vunpack.c.l.b16 %v1286
    %v1329 = vunpack.c.l.b16 %v1287
    %v1330 = vunpack.c.l.b16 %v1288
    %v1331 = vunpack.c.l.b16 %v1289
    %v1332 = vunpack.c.l.b16 %v1290
    %v1333 = vunpack.c.l.b16 %v1291
    %v1334 = vunpack.c.l.b16 %v1292
    %v1335 = vunpack.c.l.b16 %v1293
    %v1336 = vpack.c.b16 %v1316, %v1315
    %v1337 = vpack.c.b16 %v1318, %v1317
    %v1338 = vpack.c.b16 %v1320, %v1319
    %v1339 = vpack.c.b16 %v1322, %v1321
    %v1340 = vpack.c.b16 %v1324, %v1323
    %v1341 = vpack.c.b16 %v1326, %v1325
    %v1342 = vpack.c.b16 %v1328, %v1327
    %v1343 = vpack.c.b16 %v1330, %v1329
    %v1344 = vpack.c.b16 %v1332, %v1331
    %v1345 = vpack.c.b16 %v1334, %v1333
    %v1346 = vpack.c.b16 %v1335, %v1335
    %vm1357 = vcmask 326656
    %v1359 = vsel %vm1357, %v1264, 0
    %v1362 = vsel %vm1357, %v1266, 0
    %v1365 = vsel %vm1357, %v1268, 0
    %v1368 = vsel %vm1357, %v1270, 0
    %v1371 = vsel %vm1357, %v1272, 0
    %vm1373 = vcmask 1043456
    %v1375 = vsel %vm1373, %v1346, 0
    %1377 = vmatpush.bf16.msra.mxu0 %v1343
    %1378 = vmatpush.bf16.msra.mxu0 %v1342
    %1379 = vmatpush.bf16.msra.mxu0 %v1341
    %1380 = vmatpush.bf16.msra.mxu0 %v1340
    %1381 = vmatpush.bf16.msra.mxu0 %v1339
    %1382 = vmatpush.bf16.msra.mxu0 %v1338
    %1383 = vmatpush.bf16.msra.mxu0 %v1337
    %1384 = vmatpush.bf16.msra.mxu0 %v1336
    %1385 = vmatmul.bf16.gmra.mxu0 %v1263
    %v1386 = vpop.f32.mrf.mxu0
    %v1387 = vadd.f32 0.0, %v1386
    %v1388 = vpop.f32.mrf.mxu0
    %v1389 = vadd.f32 0.0, %v1388
    %1390 = vmatmul.bf16.gmra.mxu0 %v1265
    %v1391 = vpop.f32.mrf.mxu0
    %v1392 = vadd.f32 0.0, %v1391
    %v1393 = vpop.f32.mrf.mxu0
    %v1394 = vadd.f32 0.0, %v1393
    %1395 = vmatmul.bf16.gmra.mxu0 %v1267
    %v1396 = vpop.f32.mrf.mxu0
    %v1397 = vadd.f32 0.0, %v1396
    %v1398 = vpop.f32.mrf.mxu0
    %v1399 = vadd.f32 0.0, %v1398
    %1400 = vmatmul.bf16.gmra.mxu0 %v1269
    %v1401 = vpop.f32.mrf.mxu0
    %v1402 = vadd.f32 0.0, %v1401
    %v1403 = vpop.f32.mrf.mxu0
    %v1404 = vadd.f32 0.0, %v1403
    %1405 = vmatmul.bf16.gmra.mxu0 %v1271
    %v1406 = vpop.f32.mrf.mxu0
    %v1407 = vadd.f32 0.0, %v1406
    %v1408 = vpop.f32.mrf.mxu0
    %v1409 = vadd.f32 0.0, %v1408
    %1410 = vdwg.mxu0
    %1411 = vmatpush.bf16.msra.mxu0 0
    %1412 = vmatpush.bf16.msra.mxu0 0
    %1413 = vmatpush.bf16.msra.mxu0 0
    %1414 = vmatpush.bf16.msra.mxu0 0
    %1415 = vmatpush.bf16.msra.mxu0 0
    %1416 = vmatpush.bf16.msra.mxu0 %v1375
    %1417 = vmatpush.bf16.msra.mxu0 %v1345
    %1418 = vmatpush.bf16.msra.mxu0 %v1344
    %1419 = vmatmul.bf16.gmra.mxu0 %v1359
    %v1420 = vpop.f32.mrf.mxu0
    %v1421 = vadd.f32 %v1387, %v1420
    %v1422 = vpop.f32.mrf.mxu0
    %v1423 = vadd.f32 %v1389, %v1422
    %1424 = vmatmul.bf16.gmra.mxu0 %v1362
    %v1425 = vpop.f32.mrf.mxu0
    %v1426 = vadd.f32 %v1392, %v1425
    %v1427 = vpop.f32.mrf.mxu0
    %v1428 = vadd.f32 %v1394, %v1427
    %1429 = vmatmul.bf16.gmra.mxu0 %v1365
    %v1430 = vpop.f32.mrf.mxu0
    %v1431 = vadd.f32 %v1397, %v1430
    %v1432 = vpop.f32.mrf.mxu0
    %v1433 = vadd.f32 %v1399, %v1432
    %1434 = vmatmul.bf16.gmra.mxu0 %v1368
    %v1435 = vpop.f32.mrf.mxu0
    %v1436 = vadd.f32 %v1402, %v1435
    %v1437 = vpop.f32.mrf.mxu0
    %v1438 = vadd.f32 %v1404, %v1437
    %1439 = vmatmul.bf16.gmra.mxu0 %v1371
    %v1440 = vpop.f32.mrf.mxu0
    %v1441 = vadd.f32 %v1407, %v1440
    %v1442 = vpop.f32.mrf.mxu0
    %v1443 = vadd.f32 %v1409, %v1442
    %1444 = vdwg.mxu0
    %s1445 = scalar_lea.vmem [#allocation5], 84
    %v1446 = vld [vmem:[%s1445] sm:$0xf]
    %v1447 = vld [vmem:[%s1445 + $0x4] sm:$0xf]
    %v1448 = vld [vmem:[%s1445 + $0x8] sm:$0xf]
    %v1449 = vld [vmem:[%s1445 + $0xc] sm:$0xf]
    %v1450 = vld [vmem:[%s1445 + $0x10] sm:$0xf]
    %v1451 = vld [vmem:[%s1445 + $0x14] sm:$0xf]
    %v1452 = vld [vmem:[%s1445 + $0x18] sm:$0xf]
    %v1453 = vld [vmem:[%s1445 + $0x1c] sm:$0xf]
    %v1454 = vld [vmem:[%s1445 + $0x20] sm:$0xf]
    %v1455 = vld [vmem:[%s1445 + $0x24] sm:$0xf]
    %v1456 = vld [vmem:[%s1445 + $0x28] sm:$0xf]
    %v1457 = vld [vmem:[%s1445 + $0x2c] sm:$0xf]
    %v1458 = vld [vmem:[%s1445 + $0x30] sm:$0xf]
    %v1459 = vld [vmem:[%s1445 + $0x34] sm:$0xf]
    %v1460 = vld [vmem:[%s1445 + $0x38] sm:$0xf]
    %v1461 = vld [vmem:[%s1445 + $0x3c] sm:$0xf]
    %v1462 = vld [vmem:[%s1445 + $0x40] sm:$0xf]
    %v1463 = vld [vmem:[%s1445 + $0x44] sm:$0xf]
    %v1464 = vld [vmem:[%s1445 + $0x48] sm:$0xf]
    %v1465 = vld [vmem:[%s1445 + $0x4c] sm:$0xf]
    %v1466 = vld [vmem:[%s1445 + $0x50] sm:$0xf]
    %v1488 = vunpack.c.l.b16 %v1446
    %v1489 = vunpack.c.l.b16 %v1447
    %v1490 = vunpack.c.l.b16 %v1448
    %v1491 = vunpack.c.l.b16 %v1449
    %v1492 = vunpack.c.l.b16 %v1450
    %v1493 = vunpack.c.l.b16 %v1451
    %v1494 = vunpack.c.l.b16 %v1452
    %v1495 = vunpack.c.l.b16 %v1453
    %v1496 = vunpack.c.l.b16 %v1454
    %v1497 = vunpack.c.l.b16 %v1455
    %v1498 = vunpack.c.l.b16 %v1456
    %v1499 = vunpack.c.l.b16 %v1457
    %v1500 = vunpack.c.l.b16 %v1458
    %v1501 = vunpack.c.l.b16 %v1459
    %v1502 = vunpack.c.l.b16 %v1460
    %v1503 = vunpack.c.l.b16 %v1461
    %v1504 = vunpack.c.l.b16 %v1462
    %v1505 = vunpack.c.l.b16 %v1463
    %v1506 = vunpack.c.l.b16 %v1464
    %v1507 = vunpack.c.l.b16 %v1465
    %v1508 = vunpack.c.l.b16 %v1466
    %v1509 = vpack.c.b16 %v1489, %v1488
    %v1510 = vpack.c.b16 %v1491, %v1490
    %v1511 = vpack.c.b16 %v1493, %v1492
    %v1512 = vpack.c.b16 %v1495, %v1494
    %v1513 = vpack.c.b16 %v1497, %v1496
    %v1514 = vpack.c.b16 %v1499, %v1498
    %v1515 = vpack.c.b16 %v1501, %v1500
    %v1516 = vpack.c.b16 %v1503, %v1502
    %v1517 = vpack.c.b16 %v1505, %v1504
    %v1518 = vpack.c.b16 %v1507, %v1506
    %v1519 = vpack.c.b16 %v1508, %v1508
    %v1531 = vsel %vm1373, %v1519, 0
    %1533 = vmatpush.bf16.msra.mxu0 %v1516
    %1534 = vmatpush.bf16.msra.mxu0 %v1515
    %1535 = vmatpush.bf16.msra.mxu0 %v1514
    %1536 = vmatpush.bf16.msra.mxu0 %v1513
    %1537 = vmatpush.bf16.msra.mxu0 %v1512
    %1538 = vmatpush.bf16.msra.mxu0 %v1511
    %1539 = vmatpush.bf16.msra.mxu0 %v1510
    %1540 = vmatpush.bf16.msra.mxu0 %v1509
    %1541 = vmatmul.bf16.gmra.mxu0 %v1263
    %v1542 = vpop.f32.mrf.mxu0
    %v1543 = vadd.f32 0.0, %v1542
    %v1544 = vpop.f32.mrf.mxu0
    %v1545 = vadd.f32 0.0, %v1544
    %1546 = vmatmul.bf16.gmra.mxu0 %v1265
    %v1547 = vpop.f32.mrf.mxu0
    %v1548 = vadd.f32 0.0, %v1547
    %v1549 = vpop.f32.mrf.mxu0
    %v1550 = vadd.f32 0.0, %v1549
    %1551 = vmatmul.bf16.gmra.mxu0 %v1267
    %v1552 = vpop.f32.mrf.mxu0
    %v1553 = vadd.f32 0.0, %v1552
    %v1554 = vpop.f32.mrf.mxu0
    %v1555 = vadd.f32 0.0, %v1554
    %1556 = vmatmul.bf16.gmra.mxu0 %v1269
    %v1557 = vpop.f32.mrf.mxu0
    %v1558 = vadd.f32 0.0, %v1557
    %v1559 = vpop.f32.mrf.mxu0
    %v1560 = vadd.f32 0.0, %v1559
    %1561 = vmatmul.bf16.gmra.mxu0 %v1271
    %v1562 = vpop.f32.mrf.mxu0
    %v1563 = vadd.f32 0.0, %v1562
    %v1564 = vpop.f32.mrf.mxu0
    %v1565 = vadd.f32 0.0, %v1564
    %1566 = vdwg.mxu0
    %1567 = vmatpush.bf16.msra.mxu0 0
    %1568 = vmatpush.bf16.msra.mxu0 0
    %1569 = vmatpush.bf16.msra.mxu0 0
    %1570 = vmatpush.bf16.msra.mxu0 0
    %1571 = vmatpush.bf16.msra.mxu0 0
    %1572 = vmatpush.bf16.msra.mxu0 %v1531
    %1573 = vmatpush.bf16.msra.mxu0 %v1518
    %1574 = vmatpush.bf16.msra.mxu0 %v1517
    %1575 = vmatmul.bf16.gmra.mxu0 %v1359
    %v1576 = vpop.f32.mrf.mxu0
    %v1577 = vadd.f32 %v1543, %v1576
    %v1578 = vpop.f32.mrf.mxu0
    %v1579 = vadd.f32 %v1545, %v1578
    %1580 = vmatmul.bf16.gmra.mxu0 %v1362
    %v1581 = vpop.f32.mrf.mxu0
    %v1582 = vadd.f32 %v1548, %v1581
    %v1583 = vpop.f32.mrf.mxu0
    %v1584 = vadd.f32 %v1550, %v1583
    %1585 = vmatmul.bf16.gmra.mxu0 %v1365
    %v1586 = vpop.f32.mrf.mxu0
    %v1587 = vadd.f32 %v1553, %v1586
    %v1588 = vpop.f32.mrf.mxu0
    %v1589 = vadd.f32 %v1555, %v1588
    %1590 = vmatmul.bf16.gmra.mxu0 %v1368
    %v1591 = vpop.f32.mrf.mxu0
    %v1592 = vadd.f32 %v1558, %v1591
    %v1593 = vpop.f32.mrf.mxu0
    %v1594 = vadd.f32 %v1560, %v1593
    %1595 = vmatmul.bf16.gmra.mxu0 %v1371
    %v1596 = vpop.f32.mrf.mxu0
    %v1597 = vadd.f32 %v1563, %v1596
    %v1598 = vpop.f32.mrf.mxu0
    %v1599 = vadd.f32 %v1565, %v1598
    %1600 = vdwg.mxu0
    %v1601 = vmax.f32 %v1421, %v1577
    %v1602 = vmax.f32 %v1423, %v1579
    %v1603 = vmax.f32 %v1426, %v1582
    %v1604 = vmax.f32 %v1428, %v1584
    %v1605 = vmax.f32 %v1431, %v1587
    %v1606 = vmax.f32 %v1433, %v1589
    %v1607 = vmax.f32 %v1436, %v1592
    %v1608 = vmax.f32 %v1438, %v1594
    %v1609 = vmax.f32 %v1441, %v1597
    %v1610 = vmax.f32 %v1443, %v1599
    %v1611 = vpack.c.bf16 %v1601, %v1601
    %v1612 = vpack.c.bf16 %v1602, %v1602
    %v1613 = vpack.c.bf16 %v1603, %v1603
    %v1614 = vpack.c.bf16 %v1604, %v1604
    %v1615 = vpack.c.bf16 %v1605, %v1605
    %v1616 = vpack.c.bf16 %v1606, %v1606
    %v1617 = vpack.c.bf16 %v1607, %v1607
    %v1618 = vpack.c.bf16 %v1608, %v1608
    %v1619 = vpack.c.bf16 %v1609, %v1609
    %v1620 = vpack.c.bf16 %v1610, %v1610
    %v1621 = vld [vmem:[#allocation7] sm:$0xff]
    %v1622 = vld [vmem:[#allocation7 + $0x8] sm:$0xff]
    %v1623 = vld [vmem:[#allocation7 + $0x10] sm:$0xff]
    %v1624 = vld [vmem:[#allocation7 + $0x18] sm:$0xff]
    %v1625 = vld [vmem:[#allocation7 + $0x20] sm:$0xff]
    %v1626 = vld [vmem:[#allocation7 + $0x28] sm:$0xff]
    %v1627 = vld [vmem:[#allocation7 + $0x30] sm:$0xff]
    %v1628 = vld [vmem:[#allocation7 + $0x38] sm:$0xff]
    %v1629 = vld [vmem:[#allocation7 + $0x40] sm:$0xff]
    %v1630 = vld [vmem:[#allocation7 + $0x48] sm:$0xff]
    %v1631 = vld [vmem:[#allocation7 + $0x50] sm:$0x33]
    %v1632 = vld [vmem:[%s6] sm:$0x3]
    %v1634 = vperm.slane %v1632, 0
    %v1635 = vperm.slane %v1632, 1
    %v1647 = vunpack.c.l.b16 %v1611
    %v1648 = vunpack.c.l.b16 %v1612
    %v1649 = vunpack.c.l.b16 %v1613
    %v1650 = vunpack.c.l.b16 %v1614
    %v1651 = vunpack.c.l.b16 %v1615
    %v1652 = vunpack.c.l.b16 %v1616
    %v1653 = vunpack.c.l.b16 %v1617
    %v1654 = vunpack.c.l.b16 %v1618
    %v1655 = vunpack.c.l.b16 %v1619
    %v1656 = vpack.c.b16 %v1648, %v1647
    %v1657 = vpack.c.b16 %v1650, %v1649
    %v1658 = vpack.c.b16 %v1652, %v1651
    %v1659 = vpack.c.b16 %v1654, %v1653
    %v1660 = vpack.c.b16 %v1655, %v1655
    %v1672 = vunpack.c.l.b16 %v1621
    %v1673 = vunpack.c.h.b16 %v1621
    %v1674 = vunpack.c.l.b16 %v1622
    %v1675 = vunpack.c.h.b16 %v1622
    %v1676 = vunpack.c.l.b16 %v1623
    %v1677 = vunpack.c.h.b16 %v1623
    %v1678 = vunpack.c.l.b16 %v1624
    %v1679 = vunpack.c.h.b16 %v1624
    %v1680 = vunpack.c.l.b16 %v1625
    %v1681 = vunpack.c.h.b16 %v1625
    %v1682 = vunpack.c.l.b16 %v1626
    %v1683 = vunpack.c.h.b16 %v1626
    %v1684 = vunpack.c.l.b16 %v1627
    %v1685 = vunpack.c.h.b16 %v1627
    %v1686 = vunpack.c.l.b16 %v1628
    %v1687 = vunpack.c.h.b16 %v1628
    %v1688 = vunpack.c.l.b16 %v1629
    %v1689 = vunpack.c.h.b16 %v1629
    %v1690 = vunpack.c.l.b16 %v1630
    %v1691 = vunpack.c.h.b16 %v1630
    %v1692 = vunpack.c.l.b16 %v1631
    %v1693 = vunpack.c.h.b16 %v1631
    %v1694 = vpack.c.b16 %v1674, %v1672
    %v1695 = vpack.c.b16 %v1675, %v1673
    %v1696 = vpack.c.b16 %v1678, %v1676
    %v1697 = vpack.c.b16 %v1679, %v1677
    %v1698 = vpack.c.b16 %v1682, %v1680
    %v1699 = vpack.c.b16 %v1683, %v1681
    %v1700 = vpack.c.b16 %v1686, %v1684
    %v1701 = vpack.c.b16 %v1687, %v1685
    %v1702 = vpack.c.b16 %v1690, %v1688
    %v1703 = vpack.c.b16 %v1691, %v1689
    %v1704 = vpack.c.b16 %v1692, %v1692
    %v1705 = vpack.c.b16 %v1693, %v1693
    %vm1716 = vcmask 687104
    %v1718 = vsel %vm1716, %v1656, 0
    %v1721 = vsel %vm1716, %v1657, 0
    %v1724 = vsel %vm1716, %v1658, 0
    %v1727 = vsel %vm1716, %v1659, 0
    %v1730 = vsel %vm1716, %v1660, 0
    %vm1732 = vcmask 1041408
    %v1734 = vsel %vm1732, %v1704, 0
    %v1737 = vsel %vm1732, %v1705, 0
    %1739 = vmatpush.bf16.msra.mxu0 0
    %1740 = vmatpush.bf16.msra.mxu0 0
    %1741 = vmatpush.bf16.msra.mxu0 %v1734
    %1742 = vmatpush.bf16.msra.mxu0 %v1702
    %1743 = vmatpush.bf16.msra.mxu0 %v1700
    %1744 = vmatpush.bf16.msra.mxu0 %v1698
    %1745 = vmatpush.bf16.msra.mxu0 %v1696
    %1746 = vmatpush.bf16.msra.mxu0 %v1694
    %1747 = vmatmul.bf16.gmra.mxu0 %v1718
    %v1748 = vpop.f32.mrf.mxu0
    %v1749 = vadd.f32 %v1634, %v1748
    %v1750 = vpop.f32.mrf.mxu0
    %v1751 = vadd.f32 %v1634, %v1750
    %1752 = vmatmul.bf16.gmra.mxu0 %v1721
    %v1753 = vpop.f32.mrf.mxu0
    %v1754 = vadd.f32 %v1634, %v1753
    %v1755 = vpop.f32.mrf.mxu0
    %v1756 = vadd.f32 %v1634, %v1755
    %1757 = vmatmul.bf16.gmra.mxu0 %v1724
    %v1758 = vpop.f32.mrf.mxu0
    %v1759 = vadd.f32 %v1634, %v1758
    %v1760 = vpop.f32.mrf.mxu0
    %v1761 = vadd.f32 %v1634, %v1760
    %1762 = vmatmul.bf16.gmra.mxu0 %v1727
    %v1763 = vpop.f32.mrf.mxu0
    %v1764 = vadd.f32 %v1634, %v1763
    %v1765 = vpop.f32.mrf.mxu0
    %v1766 = vadd.f32 %v1634, %v1765
    %1767 = vmatmul.bf16.gmra.mxu0 %v1730
    %v1768 = vpop.f32.mrf.mxu0
    %v1769 = vadd.f32 %v1634, %v1768
    %v1770 = vpop.f32.mrf.mxu0
    %1771 = vdwg.mxu0
    %1772 = vmatpush.bf16.msra.mxu0 0
    %1773 = vmatpush.bf16.msra.mxu0 0
    %1774 = vmatpush.bf16.msra.mxu0 %v1737
    %1775 = vmatpush.bf16.msra.mxu0 %v1703
    %1776 = vmatpush.bf16.msra.mxu0 %v1701
    %1777 = vmatpush.bf16.msra.mxu0 %v1699
    %1778 = vmatpush.bf16.msra.mxu0 %v1697
    %1779 = vmatpush.bf16.msra.mxu0 %v1695
    %1780 = vmatmul.bf16.gmra.mxu0 %v1718
    %v1781 = vpop.f32.mrf.mxu0
    %v1782 = vadd.f32 %v1635, %v1781
    %v1783 = vpop.f32.mrf.mxu0
    %v1784 = vadd.f32 %v1635, %v1783
    %1785 = vmatmul.bf16.gmra.mxu0 %v1721
    %v1786 = vpop.f32.mrf.mxu0
    %v1787 = vadd.f32 %v1635, %v1786
    %v1788 = vpop.f32.mrf.mxu0
    %v1789 = vadd.f32 %v1635, %v1788
    %1790 = vmatmul.bf16.gmra.mxu0 %v1724
    %v1791 = vpop.f32.mrf.mxu0
    %v1792 = vadd.f32 %v1635, %v1791
    %v1793 = vpop.f32.mrf.mxu0
    %v1794 = vadd.f32 %v1635, %v1793
    %1795 = vmatmul.bf16.gmra.mxu0 %v1727
    %v1796 = vpop.f32.mrf.mxu0
    %v1797 = vadd.f32 %v1635, %v1796
    %v1798 = vpop.f32.mrf.mxu0
    %v1799 = vadd.f32 %v1635, %v1798
    %1800 = vmatmul.bf16.gmra.mxu0 %v1730
    %v1801 = vpop.f32.mrf.mxu0
    %v1802 = vadd.f32 %v1635, %v1801
    %v1803 = vpop.f32.mrf.mxu0
    %1804 = vdwg.mxu0
    %s1805 = scalar_lea.vmem [#allocation7], 88
    %v1806 = vld [vmem:[%s1805] sm:$0xff]
    %v1807 = vld [vmem:[%s1805 + $0x8] sm:$0xff]
    %v1808 = vld [vmem:[%s1805 + $0x10] sm:$0xff]
    %v1809 = vld [vmem:[%s1805 + $0x18] sm:$0xff]
    %v1810 = vld [vmem:[%s1805 + $0x20] sm:$0xff]
    %v1811 = vld [vmem:[%s1805 + $0x28] sm:$0xff]
    %v1812 = vld [vmem:[%s1805 + $0x30] sm:$0xff]
    %v1813 = vld [vmem:[%s1805 + $0x38] sm:$0xff]
    %v1814 = vld [vmem:[%s1805 + $0x40] sm:$0xff]
    %v1815 = vld [vmem:[%s1805 + $0x48] sm:$0xff]
    %v1816 = vld [vmem:[%s1805 + $0x50] sm:$0x33]
    %v1817 = vrot.slane %v1656, 1
    %v1818 = vrot.slane %v1657, 1
    %v1819 = vsel %vm571, %v1817, %v1818
    %v1820 = vrot.slane %v1658, 1
    %v1821 = vsel %vm571, %v1818, %v1820
    %v1822 = vrot.slane %v1659, 1
    %v1823 = vsel %vm571, %v1820, %v1822
    %v1824 = vrot.slane %v1660, 1
    %v1825 = vsel %vm571, %v1822, %v1824
    %v1837 = vunpack.c.l.b16 %v1806
    %v1838 = vunpack.c.h.b16 %v1806
    %v1839 = vunpack.c.l.b16 %v1807
    %v1840 = vunpack.c.h.b16 %v1807
    %v1841 = vunpack.c.l.b16 %v1808
    %v1842 = vunpack.c.h.b16 %v1808
    %v1843 = vunpack.c.l.b16 %v1809
    %v1844 = vunpack.c.h.b16 %v1809
    %v1845 = vunpack.c.l.b16 %v1810
    %v1846 = vunpack.c.h.b16 %v1810
    %v1847 = vunpack.c.l.b16 %v1811
    %v1848 = vunpack.c.h.b16 %v1811
    %v1849 = vunpack.c.l.b16 %v1812
    %v1850 = vunpack.c.h.b16 %v1812
    %v1851 = vunpack.c.l.b16 %v1813
    %v1852 = vunpack.c.h.b16 %v1813
    %v1853 = vunpack.c.l.b16 %v1814
    %v1854 = vunpack.c.h.b16 %v1814
    %v1855 = vunpack.c.l.b16 %v1815
    %v1856 = vunpack.c.h.b16 %v1815
    %v1857 = vunpack.c.l.b16 %v1816
    %v1858 = vunpack.c.h.b16 %v1816
    %v1859 = vpack.c.b16 %v1839, %v1837
    %v1860 = vpack.c.b16 %v1840, %v1838
    %v1861 = vpack.c.b16 %v1843, %v1841
    %v1862 = vpack.c.b16 %v1844, %v1842
    %v1863 = vpack.c.b16 %v1847, %v1845
    %v1864 = vpack.c.b16 %v1848, %v1846
    %v1865 = vpack.c.b16 %v1851, %v1849
    %v1866 = vpack.c.b16 %v1852, %v1850
    %v1867 = vpack.c.b16 %v1855, %v1853
    %v1868 = vpack.c.b16 %v1856, %v1854
    %v1869 = vpack.c.b16 %v1857, %v1857
    %v1870 = vpack.c.b16 %v1858, %v1858
    %v1882 = vsel %vm1716, %v1819, 0
    %v1885 = vsel %vm1716, %v1821, 0
    %v1888 = vsel %vm1716, %v1823, 0
    %v1891 = vsel %vm1716, %v1825, 0
    %v1894 = vsel %vm1716, %v1824, 0
    %v1897 = vsel %vm1732, %v1869, 0
    %v1900 = vsel %vm1732, %v1870, 0
    %1902 = vmatpush.bf16.msra.mxu0 0
    %1903 = vmatpush.bf16.msra.mxu0 0
    %1904 = vmatpush.bf16.msra.mxu0 %v1897
    %1905 = vmatpush.bf16.msra.mxu0 %v1867
    %1906 = vmatpush.bf16.msra.mxu0 %v1865
    %1907 = vmatpush.bf16.msra.mxu0 %v1863
    %1908 = vmatpush.bf16.msra.mxu0 %v1861
    %1909 = vmatpush.bf16.msra.mxu0 %v1859
    %1910 = vmatmul.bf16.gmra.mxu0 %v1882
    %v1911 = vpop.f32.mrf.mxu0
    %v1912 = vadd.f32 0.0, %v1911
    %v1913 = vpop.f32.mrf.mxu0
    %v1914 = vadd.f32 0.0, %v1913
    %1915 = vmatmul.bf16.gmra.mxu0 %v1885
    %v1916 = vpop.f32.mrf.mxu0
    %v1917 = vadd.f32 0.0, %v1916
    %v1918 = vpop.f32.mrf.mxu0
    %v1919 = vadd.f32 0.0, %v1918
    %1920 = vmatmul.bf16.gmra.mxu0 %v1888
    %v1921 = vpop.f32.mrf.mxu0
    %v1922 = vadd.f32 0.0, %v1921
    %v1923 = vpop.f32.mrf.mxu0
    %v1924 = vadd.f32 0.0, %v1923
    %1925 = vmatmul.bf16.gmra.mxu0 %v1891
    %v1926 = vpop.f32.mrf.mxu0
    %v1927 = vadd.f32 0.0, %v1926
    %v1928 = vpop.f32.mrf.mxu0
    %v1929 = vadd.f32 0.0, %v1928
    %1930 = vmatmul.bf16.gmra.mxu0 %v1894
    %v1931 = vpop.f32.mrf.mxu0
    %v1932 = vadd.f32 0.0, %v1931
    %v1933 = vpop.f32.mrf.mxu0
    %1934 = vdwg.mxu0
    %1935 = vmatpush.bf16.msra.mxu0 0
    %1936 = vmatpush.bf16.msra.mxu0 0
    %1937 = vmatpush.bf16.msra.mxu0 %v1900
    %1938 = vmatpush.bf16.msra.mxu0 %v1868
    %1939 = vmatpush.bf16.msra.mxu0 %v1866
    %1940 = vmatpush.bf16.msra.mxu0 %v1864
    %1941 = vmatpush.bf16.msra.mxu0 %v1862
    %1942 = vmatpush.bf16.msra.mxu0 %v1860
    %1943 = vmatmul.bf16.gmra.mxu0 %v1882
    %v1944 = vpop.f32.mrf.mxu0
    %v1945 = vadd.f32 0.0, %v1944
    %v1946 = vpop.f32.mrf.mxu0
    %v1947 = vadd.f32 0.0, %v1946
    %1948 = vmatmul.bf16.gmra.mxu0 %v1885
    %v1949 = vpop.f32.mrf.mxu0
    %v1950 = vadd.f32 0.0, %v1949
    %v1951 = vpop.f32.mrf.mxu0
    %v1952 = vadd.f32 0.0, %v1951
    %1953 = vmatmul.bf16.gmra.mxu0 %v1888
    %v1954 = vpop.f32.mrf.mxu0
    %v1955 = vadd.f32 0.0, %v1954
    %v1956 = vpop.f32.mrf.mxu0
    %v1957 = vadd.f32 0.0, %v1956
    %1958 = vmatmul.bf16.gmra.mxu0 %v1891
    %v1959 = vpop.f32.mrf.mxu0
    %v1960 = vadd.f32 0.0, %v1959
    %v1961 = vpop.f32.mrf.mxu0
    %v1962 = vadd.f32 0.0, %v1961
    %1963 = vmatmul.bf16.gmra.mxu0 %v1894
    %v1964 = vpop.f32.mrf.mxu0
    %v1965 = vadd.f32 0.0, %v1964
    %v1966 = vpop.f32.mrf.mxu0
    %1967 = vdwg.mxu0
    %v1968 = vadd.f32 %v1749, %v1912
    %v1969 = vadd.f32 %v1782, %v1945
    %v1970 = vadd.f32 %v1751, %v1914
    %v1971 = vadd.f32 %v1784, %v1947
    %v1972 = vadd.f32 %v1754, %v1917
    %v1973 = vadd.f32 %v1787, %v1950
    %v1974 = vadd.f32 %v1756, %v1919
    %v1975 = vadd.f32 %v1789, %v1952
    %v1976 = vadd.f32 %v1759, %v1922
    %v1977 = vadd.f32 %v1792, %v1955
    %v1978 = vadd.f32 %v1761, %v1924
    %v1979 = vadd.f32 %v1794, %v1957
    %v1980 = vadd.f32 %v1764, %v1927
    %v1981 = vadd.f32 %v1797, %v1960
    %v1982 = vadd.f32 %v1766, %v1929
    %v1983 = vadd.f32 %v1799, %v1962
    %v1984 = vadd.f32 %v1769, %v1932
    %v1985 = vadd.f32 %v1802, %v1965
    %s1986 = scalar_lea.vmem [#allocation7], 176
    %v1987 = vld [vmem:[%s1986] sm:$0xff]
    %v1988 = vld [vmem:[%s1986 + $0x8] sm:$0xff]
    %v1989 = vld [vmem:[%s1986 + $0x10] sm:$0xff]
    %v1990 = vld [vmem:[%s1986 + $0x18] sm:$0xff]
    %v1991 = vld [vmem:[%s1986 + $0x20] sm:$0xff]
    %v1992 = vld [vmem:[%s1986 + $0x28] sm:$0xff]
    %v1993 = vld [vmem:[%s1986 + $0x30] sm:$0xff]
    %v1994 = vld [vmem:[%s1986 + $0x38] sm:$0xff]
    %v1995 = vld [vmem:[%s1986 + $0x40] sm:$0xff]
    %v1996 = vld [vmem:[%s1986 + $0x48] sm:$0xff]
    %v1997 = vld [vmem:[%s1986 + $0x50] sm:$0x33]
    %v1998 = vrot.slane %v1656, 2
    %v1999 = vrot.slane %v1657, 2
    %v2000 = vsel %vm971, %v1998, %v1999
    %v2001 = vrot.slane %v1658, 2
    %v2002 = vsel %vm971, %v1999, %v2001
    %v2003 = vrot.slane %v1659, 2
    %v2004 = vsel %vm971, %v2001, %v2003
    %v2005 = vrot.slane %v1660, 2
    %v2006 = vsel %vm971, %v2003, %v2005
    %v2018 = vunpack.c.l.b16 %v1987
    %v2019 = vunpack.c.h.b16 %v1987
    %v2020 = vunpack.c.l.b16 %v1988
    %v2021 = vunpack.c.h.b16 %v1988
    %v2022 = vunpack.c.l.b16 %v1989
    %v2023 = vunpack.c.h.b16 %v1989
    %v2024 = vunpack.c.l.b16 %v1990
    %v2025 = vunpack.c.h.b16 %v1990
    %v2026 = vunpack.c.l.b16 %v1991
    %v2027 = vunpack.c.h.b16 %v1991
    %v2028 = vunpack.c.l.b16 %v1992
    %v2029 = vunpack.c.h.b16 %v1992
    %v2030 = vunpack.c.l.b16 %v1993
    %v2031 = vunpack.c.h.b16 %v1993
    %v2032 = vunpack.c.l.b16 %v1994
    %v2033 = vunpack.c.h.b16 %v1994
    %v2034 = vunpack.c.l.b16 %v1995
    %v2035 = vunpack.c.h.b16 %v1995
    %v2036 = vunpack.c.l.b16 %v1996
    %v2037 = vunpack.c.h.b16 %v1996
    %v2038 = vunpack.c.l.b16 %v1997
    %v2039 = vunpack.c.h.b16 %v1997
    %v2040 = vpack.c.b16 %v2020, %v2018
    %v2041 = vpack.c.b16 %v2021, %v2019
    %v2042 = vpack.c.b16 %v2024, %v2022
    %v2043 = vpack.c.b16 %v2025, %v2023
    %v2044 = vpack.c.b16 %v2028, %v2026
    %v2045 = vpack.c.b16 %v2029, %v2027
    %v2046 = vpack.c.b16 %v2032, %v2030
    %v2047 = vpack.c.b16 %v2033, %v2031
    %v2048 = vpack.c.b16 %v2036, %v2034
    %v2049 = vpack.c.b16 %v2037, %v2035
    %v2050 = vpack.c.b16 %v2038, %v2038
    %v2051 = vpack.c.b16 %v2039, %v2039
    %v2063 = vsel %vm1716, %v2000, 0
    %v2066 = vsel %vm1716, %v2002, 0
    %v2069 = vsel %vm1716, %v2004, 0
    %v2072 = vsel %vm1716, %v2006, 0
    %v2075 = vsel %vm1716, %v2005, 0
    %v2078 = vsel %vm1732, %v2050, 0
    %v2081 = vsel %vm1732, %v2051, 0
    %2083 = vmatpush.bf16.msra.mxu0 0
    %2084 = vmatpush.bf16.msra.mxu0 0
    %2085 = vmatpush.bf16.msra.mxu0 %v2078
    %2086 = vmatpush.bf16.msra.mxu0 %v2048
    %2087 = vmatpush.bf16.msra.mxu0 %v2046
    %2088 = vmatpush.bf16.msra.mxu0 %v2044
    %2089 = vmatpush.bf16.msra.mxu0 %v2042
    %2090 = vmatpush.bf16.msra.mxu0 %v2040
    %2091 = vmatmul.bf16.gmra.mxu0 %v2063
    %v2092 = vpop.f32.mrf.mxu0
    %v2093 = vadd.f32 0.0, %v2092
    %v2094 = vpop.f32.mrf.mxu0
    %v2095 = vadd.f32 0.0, %v2094
    %2096 = vmatmul.bf16.gmra.mxu0 %v2066
    %v2097 = vpop.f32.mrf.mxu0
    %v2098 = vadd.f32 0.0, %v2097
    %v2099 = vpop.f32.mrf.mxu0
    %v2100 = vadd.f32 0.0, %v2099
    %2101 = vmatmul.bf16.gmra.mxu0 %v2069
    %v2102 = vpop.f32.mrf.mxu0
    %v2103 = vadd.f32 0.0, %v2102
    %v2104 = vpop.f32.mrf.mxu0
    %v2105 = vadd.f32 0.0, %v2104
    %2106 = vmatmul.bf16.gmra.mxu0 %v2072
    %v2107 = vpop.f32.mrf.mxu0
    %v2108 = vadd.f32 0.0, %v2107
    %v2109 = vpop.f32.mrf.mxu0
    %v2110 = vadd.f32 0.0, %v2109
    %2111 = vmatmul.bf16.gmra.mxu0 %v2075
    %v2112 = vpop.f32.mrf.mxu0
    %v2113 = vadd.f32 0.0, %v2112
    %v2114 = vpop.f32.mrf.mxu0
    %2115 = vdwg.mxu0
    %2116 = vmatpush.bf16.msra.mxu0 0
    %2117 = vmatpush.bf16.msra.mxu0 0
    %2118 = vmatpush.bf16.msra.mxu0 %v2081
    %2119 = vmatpush.bf16.msra.mxu0 %v2049
    %2120 = vmatpush.bf16.msra.mxu0 %v2047
    %2121 = vmatpush.bf16.msra.mxu0 %v2045
    %2122 = vmatpush.bf16.msra.mxu0 %v2043
    %2123 = vmatpush.bf16.msra.mxu0 %v2041
    %2124 = vmatmul.bf16.gmra.mxu0 %v2063
    %v2125 = vpop.f32.mrf.mxu0
    %v2126 = vadd.f32 0.0, %v2125
    %v2127 = vpop.f32.mrf.mxu0
    %v2128 = vadd.f32 0.0, %v2127
    %2129 = vmatmul.bf16.gmra.mxu0 %v2066
    %v2130 = vpop.f32.mrf.mxu0
    %v2131 = vadd.f32 0.0, %v2130
    %v2132 = vpop.f32.mrf.mxu0
    %v2133 = vadd.f32 0.0, %v2132
    %2134 = vmatmul.bf16.gmra.mxu0 %v2069
    %v2135 = vpop.f32.mrf.mxu0
    %v2136 = vadd.f32 0.0, %v2135
    %v2137 = vpop.f32.mrf.mxu0
    %v2138 = vadd.f32 0.0, %v2137
    %2139 = vmatmul.bf16.gmra.mxu0 %v2072
    %v2140 = vpop.f32.mrf.mxu0
    %v2141 = vadd.f32 0.0, %v2140
    %v2142 = vpop.f32.mrf.mxu0
    %v2143 = vadd.f32 0.0, %v2142
    %2144 = vmatmul.bf16.gmra.mxu0 %v2075
    %v2145 = vpop.f32.mrf.mxu0
    %v2146 = vadd.f32 0.0, %v2145
    %v2147 = vpop.f32.mrf.mxu0
    %2148 = vdwg.mxu0
    %v2149 = vadd.f32 %v1968, %v2093
    %v2150 = vadd.f32 %v1969, %v2126
    %v2151 = vadd.f32 %v1970, %v2095
    %v2152 = vadd.f32 %v1971, %v2128
    %v2153 = vadd.f32 %v1972, %v2098
    %v2154 = vadd.f32 %v1973, %v2131
    %v2155 = vadd.f32 %v1974, %v2100
    %v2156 = vadd.f32 %v1975, %v2133
    %v2157 = vadd.f32 %v1976, %v2103
    %v2158 = vadd.f32 %v1977, %v2136
    %v2159 = vadd.f32 %v1978, %v2105
    %v2160 = vadd.f32 %v1979, %v2138
    %v2161 = vadd.f32 %v1980, %v2108
    %v2162 = vadd.f32 %v1981, %v2141
    %v2163 = vadd.f32 %v1982, %v2110
    %v2164 = vadd.f32 %v1983, %v2143
    %v2165 = vadd.f32 %v1984, %v2113
    %v2166 = vadd.f32 %v1985, %v2146
    %s2167 = scalar_lea.vmem [#allocation7], 264
    %v2168 = vld [vmem:[%s2167] sm:$0xff]
    %v2169 = vld [vmem:[%s2167 + $0x8] sm:$0xff]
    %v2170 = vld [vmem:[%s2167 + $0x10] sm:$0xff]
    %v2171 = vld [vmem:[%s2167 + $0x18] sm:$0xff]
    %v2172 = vld [vmem:[%s2167 + $0x20] sm:$0xff]
    %v2173 = vld [vmem:[%s2167 + $0x28] sm:$0xff]
    %v2174 = vld [vmem:[%s2167 + $0x30] sm:$0xff]
    %v2175 = vld [vmem:[%s2167 + $0x38] sm:$0xff]
    %v2176 = vld [vmem:[%s2167 + $0x40] sm:$0xff]
    %v2177 = vld [vmem:[%s2167 + $0x48] sm:$0xff]
    %v2178 = vld [vmem:[%s2167 + $0x50] sm:$0x33]
    %v2180 = vunpack.c.l.b16 %v1620
    %v2181 = vpack.c.b16 %v2180, %v1655
    %vm2182 = vcmask 1044480
    %v2183 = vrot.slane %v1656, 3
    %v2184 = vrot.slane %v1657, 3
    %v2185 = vsel %vm2182, %v2183, %v2184
    %v2186 = vrot.slane %v1658, 3
    %v2187 = vsel %vm2182, %v2184, %v2186
    %v2188 = vrot.slane %v1659, 3
    %v2189 = vsel %vm2182, %v2186, %v2188
    %v2190 = vrot.slane %v2181, 3
    %v2191 = vsel %vm2182, %v2188, %v2190
    %v2203 = vunpack.c.l.b16 %v2168
    %v2204 = vunpack.c.h.b16 %v2168
    %v2205 = vunpack.c.l.b16 %v2169
    %v2206 = vunpack.c.h.b16 %v2169
    %v2207 = vunpack.c.l.b16 %v2170
    %v2208 = vunpack.c.h.b16 %v2170
    %v2209 = vunpack.c.l.b16 %v2171
    %v2210 = vunpack.c.h.b16 %v2171
    %v2211 = vunpack.c.l.b16 %v2172
    %v2212 = vunpack.c.h.b16 %v2172
    %v2213 = vunpack.c.l.b16 %v2173
    %v2214 = vunpack.c.h.b16 %v2173
    %v2215 = vunpack.c.l.b16 %v2174
    %v2216 = vunpack.c.h.b16 %v2174
    %v2217 = vunpack.c.l.b16 %v2175
    %v2218 = vunpack.c.h.b16 %v2175
    %v2219 = vunpack.c.l.b16 %v2176
    %v2220 = vunpack.c.h.b16 %v2176
    %v2221 = vunpack.c.l.b16 %v2177
    %v2222 = vunpack.c.h.b16 %v2177
    %v2223 = vunpack.c.l.b16 %v2178
    %v2224 = vunpack.c.h.b16 %v2178
    %v2225 = vpack.c.b16 %v2205, %v2203
    %v2226 = vpack.c.b16 %v2206, %v2204
    %v2227 = vpack.c.b16 %v2209, %v2207
    %v2228 = vpack.c.b16 %v2210, %v2208
    %v2229 = vpack.c.b16 %v2213, %v2211
    %v2230 = vpack.c.b16 %v2214, %v2212
    %v2231 = vpack.c.b16 %v2217, %v2215
    %v2232 = vpack.c.b16 %v2218, %v2216
    %v2233 = vpack.c.b16 %v2221, %v2219
    %v2234 = vpack.c.b16 %v2222, %v2220
    %v2235 = vpack.c.b16 %v2223, %v2223
    %v2236 = vpack.c.b16 %v2224, %v2224
    %v2248 = vsel %vm1716, %v2185, 0
    %v2251 = vsel %vm1716, %v2187, 0
    %v2254 = vsel %vm1716, %v2189, 0
    %v2257 = vsel %vm1716, %v2191, 0
    %v2260 = vsel %vm1716, %v2190, 0
    %v2263 = vsel %vm1732, %v2235, 0
    %v2266 = vsel %vm1732, %v2236, 0
    %2268 = vmatpush.bf16.msra.mxu0 0
    %2269 = vmatpush.bf16.msra.mxu0 0
    %2270 = vmatpush.bf16.msra.mxu0 %v2263
    %2271 = vmatpush.bf16.msra.mxu0 %v2233
    %2272 = vmatpush.bf16.msra.mxu0 %v2231
    %2273 = vmatpush.bf16.msra.mxu0 %v2229
    %2274 = vmatpush.bf16.msra.mxu0 %v2227
    %2275 = vmatpush.bf16.msra.mxu0 %v2225
    %2276 = vmatmul.bf16.gmra.mxu0 %v2248
    %v2277 = vpop.f32.mrf.mxu0
    %v2278 = vadd.f32 0.0, %v2277
    %v2279 = vpop.f32.mrf.mxu0
    %v2280 = vadd.f32 0.0, %v2279
    %2281 = vmatmul.bf16.gmra.mxu0 %v2251
    %v2282 = vpop.f32.mrf.mxu0
    %v2283 = vadd.f32 0.0, %v2282
    %v2284 = vpop.f32.mrf.mxu0
    %v2285 = vadd.f32 0.0, %v2284
    %2286 = vmatmul.bf16.gmra.mxu0 %v2254
    %v2287 = vpop.f32.mrf.mxu0
    %v2288 = vadd.f32 0.0, %v2287
    %v2289 = vpop.f32.mrf.mxu0
    %v2290 = vadd.f32 0.0, %v2289
    %2291 = vmatmul.bf16.gmra.mxu0 %v2257
    %v2292 = vpop.f32.mrf.mxu0
    %v2293 = vadd.f32 0.0, %v2292
    %v2294 = vpop.f32.mrf.mxu0
    %v2295 = vadd.f32 0.0, %v2294
    %2296 = vmatmul.bf16.gmra.mxu0 %v2260
    %v2297 = vpop.f32.mrf.mxu0
    %v2298 = vadd.f32 0.0, %v2297
    %v2299 = vpop.f32.mrf.mxu0
    %2300 = vdwg.mxu0
    %2301 = vmatpush.bf16.msra.mxu0 0
    %2302 = vmatpush.bf16.msra.mxu0 0
    %2303 = vmatpush.bf16.msra.mxu0 %v2266
    %2304 = vmatpush.bf16.msra.mxu0 %v2234
    %2305 = vmatpush.bf16.msra.mxu0 %v2232
    %2306 = vmatpush.bf16.msra.mxu0 %v2230
    %2307 = vmatpush.bf16.msra.mxu0 %v2228
    %2308 = vmatpush.bf16.msra.mxu0 %v2226
    %2309 = vmatmul.bf16.gmra.mxu0 %v2248
    %v2310 = vpop.f32.mrf.mxu0
    %v2311 = vadd.f32 0.0, %v2310
    %v2312 = vpop.f32.mrf.mxu0
    %v2313 = vadd.f32 0.0, %v2312
    %2314 = vmatmul.bf16.gmra.mxu0 %v2251
    %v2315 = vpop.f32.mrf.mxu0
    %v2316 = vadd.f32 0.0, %v2315
    %v2317 = vpop.f32.mrf.mxu0
    %v2318 = vadd.f32 0.0, %v2317
    %2319 = vmatmul.bf16.gmra.mxu0 %v2254
    %v2320 = vpop.f32.mrf.mxu0
    %v2321 = vadd.f32 0.0, %v2320
    %v2322 = vpop.f32.mrf.mxu0
    %v2323 = vadd.f32 0.0, %v2322
    %2324 = vmatmul.bf16.gmra.mxu0 %v2257
    %v2325 = vpop.f32.mrf.mxu0
    %v2326 = vadd.f32 0.0, %v2325
    %v2327 = vpop.f32.mrf.mxu0
    %v2328 = vadd.f32 0.0, %v2327
    %2329 = vmatmul.bf16.gmra.mxu0 %v2260
    %v2330 = vpop.f32.mrf.mxu0
    %v2331 = vadd.f32 0.0, %v2330
    %v2332 = vpop.f32.mrf.mxu0
    %2333 = vdwg.mxu0
    %v2334 = vadd.f32 %v2149, %v2278
    %v2335 = vadd.f32 %v2150, %v2311
    %v2336 = vadd.f32 %v2151, %v2280
    %v2337 = vadd.f32 %v2152, %v2313
    %v2338 = vadd.f32 %v2153, %v2283
    %v2339 = vadd.f32 %v2154, %v2316
    %v2340 = vadd.f32 %v2155, %v2285
    %v2341 = vadd.f32 %v2156, %v2318
    %v2342 = vadd.f32 %v2157, %v2288
    %v2343 = vadd.f32 %v2158, %v2321
    %v2344 = vadd.f32 %v2159, %v2290
    %v2345 = vadd.f32 %v2160, %v2323
    %v2346 = vadd.f32 %v2161, %v2293
    %v2347 = vadd.f32 %v2162, %v2326
    %v2348 = vadd.f32 %v2163, %v2295
    %v2349 = vadd.f32 %v2164, %v2328
    %v2350 = vadd.f32 %v2165, %v2298
    %v2351 = vadd.f32 %v2166, %v2331
    %s2352 = scalar_lea.vmem [#allocation7], 352
    %v2353 = vld [vmem:[%s2352] sm:$0xff]
    %v2354 = vld [vmem:[%s2352 + $0x8] sm:$0xff]
    %v2355 = vld [vmem:[%s2352 + $0x10] sm:$0xff]
    %v2356 = vld [vmem:[%s2352 + $0x18] sm:$0xff]
    %v2357 = vld [vmem:[%s2352 + $0x20] sm:$0xff]
    %v2358 = vld [vmem:[%s2352 + $0x28] sm:$0xff]
    %v2359 = vld [vmem:[%s2352 + $0x30] sm:$0xff]
    %v2360 = vld [vmem:[%s2352 + $0x38] sm:$0xff]
    %v2361 = vld [vmem:[%s2352 + $0x40] sm:$0xff]
    %v2362 = vld [vmem:[%s2352 + $0x48] sm:$0xff]
    %v2363 = vld [vmem:[%s2352 + $0x50] sm:$0x33]
    %v2364 = vpack.c.b16 %v1649, %v1648
    %v2365 = vpack.c.b16 %v1651, %v1650
    %v2366 = vpack.c.b16 %v1653, %v1652
    %v2367 = vpack.c.b16 %v1655, %v1654
    %v2368 = vpack.c.b16 %v2180, %v2180
    %v2380 = vunpack.c.l.b16 %v2353
    %v2381 = vunpack.c.h.b16 %v2353
    %v2382 = vunpack.c.l.b16 %v2354
    %v2383 = vunpack.c.h.b16 %v2354
    %v2384 = vunpack.c.l.b16 %v2355
    %v2385 = vunpack.c.h.b16 %v2355
    %v2386 = vunpack.c.l.b16 %v2356
    %v2387 = vunpack.c.h.b16 %v2356
    %v2388 = vunpack.c.l.b16 %v2357
    %v2389 = vunpack.c.h.b16 %v2357
    %v2390 = vunpack.c.l.b16 %v2358
    %v2391 = vunpack.c.h.b16 %v2358
    %v2392 = vunpack.c.l.b16 %v2359
    %v2393 = vunpack.c.h.b16 %v2359
    %v2394 = vunpack.c.l.b16 %v2360
    %v2395 = vunpack.c.h.b16 %v2360
    %v2396 = vunpack.c.l.b16 %v2361
    %v2397 = vunpack.c.h.b16 %v2361
    %v2398 = vunpack.c.l.b16 %v2362
    %v2399 = vunpack.c.h.b16 %v2362
    %v2400 = vunpack.c.l.b16 %v2363
    %v2401 = vunpack.c.h.b16 %v2363
    %v2402 = vpack.c.b16 %v2382, %v2380
    %v2403 = vpack.c.b16 %v2383, %v2381
    %v2404 = vpack.c.b16 %v2386, %v2384
    %v2405 = vpack.c.b16 %v2387, %v2385
    %v2406 = vpack.c.b16 %v2390, %v2388
    %v2407 = vpack.c.b16 %v2391, %v2389
    %v2408 = vpack.c.b16 %v2394, %v2392
    %v2409 = vpack.c.b16 %v2395, %v2393
    %v2410 = vpack.c.b16 %v2398, %v2396
    %v2411 = vpack.c.b16 %v2399, %v2397
    %v2412 = vpack.c.b16 %v2400, %v2400
    %v2413 = vpack.c.b16 %v2401, %v2401
    %v2425 = vsel %vm1716, %v2364, 0
    %v2428 = vsel %vm1716, %v2365, 0
    %v2431 = vsel %vm1716, %v2366, 0
    %v2434 = vsel %vm1716, %v2367, 0
    %v2437 = vsel %vm1716, %v2368, 0
    %v2440 = vsel %vm1732, %v2412, 0
    %v2443 = vsel %vm1732, %v2413, 0
    %2445 = vmatpush.bf16.msra.mxu0 0
    %2446 = vmatpush.bf16.msra.mxu0 0
    %2447 = vmatpush.bf16.msra.mxu0 %v2440
    %2448 = vmatpush.bf16.msra.mxu0 %v2410
    %2449 = vmatpush.bf16.msra.mxu0 %v2408
    %2450 = vmatpush.bf16.msra.mxu0 %v2406
    %2451 = vmatpush.bf16.msra.mxu0 %v2404
    %2452 = vmatpush.bf16.msra.mxu0 %v2402
    %2453 = vmatmul.bf16.gmra.mxu0 %v2425
    %v2454 = vpop.f32.mrf.mxu0
    %v2455 = vadd.f32 0.0, %v2454
    %v2456 = vpop.f32.mrf.mxu0
    %v2457 = vadd.f32 0.0, %v2456
    %2458 = vmatmul.bf16.gmra.mxu0 %v2428
    %v2459 = vpop.f32.mrf.mxu0
    %v2460 = vadd.f32 0.0, %v2459
    %v2461 = vpop.f32.mrf.mxu0
    %v2462 = vadd.f32 0.0, %v2461
    %2463 = vmatmul.bf16.gmra.mxu0 %v2431
    %v2464 = vpop.f32.mrf.mxu0
    %v2465 = vadd.f32 0.0, %v2464
    %v2466 = vpop.f32.mrf.mxu0
    %v2467 = vadd.f32 0.0, %v2466
    %2468 = vmatmul.bf16.gmra.mxu0 %v2434
    %v2469 = vpop.f32.mrf.mxu0
    %v2470 = vadd.f32 0.0, %v2469
    %v2471 = vpop.f32.mrf.mxu0
    %v2472 = vadd.f32 0.0, %v2471
    %2473 = vmatmul.bf16.gmra.mxu0 %v2437
    %v2474 = vpop.f32.mrf.mxu0
    %v2475 = vadd.f32 0.0, %v2474
    %v2476 = vpop.f32.mrf.mxu0
    %2477 = vdwg.mxu0
    %2478 = vmatpush.bf16.msra.mxu0 0
    %2479 = vmatpush.bf16.msra.mxu0 0
    %2480 = vmatpush.bf16.msra.mxu0 %v2443
    %2481 = vmatpush.bf16.msra.mxu0 %v2411
    %2482 = vmatpush.bf16.msra.mxu0 %v2409
    %2483 = vmatpush.bf16.msra.mxu0 %v2407
    %2484 = vmatpush.bf16.msra.mxu0 %v2405
    %2485 = vmatpush.bf16.msra.mxu0 %v2403
    %2486 = vmatmul.bf16.gmra.mxu0 %v2425
    %v2487 = vpop.f32.mrf.mxu0
    %v2488 = vadd.f32 0.0, %v2487
    %v2489 = vpop.f32.mrf.mxu0
    %v2490 = vadd.f32 0.0, %v2489
    %2491 = vmatmul.bf16.gmra.mxu0 %v2428
    %v2492 = vpop.f32.mrf.mxu0
    %v2493 = vadd.f32 0.0, %v2492
    %v2494 = vpop.f32.mrf.mxu0
    %v2495 = vadd.f32 0.0, %v2494
    %2496 = vmatmul.bf16.gmra.mxu0 %v2431
    %v2497 = vpop.f32.mrf.mxu0
    %v2498 = vadd.f32 0.0, %v2497
    %v2499 = vpop.f32.mrf.mxu0
    %v2500 = vadd.f32 0.0, %v2499
    %2501 = vmatmul.bf16.gmra.mxu0 %v2434
    %v2502 = vpop.f32.mrf.mxu0
    %v2503 = vadd.f32 0.0, %v2502
    %v2504 = vpop.f32.mrf.mxu0
    %v2505 = vadd.f32 0.0, %v2504
    %2506 = vmatmul.bf16.gmra.mxu0 %v2437
    %v2507 = vpop.f32.mrf.mxu0
    %v2508 = vadd.f32 0.0, %v2507
    %v2509 = vpop.f32.mrf.mxu0
    %2510 = vdwg.mxu0
    %v2511 = vadd.f32 %v2334, %v2455
    %v2512 = vadd.f32 %v2335, %v2488
    %v2513 = vadd.f32 %v2336, %v2457
    %v2514 = vadd.f32 %v2337, %v2490
    %v2515 = vadd.f32 %v2338, %v2460
    %v2516 = vadd.f32 %v2339, %v2493
    %v2517 = vadd.f32 %v2340, %v2462
    %v2518 = vadd.f32 %v2341, %v2495
    %v2519 = vadd.f32 %v2342, %v2465
    %v2520 = vadd.f32 %v2343, %v2498
    %v2521 = vadd.f32 %v2344, %v2467
    %v2522 = vadd.f32 %v2345, %v2500
    %v2523 = vadd.f32 %v2346, %v2470
    %v2524 = vadd.f32 %v2347, %v2503
    %v2525 = vadd.f32 %v2348, %v2472
    %v2526 = vadd.f32 %v2349, %v2505
    %v2527 = vadd.f32 %v2350, %v2475
    %v2528 = vadd.f32 %v2351, %v2508
    %v2529 = vmax.f32 %v2511, 0.0
    %v2530 = vmax.f32 %v2512, 0.0
    %v2531 = vmax.f32 %v2513, 0.0
    %v2532 = vmax.f32 %v2514, 0.0
    %v2533 = vmax.f32 %v2515, 0.0
    %v2534 = vmax.f32 %v2516, 0.0
    %v2535 = vmax.f32 %v2517, 0.0
    %v2536 = vmax.f32 %v2518, 0.0
    %v2537 = vmax.f32 %v2519, 0.0
    %v2538 = vmax.f32 %v2520, 0.0
    %v2539 = vmax.f32 %v2521, 0.0
    %v2540 = vmax.f32 %v2522, 0.0
    %v2541 = vmax.f32 %v2523, 0.0
    %v2542 = vmax.f32 %v2524, 0.0
    %v2543 = vmax.f32 %v2525, 0.0
    %v2544 = vmax.f32 %v2526, 0.0
    %v2545 = vmax.f32 %v2527, 0.0
    %v2546 = vmax.f32 %v2528, 0.0
    %vm2565 = vcmask 1045504
    %v2566 = vrot.slane %v2529, 2
    %v2567 = vrot.slane %v2531, 2
    %v2568 = vsel %vm2565, %v2566, %v2567
    %v2569 = vrot.slane %v2530, 2
    %v2570 = vrot.slane %v2532, 2
    %v2571 = vsel %vm2565, %v2569, %v2570
    %v2572 = vrot.slane %v2533, 2
    %v2573 = vsel %vm2565, %v2567, %v2572
    %v2574 = vrot.slane %v2534, 2
    %v2575 = vsel %vm2565, %v2570, %v2574
    %v2576 = vrot.slane %v2535, 2
    %v2577 = vsel %vm2565, %v2572, %v2576
    %v2578 = vrot.slane %v2536, 2
    %v2579 = vsel %vm2565, %v2574, %v2578
    %v2580 = vrot.slane %v2537, 2
    %v2581 = vsel %vm2565, %v2576, %v2580
    %v2582 = vrot.slane %v2538, 2
    %v2583 = vsel %vm2565, %v2578, %v2582
    %v2584 = vrot.slane %v2539, 2
    %v2585 = vsel %vm2565, %v2580, %v2584
    %v2586 = vrot.slane %v2540, 2
    %v2587 = vsel %vm2565, %v2582, %v2586
    %v2588 = vrot.slane %v2541, 2
    %v2589 = vsel %vm2565, %v2584, %v2588
    %v2590 = vrot.slane %v2542, 2
    %v2591 = vsel %vm2565, %v2586, %v2590
    %v2592 = vrot.slane %v2543, 2
    %v2593 = vsel %vm2565, %v2588, %v2592
    %v2594 = vrot.slane %v2544, 2
    %v2595 = vsel %vm2565, %v2590, %v2594
    %v2596 = vrot.slane %v2545, 2
    %v2597 = vsel %vm2565, %v2592, %v2596
    %v2598 = vrot.slane %v2546, 2
    %v2599 = vsel %vm2565, %v2594, %v2598
    %v2618 = vmax.f32 %v2529, %v2568
    %v2619 = vmax.f32 %v2530, %v2571
    %v2620 = vmax.f32 %v2531, %v2573
    %v2621 = vmax.f32 %v2532, %v2575
    %v2622 = vmax.f32 %v2533, %v2577
    %v2623 = vmax.f32 %v2534, %v2579
    %v2624 = vmax.f32 %v2535, %v2581
    %v2625 = vmax.f32 %v2536, %v2583
    %v2626 = vmax.f32 %v2537, %v2585
    %v2627 = vmax.f32 %v2538, %v2587
    %v2628 = vmax.f32 %v2539, %v2589
    %v2629 = vmax.f32 %v2540, %v2591
    %v2630 = vmax.f32 %v2541, %v2593
    %v2631 = vmax.f32 %v2542, %v2595
    %v2632 = vmax.f32 %v2543, %v2597
    %v2633 = vmax.f32 %v2544, %v2599
    %v2634 = vmax.f32 %v2545, %v2596
    %v2635 = vmax.f32 %v2546, %v2598
    %v2636 = vpack.c.bf16 %v2620, %v2618
    %v2637 = vpack.c.bf16 %v2621, %v2619
    %v2638 = vpack.c.bf16 %v2624, %v2622
    %v2639 = vpack.c.bf16 %v2625, %v2623
    %v2640 = vpack.c.bf16 %v2628, %v2626
    %v2641 = vpack.c.bf16 %v2629, %v2627
    %v2642 = vpack.c.bf16 %v2632, %v2630
    %v2643 = vpack.c.bf16 %v2633, %v2631
    %v2644 = vpack.c.bf16 %v2634, %v2634
    %v2645 = vpack.c.bf16 %v2635, %v2635
    %v2646 = vld [vmem:[#allocation8] sm:$0xf]
    %v2647 = vld [vmem:[#allocation8 + $0x4] sm:$0xf]
    %v2648 = vld [vmem:[#allocation8 + $0x8] sm:$0xf]
    %v2649 = vld [vmem:[#allocation8 + $0xc] sm:$0xf]
    %v2650 = vld [vmem:[#allocation8 + $0x10] sm:$0xf]
    %v2651 = vld [vmem:[#allocation8 + $0x14] sm:$0xf]
    %v2652 = vld [vmem:[#allocation8 + $0x18] sm:$0xf]
    %v2653 = vld [vmem:[#allocation8 + $0x1c] sm:$0xf]
    %v2654 = vld [vmem:[#allocation8 + $0x20] sm:$0xf]
    %v2655 = vld [vmem:[#allocation8 + $0x24] sm:$0xf]
    %v2656 = vld [vmem:[#allocation8 + $0x28] sm:$0xf]
    %v2657 = vld [vmem:[#allocation8 + $0x2c] sm:$0xf]
    %v2658 = vld [vmem:[#allocation8 + $0x30] sm:$0xf]
    %v2659 = vld [vmem:[#allocation8 + $0x34] sm:$0xf]
    %v2660 = vld [vmem:[#allocation8 + $0x38] sm:$0xf]
    %v2661 = vld [vmem:[#allocation8 + $0x3c] sm:$0xf]
    %v2662 = vld [vmem:[#allocation8 + $0x40] sm:$0xf]
    %v2663 = vld [vmem:[#allocation8 + $0x44] sm:$0xf]
    %v2664 = vld [vmem:[#allocation8 + $0x48] sm:$0xf]
    %v2665 = vld [vmem:[#allocation8 + $0x4c] sm:$0xf]
    %v2686 = vunpack.c.l.b16 %v2646
    %v2687 = vunpack.c.l.b16 %v2647
    %v2688 = vunpack.c.l.b16 %v2648
    %v2689 = vunpack.c.l.b16 %v2649
    %v2690 = vunpack.c.l.b16 %v2650
    %v2691 = vunpack.c.l.b16 %v2651
    %v2692 = vunpack.c.l.b16 %v2652
    %v2693 = vunpack.c.l.b16 %v2653
    %v2694 = vunpack.c.l.b16 %v2654
    %v2695 = vunpack.c.l.b16 %v2655
    %v2696 = vunpack.c.l.b16 %v2656
    %v2697 = vunpack.c.l.b16 %v2657
    %v2698 = vunpack.c.l.b16 %v2658
    %v2699 = vunpack.c.l.b16 %v2659
    %v2700 = vunpack.c.l.b16 %v2660
    %v2701 = vunpack.c.l.b16 %v2661
    %v2702 = vunpack.c.l.b16 %v2662
    %v2703 = vunpack.c.l.b16 %v2663
    %v2704 = vunpack.c.l.b16 %v2664
    %v2705 = vunpack.c.l.b16 %v2665
    %v2706 = vpack.c.b16 %v2687, %v2686
    %v2707 = vpack.c.b16 %v2689, %v2688
    %v2708 = vpack.c.b16 %v2691, %v2690
    %v2709 = vpack.c.b16 %v2693, %v2692
    %v2710 = vpack.c.b16 %v2695, %v2694
    %v2711 = vpack.c.b16 %v2697, %v2696
    %v2712 = vpack.c.b16 %v2699, %v2698
    %v2713 = vpack.c.b16 %v2701, %v2700
    %v2714 = vpack.c.b16 %v2703, %v2702
    %v2715 = vpack.c.b16 %v2705, %v2704
    %vm2726 = vcmask 261120
    %v2728 = vsel %vm2726, %v2637, 0
    %v2731 = vsel %vm2726, %v2639, 0
    %v2734 = vsel %vm2726, %v2641, 0
    %v2737 = vsel %vm2726, %v2643, 0
    %v2740 = vsel %vm2726, %v2645, 0
    %2742 = vmatpush.bf16.msra.mxu0 %v2713
    %2743 = vmatpush.bf16.msra.mxu0 %v2712
    %2744 = vmatpush.bf16.msra.mxu0 %v2711
    %2745 = vmatpush.bf16.msra.mxu0 %v2710
    %2746 = vmatpush.bf16.msra.mxu0 %v2709
    %2747 = vmatpush.bf16.msra.mxu0 %v2708
    %2748 = vmatpush.bf16.msra.mxu0 %v2707
    %2749 = vmatpush.bf16.msra.mxu0 %v2706
    %2750 = vmatmul.bf16.gmra.mxu0 %v2636
    %v2751 = vpop.f32.mrf.mxu0
    %v2752 = vadd.f32 0.0, %v2751
    %v2753 = vpop.f32.mrf.mxu0
    %v2754 = vadd.f32 0.0, %v2753
    %2755 = vmatmul.bf16.gmra.mxu0 %v2638
    %v2756 = vpop.f32.mrf.mxu0
    %v2757 = vadd.f32 0.0, %v2756
    %v2758 = vpop.f32.mrf.mxu0
    %v2759 = vadd.f32 0.0, %v2758
    %2760 = vmatmul.bf16.gmra.mxu0 %v2640
    %v2761 = vpop.f32.mrf.mxu0
    %v2762 = vadd.f32 0.0, %v2761
    %v2763 = vpop.f32.mrf.mxu0
    %v2764 = vadd.f32 0.0, %v2763
    %2765 = vmatmul.bf16.gmra.mxu0 %v2642
    %v2766 = vpop.f32.mrf.mxu0
    %v2767 = vadd.f32 0.0, %v2766
    %v2768 = vpop.f32.mrf.mxu0
    %v2769 = vadd.f32 0.0, %v2768
    %2770 = vmatmul.bf16.gmra.mxu0 %v2644
    %v2771 = vpop.f32.mrf.mxu0
    %v2772 = vpop.f32.mrf.mxu0
    %2773 = vdwg.mxu0
    %2774 = vmatpush.bf16.msra.mxu0 0
    %2775 = vmatpush.bf16.msra.mxu0 0
    %2776 = vmatpush.bf16.msra.mxu0 0
    %2777 = vmatpush.bf16.msra.mxu0 0
    %2778 = vmatpush.bf16.msra.mxu0 0
    %2779 = vmatpush.bf16.msra.mxu0 0
    %2780 = vmatpush.bf16.msra.mxu0 %v2715
    %2781 = vmatpush.bf16.msra.mxu0 %v2714
    %2782 = vmatmul.bf16.gmra.mxu0 %v2728
    %v2783 = vpop.f32.mrf.mxu0
    %v2784 = vadd.f32 %v2752, %v2783
    %v2785 = vpop.f32.mrf.mxu0
    %v2786 = vadd.f32 %v2754, %v2785
    %2787 = vmatmul.bf16.gmra.mxu0 %v2731
    %v2788 = vpop.f32.mrf.mxu0
    %v2789 = vadd.f32 %v2757, %v2788
    %v2790 = vpop.f32.mrf.mxu0
    %v2791 = vadd.f32 %v2759, %v2790
    %2792 = vmatmul.bf16.gmra.mxu0 %v2734
    %v2793 = vpop.f32.mrf.mxu0
    %v2794 = vadd.f32 %v2762, %v2793
    %v2795 = vpop.f32.mrf.mxu0
    %v2796 = vadd.f32 %v2764, %v2795
    %2797 = vmatmul.bf16.gmra.mxu0 %v2737
    %v2798 = vpop.f32.mrf.mxu0
    %v2799 = vadd.f32 %v2767, %v2798
    %v2800 = vpop.f32.mrf.mxu0
    %v2801 = vadd.f32 %v2769, %v2800
    %2802 = vmatmul.bf16.gmra.mxu0 %v2740
    %v2803 = vpop.f32.mrf.mxu0
    %v2804 = vpop.f32.mrf.mxu0
    %2805 = vdwg.mxu0
    %s2806 = scalar_lea.vmem [#allocation8], 80
    %v2807 = vld [vmem:[%s2806] sm:$0xf]
    %v2808 = vld [vmem:[%s2806 + $0x4] sm:$0xf]
    %v2809 = vld [vmem:[%s2806 + $0x8] sm:$0xf]
    %v2810 = vld [vmem:[%s2806 + $0xc] sm:$0xf]
    %v2811 = vld [vmem:[%s2806 + $0x10] sm:$0xf]
    %v2812 = vld [vmem:[%s2806 + $0x14] sm:$0xf]
    %v2813 = vld [vmem:[%s2806 + $0x18] sm:$0xf]
    %v2814 = vld [vmem:[%s2806 + $0x1c] sm:$0xf]
    %v2815 = vld [vmem:[%s2806 + $0x20] sm:$0xf]
    %v2816 = vld [vmem:[%s2806 + $0x24] sm:$0xf]
    %v2817 = vld [vmem:[%s2806 + $0x28] sm:$0xf]
    %v2818 = vld [vmem:[%s2806 + $0x2c] sm:$0xf]
    %v2819 = vld [vmem:[%s2806 + $0x30] sm:$0xf]
    %v2820 = vld [vmem:[%s2806 + $0x34] sm:$0xf]
    %v2821 = vld [vmem:[%s2806 + $0x38] sm:$0xf]
    %v2822 = vld [vmem:[%s2806 + $0x3c] sm:$0xf]
    %v2823 = vld [vmem:[%s2806 + $0x40] sm:$0xf]
    %v2824 = vld [vmem:[%s2806 + $0x44] sm:$0xf]
    %v2825 = vld [vmem:[%s2806 + $0x48] sm:$0xf]
    %v2826 = vld [vmem:[%s2806 + $0x4c] sm:$0xf]
    %v2847 = vunpack.c.l.b16 %v2807
    %v2848 = vunpack.c.l.b16 %v2808
    %v2849 = vunpack.c.l.b16 %v2809
    %v2850 = vunpack.c.l.b16 %v2810
    %v2851 = vunpack.c.l.b16 %v2811
    %v2852 = vunpack.c.l.b16 %v2812
    %v2853 = vunpack.c.l.b16 %v2813
    %v2854 = vunpack.c.l.b16 %v2814
    %v2855 = vunpack.c.l.b16 %v2815
    %v2856 = vunpack.c.l.b16 %v2816
    %v2857 = vunpack.c.l.b16 %v2817
    %v2858 = vunpack.c.l.b16 %v2818
    %v2859 = vunpack.c.l.b16 %v2819
    %v2860 = vunpack.c.l.b16 %v2820
    %v2861 = vunpack.c.l.b16 %v2821
    %v2862 = vunpack.c.l.b16 %v2822
    %v2863 = vunpack.c.l.b16 %v2823
    %v2864 = vunpack.c.l.b16 %v2824
    %v2865 = vunpack.c.l.b16 %v2825
    %v2866 = vunpack.c.l.b16 %v2826
    %v2867 = vpack.c.b16 %v2848, %v2847
    %v2868 = vpack.c.b16 %v2850, %v2849
    %v2869 = vpack.c.b16 %v2852, %v2851
    %v2870 = vpack.c.b16 %v2854, %v2853
    %v2871 = vpack.c.b16 %v2856, %v2855
    %v2872 = vpack.c.b16 %v2858, %v2857
    %v2873 = vpack.c.b16 %v2860, %v2859
    %v2874 = vpack.c.b16 %v2862, %v2861
    %v2875 = vpack.c.b16 %v2864, %v2863
    %v2876 = vpack.c.b16 %v2866, %v2865
    %2887 = vmatpush.bf16.msra.mxu0 %v2874
    %2888 = vmatpush.bf16.msra.mxu0 %v2873
    %2889 = vmatpush.bf16.msra.mxu0 %v2872
    %2890 = vmatpush.bf16.msra.mxu0 %v2871
    %2891 = vmatpush.bf16.msra.mxu0 %v2870
    %2892 = vmatpush.bf16.msra.mxu0 %v2869
    %2893 = vmatpush.bf16.msra.mxu0 %v2868
    %2894 = vmatpush.bf16.msra.mxu0 %v2867
    %2895 = vmatmul.bf16.gmra.mxu0 %v2636
    %v2896 = vpop.f32.mrf.mxu0
    %v2897 = vadd.f32 0.0, %v2896
    %v2898 = vpop.f32.mrf.mxu0
    %v2899 = vadd.f32 0.0, %v2898
    %2900 = vmatmul.bf16.gmra.mxu0 %v2638
    %v2901 = vpop.f32.mrf.mxu0
    %v2902 = vadd.f32 0.0, %v2901
    %v2903 = vpop.f32.mrf.mxu0
    %v2904 = vadd.f32 0.0, %v2903
    %2905 = vmatmul.bf16.gmra.mxu0 %v2640
    %v2906 = vpop.f32.mrf.mxu0
    %v2907 = vadd.f32 0.0, %v2906
    %v2908 = vpop.f32.mrf.mxu0
    %v2909 = vadd.f32 0.0, %v2908
    %2910 = vmatmul.bf16.gmra.mxu0 %v2642
    %v2911 = vpop.f32.mrf.mxu0
    %v2912 = vadd.f32 0.0, %v2911
    %v2913 = vpop.f32.mrf.mxu0
    %v2914 = vadd.f32 0.0, %v2913
    %2915 = vmatmul.bf16.gmra.mxu0 %v2644
    %v2916 = vpop.f32.mrf.mxu0
    %v2917 = vpop.f32.mrf.mxu0
    %2918 = vdwg.mxu0
    %2919 = vmatpush.bf16.msra.mxu0 0
    %2920 = vmatpush.bf16.msra.mxu0 0
    %2921 = vmatpush.bf16.msra.mxu0 0
    %2922 = vmatpush.bf16.msra.mxu0 0
    %2923 = vmatpush.bf16.msra.mxu0 0
    %2924 = vmatpush.bf16.msra.mxu0 0
    %2925 = vmatpush.bf16.msra.mxu0 %v2876
    %2926 = vmatpush.bf16.msra.mxu0 %v2875
    %2927 = vmatmul.bf16.gmra.mxu0 %v2728
    %v2928 = vpop.f32.mrf.mxu0
    %v2929 = vadd.f32 %v2897, %v2928
    %v2930 = vpop.f32.mrf.mxu0
    %v2931 = vadd.f32 %v2899, %v2930
    %2932 = vmatmul.bf16.gmra.mxu0 %v2731
    %v2933 = vpop.f32.mrf.mxu0
    %v2934 = vadd.f32 %v2902, %v2933
    %v2935 = vpop.f32.mrf.mxu0
    %v2936 = vadd.f32 %v2904, %v2935
    %2937 = vmatmul.bf16.gmra.mxu0 %v2734
    %v2938 = vpop.f32.mrf.mxu0
    %v2939 = vadd.f32 %v2907, %v2938
    %v2940 = vpop.f32.mrf.mxu0
    %v2941 = vadd.f32 %v2909, %v2940
    %2942 = vmatmul.bf16.gmra.mxu0 %v2737
    %v2943 = vpop.f32.mrf.mxu0
    %v2944 = vadd.f32 %v2912, %v2943
    %v2945 = vpop.f32.mrf.mxu0
    %v2946 = vadd.f32 %v2914, %v2945
    %2947 = vmatmul.bf16.gmra.mxu0 %v2740
    %v2948 = vpop.f32.mrf.mxu0
    %v2949 = vpop.f32.mrf.mxu0
    %2950 = vdwg.mxu0
    %v2951 = vmax.f32 %v2784, %v2929
    %v2952 = vmax.f32 %v2786, %v2931
    %v2953 = vmax.f32 %v2789, %v2934
    %v2954 = vmax.f32 %v2791, %v2936
    %v2955 = vmax.f32 %v2794, %v2939
    %v2956 = vmax.f32 %v2796, %v2941
    %v2957 = vmax.f32 %v2799, %v2944
    %v2958 = vmax.f32 %v2801, %v2946
    %v2959 = vpack.c.bf16 %v2951, %v2951
    %v2960 = vpack.c.bf16 %v2952, %v2952
    %v2961 = vpack.c.bf16 %v2953, %v2953
    %v2962 = vpack.c.bf16 %v2954, %v2954
    %v2963 = vpack.c.bf16 %v2955, %v2955
    %v2964 = vpack.c.bf16 %v2956, %v2956
    %v2965 = vpack.c.bf16 %v2957, %v2957
    %v2966 = vpack.c.bf16 %v2958, %v2958
    %v2967 = vld [vmem:[#allocation2] sm:$0x1]
    %v2968 = vld [vmem:[%s9] sm:$0x1]
    %v2975 = vunpack.c.l.b16 %v2959
    %v2976 = vunpack.c.l.b16 %v2960
    %v2977 = vunpack.c.l.b16 %v2961
    %v2978 = vunpack.c.l.b16 %v2962
    %v2979 = vunpack.c.l.b16 %v2963
    %v2980 = vunpack.c.l.b16 %v2964
    %v2981 = vpack.c.b16 %v2976, %v2975
    %v2982 = vpack.c.b16 %v2978, %v2977
    %v2983 = vpack.c.b16 %v2980, %v2979
    %vm2987 = vcmask 392192
    %v2989 = vsel %vm2987, %v2967, 0
    %2991 = vmatpush.bf16.msra.mxu0 0
    %2992 = vmatpush.bf16.msra.mxu0 0
    %2993 = vmatpush.bf16.msra.mxu0 0
    %2994 = vmatpush.bf16.msra.mxu0 0
    %2995 = vmatpush.bf16.msra.mxu0 0
    %2996 = vmatpush.bf16.msra.mxu0 %v2983
    %2997 = vmatpush.bf16.msra.mxu0 %v2982
    %2998 = vmatpush.bf16.msra.mxu0 %v2981
    %2999 = vmatmul.bf16.gmra.mxu0 %v2989
    %v3000 = vpop.f32.mrf.mxu0
    %v3001 = vadd.f32 0.0, %v3000
    %v3002 = vpop.f32.mrf.mxu0
    %3003 = vdwg.mxu0
    %v3004 = vpack.c.bf16 %v3001, %v3001
    %v3005 = vld [vmem:[%s8] sm:$0xf]
    %v3006 = vld [vmem:[%s8 + $0x4] sm:$0xf]
    %v3007 = vld [vmem:[%s8 + $0x8] sm:$0xf]
    %v3008 = vld [vmem:[%s8 + $0xc] sm:$0xf]
    %v3009 = vld [vmem:[%s8 + $0x10] sm:$0xf]
    %v3010 = vld [vmem:[%s8 + $0x14] sm:$0xf]
    %v3011 = vld [vmem:[%s8 + $0x18] sm:$0xf]
    %v3012 = vld [vmem:[%s8 + $0x1c] sm:$0xf]
    %v3013 = vld [vmem:[%s8 + $0x20] sm:$0xf]
    %v3014 = vld [vmem:[%s8 + $0x24] sm:$0xf]
    %v3025 = vunpack.c.l.b16 %v3005
    %v3026 = vunpack.c.l.b16 %v3006
    %v3027 = vunpack.c.l.b16 %v3007
    %v3028 = vunpack.c.l.b16 %v3008
    %v3029 = vunpack.c.l.b16 %v3009
    %v3030 = vunpack.c.l.b16 %v3010
    %v3031 = vunpack.c.l.b16 %v3011
    %v3032 = vunpack.c.l.b16 %v3012
    %v3033 = vunpack.c.l.b16 %v3013
    %v3034 = vunpack.c.l.b16 %v3014
    %v3035 = vpack.c.b16 %v3026, %v3025
    %v3036 = vpack.c.b16 %v3028, %v3027
    %v3037 = vpack.c.b16 %v3030, %v3029
    %v3038 = vpack.c.b16 %v3032, %v3031
    %v3039 = vpack.c.b16 %v3034, %v3033
    %vm3045 = vcmask 654336
    %v3047 = vsel %vm3045, %v3004, 0
    %3049 = vmatpush.bf16.msra.mxu0 0
    %3050 = vmatpush.bf16.msra.mxu0 0
    %3051 = vmatpush.bf16.msra.mxu0 0
    %3052 = vmatpush.bf16.msra.mxu0 %v3039
    %3053 = vmatpush.bf16.msra.mxu0 %v3038
    %3054 = vmatpush.bf16.msra.mxu0 %v3037
    %3055 = vmatpush.bf16.msra.mxu0 %v3036
    %3056 = vmatpush.bf16.msra.mxu0 %v3035
    %3057 = vmatmul.bf16.gmra.mxu0 %v3047
    %v3058 = vpop.f32.mrf.mxu0
    %v3059 = vadd.f32 0.0, %v3058
    %v3060 = vpop.f32.mrf.mxu0
    %3061 = vdwg.mxu0
    %v3063 = vperm.slane %v2968, 0
    %v3065 = vadd.f32 %v3063, %v3059
    %v3067 = vunpack.c.l.b16 %v2965
    %v3068 = vpack.c.b16 %v3067, %v3067
    %v3069 = vrot.slane %v2981, 2
    %v3070 = vrot.slane %v2982, 2
    %v3071 = vsel %vm971, %v3069, %v3070
    %v3072 = vrot.slane %v2983, 2
    %v3073 = vsel %vm971, %v3070, %v3072
    %v3074 = vrot.slane %v3068, 2
    %v3075 = vsel %vm971, %v3072, %v3074
    %3079 = vmatpush.bf16.msra.mxu0 0
    %3080 = vmatpush.bf16.msra.mxu0 0
    %3081 = vmatpush.bf16.msra.mxu0 0
    %3082 = vmatpush.bf16.msra.mxu0 0
    %3083 = vmatpush.bf16.msra.mxu0 0
    %3084 = vmatpush.bf16.msra.mxu0 %v3075
    %3085 = vmatpush.bf16.msra.mxu0 %v3073
    %3086 = vmatpush.bf16.msra.mxu0 %v3071
    %3087 = vmatmul.bf16.gmra.mxu0 %v2989
    %v3088 = vpop.f32.mrf.mxu0
    %v3089 = vadd.f32 0.0, %v3088
    %v3090 = vpop.f32.mrf.mxu0
    %3091 = vdwg.mxu0
    %v3092 = vpack.c.bf16 %v3089, %v3089
    %s3093 = scalar_lea.vmem %s8, 40
    %v3094 = vld [vmem:[%s3093] sm:$0xf]
    %v3095 = vld [vmem:[%s3093 + $0x4] sm:$0xf]
    %v3096 = vld [vmem:[%s3093 + $0x8] sm:$0xf]
    %v3097 = vld [vmem:[%s3093 + $0xc] sm:$0xf]
    %v3098 = vld [vmem:[%s3093 + $0x10] sm:$0xf]
    %v3099 = vld [vmem:[%s3093 + $0x14] sm:$0xf]
    %v3100 = vld [vmem:[%s3093 + $0x18] sm:$0xf]
    %v3101 = vld [vmem:[%s3093 + $0x1c] sm:$0xf]
    %v3102 = vld [vmem:[%s3093 + $0x20] sm:$0xf]
    %v3103 = vld [vmem:[%s3093 + $0x24] sm:$0xf]
    %v3114 = vunpack.c.l.b16 %v3094
    %v3115 = vunpack.c.l.b16 %v3095
    %v3116 = vunpack.c.l.b16 %v3096
    %v3117 = vunpack.c.l.b16 %v3097
    %v3118 = vunpack.c.l.b16 %v3098
    %v3119 = vunpack.c.l.b16 %v3099
    %v3120 = vunpack.c.l.b16 %v3100
    %v3121 = vunpack.c.l.b16 %v3101
    %v3122 = vunpack.c.l.b16 %v3102
    %v3123 = vunpack.c.l.b16 %v3103
    %v3124 = vpack.c.b16 %v3115, %v3114
    %v3125 = vpack.c.b16 %v3117, %v3116
    %v3126 = vpack.c.b16 %v3119, %v3118
    %v3127 = vpack.c.b16 %v3121, %v3120
    %v3128 = vpack.c.b16 %v3123, %v3122
    %v3135 = vsel %vm3045, %v3092, 0
    %3137 = vmatpush.bf16.msra.mxu0 0
    %3138 = vmatpush.bf16.msra.mxu0 0
    %3139 = vmatpush.bf16.msra.mxu0 0
    %3140 = vmatpush.bf16.msra.mxu0 %v3128
    %3141 = vmatpush.bf16.msra.mxu0 %v3127
    %3142 = vmatpush.bf16.msra.mxu0 %v3126
    %3143 = vmatpush.bf16.msra.mxu0 %v3125
    %3144 = vmatpush.bf16.msra.mxu0 %v3124
    %3145 = vmatmul.bf16.gmra.mxu0 %v3135
    %v3146 = vpop.f32.mrf.mxu0
    %v3147 = vadd.f32 0.0, %v3146
    %v3148 = vpop.f32.mrf.mxu0
    %3149 = vdwg.mxu0
    %v3150 = vadd.f32 %v3065, %v3147
    %v3151 = vpack.c.b16 %v2977, %v2976
    %v3152 = vpack.c.b16 %v2979, %v2978
    %v3153 = vpack.c.b16 %v3067, %v2980
    %3157 = vmatpush.bf16.msra.mxu0 0
    %3158 = vmatpush.bf16.msra.mxu0 0
    %3159 = vmatpush.bf16.msra.mxu0 0
    %3160 = vmatpush.bf16.msra.mxu0 0
    %3161 = vmatpush.bf16.msra.mxu0 0
    %3162 = vmatpush.bf16.msra.mxu0 %v3153
    %3163 = vmatpush.bf16.msra.mxu0 %v3152
    %3164 = vmatpush.bf16.msra.mxu0 %v3151
    %3165 = vmatmul.bf16.gmra.mxu0 %v2989
    %v3166 = vpop.f32.mrf.mxu0
    %v3167 = vadd.f32 0.0, %v3166
    %v3168 = vpop.f32.mrf.mxu0
    %3169 = vdwg.mxu0
    %v3170 = vpack.c.bf16 %v3167, %v3167
    %s3171 = scalar_lea.vmem %s8, 80
    %v3172 = vld [vmem:[%s3171] sm:$0xf]
    %v3173 = vld [vmem:[%s3171 + $0x4] sm:$0xf]
    %v3174 = vld [vmem:[%s3171 + $0x8] sm:$0xf]
    %v3175 = vld [vmem:[%s3171 + $0xc] sm:$0xf]
    %v3176 = vld [vmem:[%s3171 + $0x10] sm:$0xf]
    %v3177 = vld [vmem:[%s3171 + $0x14] sm:$0xf]
    %v3178 = vld [vmem:[%s3171 + $0x18] sm:$0xf]
    %v3179 = vld [vmem:[%s3171 + $0x1c] sm:$0xf]
    %v3180 = vld [vmem:[%s3171 + $0x20] sm:$0xf]
    %v3181 = vld [vmem:[%s3171 + $0x24] sm:$0xf]
    %v3192 = vunpack.c.l.b16 %v3172
    %v3193 = vunpack.c.l.b16 %v3173
    %v3194 = vunpack.c.l.b16 %v3174
    %v3195 = vunpack.c.l.b16 %v3175
    %v3196 = vunpack.c.l.b16 %v3176
    %v3197 = vunpack.c.l.b16 %v3177
    %v3198 = vunpack.c.l.b16 %v3178
    %v3199 = vunpack.c.l.b16 %v3179
    %v3200 = vunpack.c.l.b16 %v3180
    %v3201 = vunpack.c.l.b16 %v3181
    %v3202 = vpack.c.b16 %v3193, %v3192
    %v3203 = vpack.c.b16 %v3195, %v3194
    %v3204 = vpack.c.b16 %v3197, %v3196
    %v3205 = vpack.c.b16 %v3199, %v3198
    %v3206 = vpack.c.b16 %v3201, %v3200
    %v3213 = vsel %vm3045, %v3170, 0
    %3215 = vmatpush.bf16.msra.mxu0 0
    %3216 = vmatpush.bf16.msra.mxu0 0
    %3217 = vmatpush.bf16.msra.mxu0 0
    %3218 = vmatpush.bf16.msra.mxu0 %v3206
    %3219 = vmatpush.bf16.msra.mxu0 %v3205
    %3220 = vmatpush.bf16.msra.mxu0 %v3204
    %3221 = vmatpush.bf16.msra.mxu0 %v3203
    %3222 = vmatpush.bf16.msra.mxu0 %v3202
    %3223 = vmatmul.bf16.gmra.mxu0 %v3213
    %v3224 = vpop.f32.mrf.mxu0
    %v3225 = vadd.f32 0.0, %v3224
    %v3226 = vpop.f32.mrf.mxu0
    %3227 = vdwg.mxu0
    %v3228 = vadd.f32 %v3150, %v3225
    %v3230 = vunpack.c.l.b16 %v2966
    %v3231 = vpack.c.b16 %v3230, %v3230
    %v3232 = vrot.slane %v3151, 2
    %v3233 = vrot.slane %v3152, 2
    %v3234 = vsel %vm971, %v3232, %v3233
    %v3235 = vrot.slane %v3153, 2
    %v3236 = vsel %vm971, %v3233, %v3235
    %v3237 = vrot.slane %v3231, 2
    %v3238 = vsel %vm971, %v3235, %v3237
    %3242 = vmatpush.bf16.msra.mxu0 0
    %3243 = vmatpush.bf16.msra.mxu0 0
    %3244 = vmatpush.bf16.msra.mxu0 0
    %3245 = vmatpush.bf16.msra.mxu0 0
    %3246 = vmatpush.bf16.msra.mxu0 0
    %3247 = vmatpush.bf16.msra.mxu0 %v3238
    %3248 = vmatpush.bf16.msra.mxu0 %v3236
    %3249 = vmatpush.bf16.msra.mxu0 %v3234
    %3250 = vmatmul.bf16.gmra.mxu0 %v2989
    %v3251 = vpop.f32.mrf.mxu0
    %v3252 = vadd.f32 0.0, %v3251
    %v3253 = vpop.f32.mrf.mxu0
    %3254 = vdwg.mxu0
    %v3255 = vpack.c.bf16 %v3252, %v3252
    %s3256 = scalar_lea.vmem %s8, 120
    %v3257 = vld [vmem:[%s3256] sm:$0xf]
    %v3258 = vld [vmem:[%s3256 + $0x4] sm:$0xf]
    %v3259 = vld [vmem:[%s3256 + $0x8] sm:$0xf]
    %v3260 = vld [vmem:[%s3256 + $0xc] sm:$0xf]
    %v3261 = vld [vmem:[%s3256 + $0x10] sm:$0xf]
    %v3262 = vld [vmem:[%s3256 + $0x14] sm:$0xf]
    %v3263 = vld [vmem:[%s3256 + $0x18] sm:$0xf]
    %v3264 = vld [vmem:[%s3256 + $0x1c] sm:$0xf]
    %v3265 = vld [vmem:[%s3256 + $0x20] sm:$0xf]
    %v3266 = vld [vmem:[%s3256 + $0x24] sm:$0xf]
    %v3277 = vunpack.c.l.b16 %v3257
    %v3278 = vunpack.c.l.b16 %v3258
    %v3279 = vunpack.c.l.b16 %v3259
    %v3280 = vunpack.c.l.b16 %v3260
    %v3281 = vunpack.c.l.b16 %v3261
    %v3282 = vunpack.c.l.b16 %v3262
    %v3283 = vunpack.c.l.b16 %v3263
    %v3284 = vunpack.c.l.b16 %v3264
    %v3285 = vunpack.c.l.b16 %v3265
    %v3286 = vunpack.c.l.b16 %v3266
    %v3287 = vpack.c.b16 %v3278, %v3277
    %v3288 = vpack.c.b16 %v3280, %v3279
    %v3289 = vpack.c.b16 %v3282, %v3281
    %v3290 = vpack.c.b16 %v3284, %v3283
    %v3291 = vpack.c.b16 %v3286, %v3285
    %v3298 = vsel %vm3045, %v3255, 0
    %3300 = vmatpush.bf16.msra.mxu0 0
    %3301 = vmatpush.bf16.msra.mxu0 0
    %3302 = vmatpush.bf16.msra.mxu0 0
    %3303 = vmatpush.bf16.msra.mxu0 %v3291
    %3304 = vmatpush.bf16.msra.mxu0 %v3290
    %3305 = vmatpush.bf16.msra.mxu0 %v3289
    %3306 = vmatpush.bf16.msra.mxu0 %v3288
    %3307 = vmatpush.bf16.msra.mxu0 %v3287
    %3308 = vmatmul.bf16.gmra.mxu0 %v3298
    %v3309 = vpop.f32.mrf.mxu0
    %v3310 = vadd.f32 0.0, %v3309
    %v3311 = vpop.f32.mrf.mxu0
    %3312 = vdwg.mxu0
    %v3313 = vadd.f32 %v3228, %v3310
    %v3314 = vpack.c.b16 %v3230, %v3067
    %3316 = vmatpush.bf16.msra.mxu0 0
    %3317 = vmatpush.bf16.msra.mxu0 0
    %3318 = vmatpush.bf16.msra.mxu0 0
    %3319 = vmatpush.bf16.msra.mxu0 0
    %3320 = vmatpush.bf16.msra.mxu0 0
    %3321 = vmatpush.bf16.msra.mxu0 %v3314
    %3322 = vmatpush.bf16.msra.mxu0 %v2983
    %3323 = vmatpush.bf16.msra.mxu0 %v2982
    %3324 = vmatmul.bf16.gmra.mxu0 %v2989
    %v3325 = vpop.f32.mrf.mxu0
    %v3326 = vadd.f32 0.0, %v3325
    %v3327 = vpop.f32.mrf.mxu0
    %3328 = vdwg.mxu0
    %v3329 = vpack.c.bf16 %v3326, %v3326
    %s3330 = scalar_lea.vmem %s8, 160
    %v3331 = vld [vmem:[%s3330] sm:$0xf]
    %v3332 = vld [vmem:[%s3330 + $0x4] sm:$0xf]
    %v3333 = vld [vmem:[%s3330 + $0x8] sm:$0xf]
    %v3334 = vld [vmem:[%s3330 + $0xc] sm:$0xf]
    %v3335 = vld [vmem:[%s3330 + $0x10] sm:$0xf]
    %v3336 = vld [vmem:[%s3330 + $0x14] sm:$0xf]
    %v3337 = vld [vmem:[%s3330 + $0x18] sm:$0xf]
    %v3338 = vld [vmem:[%s3330 + $0x1c] sm:$0xf]
    %v3339 = vld [vmem:[%s3330 + $0x20] sm:$0xf]
    %v3340 = vld [vmem:[%s3330 + $0x24] sm:$0xf]
    %v3351 = vunpack.c.l.b16 %v3331
    %v3352 = vunpack.c.l.b16 %v3332
    %v3353 = vunpack.c.l.b16 %v3333
    %v3354 = vunpack.c.l.b16 %v3334
    %v3355 = vunpack.c.l.b16 %v3335
    %v3356 = vunpack.c.l.b16 %v3336
    %v3357 = vunpack.c.l.b16 %v3337
    %v3358 = vunpack.c.l.b16 %v3338
    %v3359 = vunpack.c.l.b16 %v3339
    %v3360 = vunpack.c.l.b16 %v3340
    %v3361 = vpack.c.b16 %v3352, %v3351
    %v3362 = vpack.c.b16 %v3354, %v3353
    %v3363 = vpack.c.b16 %v3356, %v3355
    %v3364 = vpack.c.b16 %v3358, %v3357
    %v3365 = vpack.c.b16 %v3360, %v3359
    %v3372 = vsel %vm3045, %v3329, 0
    %3374 = vmatpush.bf16.msra.mxu0 0
    %3375 = vmatpush.bf16.msra.mxu0 0
    %3376 = vmatpush.bf16.msra.mxu0 0
    %3377 = vmatpush.bf16.msra.mxu0 %v3365
    %3378 = vmatpush.bf16.msra.mxu0 %v3364
    %3379 = vmatpush.bf16.msra.mxu0 %v3363
    %3380 = vmatpush.bf16.msra.mxu0 %v3362
    %3381 = vmatpush.bf16.msra.mxu0 %v3361
    %3382 = vmatmul.bf16.gmra.mxu0 %v3372
    %v3383 = vpop.f32.mrf.mxu0
    %v3384 = vadd.f32 0.0, %v3383
    %v3385 = vpop.f32.mrf.mxu0
    %3386 = vdwg.mxu0
    %v3387 = vadd.f32 %v3313, %v3384
    %v3388 = vmax.f32 %v3387, 0.0
    %v3389 = vpack.c.bf16 %v3388, %v3388
    %v3390 = vld [vmem:[#allocation10] sm:$0xf]
    %v3391 = vld [vmem:[#allocation10 + $0x4] sm:$0xf]
    %v3392 = vld [vmem:[#allocation10 + $0x8] sm:$0xf]
    %v3393 = vld [vmem:[#allocation10 + $0xc] sm:$0xf]
    %v3394 = vld [vmem:[#allocation10 + $0x10] sm:$0xf]
    %v3395 = vld [vmem:[#allocation10 + $0x14] sm:$0xf]
    %v3396 = vld [vmem:[#allocation10 + $0x18] sm:$0xf]
    %v3397 = vld [vmem:[#allocation10 + $0x1c] sm:$0xf]
    %v3398 = vld [vmem:[#allocation10 + $0x20] sm:$0xf]
    %v3399 = vld [vmem:[#allocation10 + $0x24] sm:$0xf]
    %v3400 = vld [vmem:[#allocation10 + $0x28] sm:$0xf]
    %v3401 = vld [vmem:[#allocation10 + $0x2c] sm:$0xf]
    %v3402 = vld [vmem:[#allocation10 + $0x30] sm:$0xf]
    %v3403 = vld [vmem:[#allocation10 + $0x34] sm:$0xf]
    %v3404 = vld [vmem:[#allocation10 + $0x38] sm:$0xf]
    %v3405 = vld [vmem:[#allocation10 + $0x3c] sm:$0xf]
    %v3406 = vld [vmem:[%s11] sm:$0x1]
    %v3408 = vperm.slane %v3406, 0
    %v3426 = vunpack.c.l.b16 %v3390
    %v3427 = vunpack.c.l.b16 %v3391
    %v3428 = vunpack.c.l.b16 %v3392
    %v3429 = vunpack.c.l.b16 %v3393
    %v3430 = vunpack.c.l.b16 %v3394
    %v3431 = vunpack.c.l.b16 %v3395
    %v3432 = vunpack.c.l.b16 %v3396
    %v3433 = vunpack.c.l.b16 %v3397
    %v3434 = vunpack.c.l.b16 %v3398
    %v3435 = vunpack.c.l.b16 %v3399
    %v3436 = vunpack.c.l.b16 %v3400
    %v3437 = vunpack.c.l.b16 %v3401
    %v3438 = vunpack.c.l.b16 %v3402
    %v3439 = vunpack.c.l.b16 %v3403
    %v3440 = vunpack.c.l.b16 %v3404
    %v3441 = vunpack.c.l.b16 %v3405
    %v3442 = vpack.c.b16 %v3427, %v3426
    %v3443 = vpack.c.b16 %v3429, %v3428
    %v3444 = vpack.c.b16 %v3431, %v3430
    %v3445 = vpack.c.b16 %v3433, %v3432
    %v3446 = vpack.c.b16 %v3435, %v3434
    %v3447 = vpack.c.b16 %v3437, %v3436
    %v3448 = vpack.c.b16 %v3439, %v3438
    %v3449 = vpack.c.b16 %v3441, %v3440
    %3458 = vmatpush.bf16.msra.mxu0 %v3449
    %3459 = vmatpush.bf16.msra.mxu0 %v3448
    %3460 = vmatpush.bf16.msra.mxu0 %v3447
    %3461 = vmatpush.bf16.msra.mxu0 %v3446
    %3462 = vmatpush.bf16.msra.mxu0 %v3445
    %3463 = vmatpush.bf16.msra.mxu0 %v3444
    %3464 = vmatpush.bf16.msra.mxu0 %v3443
    %3465 = vmatpush.bf16.msra.mxu0 %v3442
    %3466 = vmatmul.bf16.gmra.mxu0 %v3389
    %v3467 = vpop.f32.mrf.mxu0
    %v3468 = vadd.f32 %v3408, %v3467
    %v3469 = vpop.f32.mrf.mxu0
    %3470 = vdwg.mxu0
    %v3471 = vmax.f32 %v3468, 0.0
    %v3472 = vpack.c.bf16 %v3471, %v3471
    %v3473 = vld [vmem:[#allocation11] sm:$0xf]
    %v3474 = vld [vmem:[#allocation11 + $0x4] sm:$0xf]
    %v3475 = vld [vmem:[#allocation11 + $0x8] sm:$0xf]
    %v3476 = vld [vmem:[#allocation11 + $0xc] sm:$0xf]
    %v3477 = vld [vmem:[#allocation11 + $0x10] sm:$0xf]
    %v3478 = vld [vmem:[#allocation11 + $0x14] sm:$0xf]
    %v3479 = vld [vmem:[#allocation11 + $0x18] sm:$0xf]
    %v3480 = vld [vmem:[#allocation11 + $0x1c] sm:$0xf]
    %v3481 = vld [vmem:[#allocation11 + $0x20] sm:$0xf]
    %v3482 = vld [vmem:[#allocation11 + $0x24] sm:$0xf]
    %v3483 = vld [vmem:[#allocation11 + $0x28] sm:$0xf]
    %v3484 = vld [vmem:[#allocation11 + $0x2c] sm:$0xf]
    %v3485 = vld [vmem:[#allocation11 + $0x30] sm:$0xf]
    %v3486 = vld [vmem:[#allocation11 + $0x34] sm:$0xf]
    %v3487 = vld [vmem:[#allocation11 + $0x38] sm:$0xf]
    %v3488 = vld [vmem:[#allocation11 + $0x3c] sm:$0xf]
    %v3489 = vld [vmem:[%s13] sm:$0x1]
    %v3491 = vperm.slane %v3489, 0
    %v3509 = vunpack.c.l.b16 %v3473
    %v3510 = vunpack.c.l.b16 %v3474
    %v3511 = vunpack.c.l.b16 %v3475
    %v3512 = vunpack.c.l.b16 %v3476
    %v3513 = vunpack.c.l.b16 %v3477
    %v3514 = vunpack.c.l.b16 %v3478
    %v3515 = vunpack.c.l.b16 %v3479
    %v3516 = vunpack.c.l.b16 %v3480
    %v3517 = vunpack.c.l.b16 %v3481
    %v3518 = vunpack.c.l.b16 %v3482
    %v3519 = vunpack.c.l.b16 %v3483
    %v3520 = vunpack.c.l.b16 %v3484
    %v3521 = vunpack.c.l.b16 %v3485
    %v3522 = vunpack.c.l.b16 %v3486
    %v3523 = vunpack.c.l.b16 %v3487
    %v3524 = vunpack.c.l.b16 %v3488
    %v3525 = vpack.c.b16 %v3510, %v3509
    %v3526 = vpack.c.b16 %v3512, %v3511
    %v3527 = vpack.c.b16 %v3514, %v3513
    %v3528 = vpack.c.b16 %v3516, %v3515
    %v3529 = vpack.c.b16 %v3518, %v3517
    %v3530 = vpack.c.b16 %v3520, %v3519
    %v3531 = vpack.c.b16 %v3522, %v3521
    %v3532 = vpack.c.b16 %v3524, %v3523
    %3541 = vmatpush.bf16.msra.mxu0 %v3532
    %3542 = vmatpush.bf16.msra.mxu0 %v3531
    %3543 = vmatpush.bf16.msra.mxu0 %v3530
    %3544 = vmatpush.bf16.msra.mxu0 %v3529
    %3545 = vmatpush.bf16.msra.mxu0 %v3528
    %3546 = vmatpush.bf16.msra.mxu0 %v3527
    %3547 = vmatpush.bf16.msra.mxu0 %v3526
    %3548 = vmatpush.bf16.msra.mxu0 %v3525
    %3549 = vmatmul.bf16.gmra.mxu0 %v3472
    %v3550 = vpop.f32.mrf.mxu0
    %v3551 = vadd.f32 %v3491, %v3550
    %v3552 = vpop.f32.mrf.mxu0
    %3553 = vdwg.mxu0
    %3554 = vst [vmem:[#allocation13] sm:$0x3] %v3551
    // Predicated region
    $region82: #{lenet2_forward.1} parent=1 // pred_check
      _
    $region83: #{lenet2_forward.1} parent=1 // pred_check_branch
      %3556 = sbr.rel (0) target = $region85
    $region84: #{lenet2_forward.1} parent=1 // pred_region
      %3558 = vsyncadd [#allocation4], 0
      %s3560 = sshll.u32 [#allocation13], 4
      %s3561 = int_to_ptr.vmem [resolvable:$true] %s3560
      %s3562 = sshll.u32 %s14, 4
      %s3563 = int_to_ptr.hbm [resolvable:$true] %s3562
      %3565 = dma.vmem_to_hbm [thread:$0]  %s3561, 32, %s3563, [#allocation4]
    $region85: #{lenet2_forward.1} parent=1 // pred_fallthru
      _
    // Predicated region
    $region86: #{lenet2_forward.1} parent=1 // pred_check
      _
    $region87: #{lenet2_forward.1} parent=1 // pred_check_branch
      %3567 = sbr.rel (0) target = $region89
    $region88: #{lenet2_forward.1} parent=1 // pred_region
      %3569 = dma.done [#allocation4], 32
    $region89: #{lenet2_forward.1} parent=1 // pred_fallthru
      _
    %3570 = vsyncpa [#allocation3], 1
    %3571 = vsyncpa [#allocation6], 1
    %3572 = vsyncpa [#allocation9], 1
    %3573 = vsyncpa [#allocation12], 1
    %3574 = vsyncpa [#allocation4], 1

</llo_original>
